<compile_context>
chip_gen: v6e
topology: v6e:2x2x1
jax: 0.10.0
libtpu: 0.0.40
codegen_flags: <defaults>
</compile_context>

<pallas_src>
import random

import jax
import jax.numpy as jnp
from jax.experimental import pallas as pl
from jax.experimental.pallas import tpu as pltpu

global_steps = 0


# ----------------------------------------------------------------------------
# Fused kernel (per grid step j over paired weight-column tiles):
#   latents = ori * mask + src * (1 - mask)                      (VPU)
#   noisy   = sqrt(abar_t) * latents + sqrt(1-abar_t) * noise    (VPU)
#   pred    = noisy @ [W1_j | W2_j]                              (MXU, f32 acc)
#   psum_j  = sum((pred1 - noise_j)^2 - (pred2 - noise_j)^2)     (VPU + XLU)
#   loss    = (sum_j psum_j) / (B*D)                             (wrapper)
# ----------------------------------------------------------------------------
def make_loss_fn(B, D, n_steps=2, w_dtype=jnp.bfloat16):
    assert D % n_steps == 0
    half = D // n_steps            # columns of each weight handled per step
    assert half % 128 == 0, "per-step column width must stay lane-aligned"
    tn = 2 * half                  # paired [W1_half | W2_half] tile width
    inv_n = 1.0 / float(B * D)     # MSELoss(reduction='mean') over B*D elems

    def kernel(scale_ref, ori_ref, src_ref, mask_ref, noise_ref, w_ref,
               part_ref):
        j = pl.program_id(0)

        # Blend + forward-diffusion step, recomputed each step (tiny) so the
        # grid steps are fully independent (enables "parallel" / dual-TC).
        sa = scale_ref[0]
        sb = scale_ref[1]
        m = mask_ref[...]
        latents = ori_ref[...] * m + src_ref[...] * (1.0 - m)
        noisy = sa * latents + sb * noise_ref[...]                 # f32 (B, D)

        # (B, D) bf16 @ (D, 2*half) bf16 -> (B, 2*half) with f32 accumulation.
        pred = jnp.dot(noisy.astype(w_ref.dtype), w_ref[...],
                       preferred_element_type=jnp.float32)

        # Target noise columns for this step, sliced from the resident block.
        col = pl.multiple_of(j * half, 128)
        tgt = noise_ref[:, pl.ds(col, half)]

        # Matching W1/W2 columns live in the same tile -> elementwise pairing
        # (d1^2 - d2^2) before reduction avoids cancellation of two big sums.
        d1 = pred[:, :half] - tgt
        d2 = pred[:, half:] - tgt
        psum = jnp.sum(d1 * d1 - d2 * d2)

        # Per-step partial -> its own lane-dense output block (no cross-step
        # accumulator), summed in the wrapper.
        part_ref[...] = jnp.broadcast_to(psum, part_ref.shape)

    full_bd = pl.BlockSpec((B, D), lambda j: (0, 0))

    def loss_fn(scales, ori, src, mask, noise, w_il):
        partial = pl.pallas_call(
            kernel,
            out_shape=jax.ShapeDtypeStruct((8, n_steps * 128), jnp.float32),
            grid=(n_steps,),
            in_specs=[
                pl.BlockSpec(memory_space=pltpu.MemorySpace.SMEM),  # scales
                full_bd,                                            # ori
                full_bd,                                            # src
                full_bd,                                            # mask
                full_bd,                                            # noise
                pl.BlockSpec((D, tn), lambda j: (0, j)),  # [W1_j | W2_j] tile
            ],
            out_specs=pl.BlockSpec((8, 128), lambda j: (0, j)),
            compiler_params=pltpu.CompilerParams(
                dimension_semantics=("parallel",)),
        )(scales, ori, src, mask, noise, w_il)
        # Lane 0 of each 128-lane block carries that step's partial sum.
        return jnp.sum(partial[0].reshape(n_steps, 128)[:, 0]) * inv_n

    return jax.jit(loss_fn)


def interleave_weights(w1, w2, n_steps, w_dtype=jnp.bfloat16):
    """Build [W1_0 | W2_0 | W1_1 | W2_1 | ...] so each grid step sees the
    matching W1/W2 column block in one tile."""
    D = w1.shape[1]
    assert D % n_steps == 0
    half = D // n_steps
    chunks = []
    for j in range(n_steps):
        chunks.append(w1[:, j * half:(j + 1) * half])
        chunks.append(w2[:, j * half:(j + 1) * half])
    return jnp.concatenate(chunks, axis=1).astype(w_dtype)


# ----------------------------------------------------------------------------
# Python-side equivalent of attack_noise_model
# ----------------------------------------------------------------------------
class AttackNoiseModel:
    def __init__(self, w1, w2, mask_flat, ori_flat, noise_flat,
                 n_steps=2, debug_every=100):
        B, D = ori_flat.shape
        # bf16 weights halve the dominant HBM stream; paired column layout.
        self.w_il = interleave_weights(w1, w2, n_steps)
        self.mask_flat = mask_flat      # global mask_tensor
        self.ori_flat = ori_flat        # self.ori_latents
        self.noise_flat = noise_flat    # fixed diffusion noise
        self.debug_every = debug_every
        self._loss_fn = make_loss_fn(B, D, n_steps=n_steps)

    def forward(self, src_flat, current_t=None):
        if current_t is None:
            t = random.randint(1, 999)
        else:
            t = current_t

        # simple linear alpha-bar schedule for the stand-in diffusion step
        abar = 1.0 - t / 1000.0
        scales = jnp.array([abar ** 0.5, (1.0 - abar) ** 0.5],
                           dtype=jnp.float32)

        loss = self._loss_fn(scales, self.ori_flat, src_flat, self.mask_flat,
                             self.noise_flat, self.w_il)

        global global_steps
        global_steps += 1
        if global_steps % self.debug_every == 0:
            # Diagnostics off the hot path: only materialize the blended
            # latents (and force device->host syncs) on print steps.
            latents = (self.ori_flat * self.mask_flat
                       + src_flat * (1.0 - self.mask_flat))
            print(
                t,
                float(jnp.linalg.norm(latents)),
                float(jnp.max(latents)),
                float(jnp.min(latents)),
                float(loss),
            )
        return loss


if __name__ == "__main__":
    B, C, H, W = 2, 4, 16, 16
    D = C * H * W  # 1024

    key = jax.random.PRNGKey(0)
    k_ori, k_src, k_mask, k_noise, k_w1, k_w2 = jax.random.split(key, 6)

    ori = jax.random.normal(k_ori, (B, C, H, W), dtype=jnp.float32)
    src = jax.random.normal(k_src, (B, C, H, W), dtype=jnp.float32)
    mask = jax.random.bernoulli(k_mask, 0.5, (B, C, H, W)).astype(jnp.float32)
    noise = jax.random.normal(k_noise, (B, C, H, W), dtype=jnp.float32)

    # deterministic synthetic "net" weights
    w1 = jax.random.normal(k_w1, (D, D), dtype=jnp.float32) / jnp.sqrt(D)
    w2 = jax.random.normal(k_w2, (D, D), dtype=jnp.float32) / jnp.sqrt(D)

    # flatten NCHW -> (B, D)
    ori_flat = ori.reshape(B, D)
    src_flat = src.reshape(B, D)
    mask_flat = mask.reshape(B, D)
    noise_flat = noise.reshape(B, D)

    model = AttackNoiseModel(w1, w2, mask_flat, ori_flat, noise_flat)
    loss = model.forward(src_flat, current_t=500)
    jax.block_until_ready(loss)

    assert jnp.isfinite(loss), "loss is not finite"
    print("KERNEL_OK")
</pallas_src>

<mosaic_0001>
module attributes {stable_mosaic.version = 11 : i64} {
  func.func @kernel(%arg0: i32, %arg1: memref<2xf32, #tpu.memory_space<smem>>, %arg2: memref<2x1024xf32, #tpu.memory_space<vmem>>, %arg3: memref<2x1024xf32, #tpu.memory_space<vmem>>, %arg4: memref<2x1024xf32, #tpu.memory_space<vmem>>, %arg5: memref<2x1024xf32, #tpu.memory_space<vmem>>, %arg6: memref<1024x1024xbf16, #tpu.memory_space<vmem>>, %arg7: memref<8x128xf32, #tpu.memory_space<vmem>>) attributes {dimension_semantics = [#tpu.dimension_semantics<parallel>], iteration_bounds = array<i64: 2>, scalar_prefetch = 0 : i64, scratch_operands = 0 : i64, tpu.core_type = #tpu.core_type<tc>, window_params = [{transform_indices = @transform_0, window_bounds = array<i64: 2>}, {pipeline_mode = #tpu.pipeline_mode<synchronous>, transform_indices = @transform_1, window_bounds = array<i64: 2, 1024>}, {pipeline_mode = #tpu.pipeline_mode<synchronous>, transform_indices = @transform_2, window_bounds = array<i64: 2, 1024>}, {pipeline_mode = #tpu.pipeline_mode<synchronous>, transform_indices = @transform_3, window_bounds = array<i64: 2, 1024>}, {pipeline_mode = #tpu.pipeline_mode<synchronous>, transform_indices = @transform_4, window_bounds = array<i64: 2, 1024>}, {transform_indices = @transform_5, window_bounds = array<i64: 1024, 1024>}, {transform_indices = @transform_6, window_bounds = array<i64: 8, 128>}]} {
    %c0 = arith.constant 0 : index
    %0 = memref.load %arg1[%c0] : memref<2xf32, #tpu.memory_space<smem>>
    %c1 = arith.constant 1 : index
    %1 = memref.load %arg1[%c1] : memref<2xf32, #tpu.memory_space<smem>>
    %c0_0 = arith.constant 0 : index
    %c0_1 = arith.constant 0 : index
    %2 = vector.load %arg4[%c0_0, %c0_1] : memref<2x1024xf32, #tpu.memory_space<vmem>>, vector<2x1024xf32>
    %c0_2 = arith.constant 0 : index
    %c0_3 = arith.constant 0 : index
    %3 = vector.load %arg2[%c0_2, %c0_3] : memref<2x1024xf32, #tpu.memory_space<vmem>>, vector<2x1024xf32>
    %4 = arith.mulf %3, %2 : vector<2x1024xf32>
    %c0_4 = arith.constant 0 : index
    %c0_5 = arith.constant 0 : index
    %5 = vector.load %arg3[%c0_4, %c0_5] : memref<2x1024xf32, #tpu.memory_space<vmem>>, vector<2x1024xf32>
    %cst = arith.constant 1.000000e+00 : f32
    %6 = vector.broadcast %cst : f32 to vector<2x1024xf32>
    %7 = arith.subf %6, %2 : vector<2x1024xf32>
    %8 = arith.mulf %5, %7 : vector<2x1024xf32>
    %9 = arith.addf %4, %8 : vector<2x1024xf32>
    %10 = vector.broadcast %0 : f32 to vector<2x1024xf32>
    %11 = arith.mulf %10, %9 : vector<2x1024xf32>
    %c0_6 = arith.constant 0 : index
    %c0_7 = arith.constant 0 : index
    %12 = vector.load %arg5[%c0_6, %c0_7] : memref<2x1024xf32, #tpu.memory_space<vmem>>, vector<2x1024xf32>
    %13 = vector.broadcast %1 : f32 to vector<2x1024xf32>
    %14 = arith.mulf %13, %12 : vector<2x1024xf32>
    %15 = arith.addf %11, %14 : vector<2x1024xf32>
    %16 = arith.truncf %15 : vector<2x1024xf32> to vector<2x1024xbf16>
    %c0_8 = arith.constant 0 : index
    %c0_9 = arith.constant 0 : index
    %17 = vector.load %arg6[%c0_8, %c0_9] : memref<1024x1024xbf16, #tpu.memory_space<vmem>>, vector<1024x1024xbf16>
    %cst_10 = arith.constant dense<0.000000e+00> : vector<2x1024xf32>
    %18 = tpu.matmul %16, %17, %cst_10 {dimension_numbers = #tpu.dot_dimension_numbers<[1], [0], [0], [1], [0, 0, 1, 1], [], []>} : vector<2x1024xbf16>, vector<1024x1024xbf16>, vector<2x1024xf32> -> vector<2x1024xf32>
    %c512_i32 = arith.constant 512 : i32
    %19 = arith.muli %arg0, %c512_i32 : i32
    %20 = tpu.assume_multiple %19, 128 : i32
    %c0_11 = arith.constant 0 : index
    %21 = arith.index_cast %20 : i32 to index
    %22 = vector.load %arg5[%c0_11, %21] : memref<2x1024xf32, #tpu.memory_space<vmem>>, vector<2x512xf32>
    %23 = vector.extract_strided_slice %18 {offsets = [0, 0], sizes = [2, 512], strides = [1, 1]} : vector<2x1024xf32> to vector<2x512xf32>
    %24 = arith.subf %23, %22 : vector<2x512xf32>
    %25 = vector.extract_strided_slice %18 {offsets = [0, 512], sizes = [2, 512], strides = [1, 1]} : vector<2x1024xf32> to vector<2x512xf32>
    %26 = arith.subf %25, %22 : vector<2x512xf32>
    %27 = arith.mulf %24, %24 : vector<2x512xf32>
    %28 = arith.mulf %26, %26 : vector<2x512xf32>
    %29 = arith.subf %27, %28 : vector<2x512xf32>
    %30 = vector.shape_cast %29 : vector<2x512xf32> to vector<1x2x512xf32>
    %cst_12 = arith.constant dense<0.000000e+00> : vector<1xf32>
    %31 = vector.multi_reduction <add>, %30, %cst_12 [1, 2] : vector<1x2x512xf32> to vector<1xf32>
    %32 = vector.shape_cast %31 : vector<1xf32> to vector<1x1x1xf32>
    %33 = vector.extract %32[0, 0, 0] : f32 from vector<1x1x1xf32>
    %34 = vector.broadcast %33 : f32 to vector<8x128xf32>
    %c0_13 = arith.constant 0 : index
    %c0_14 = arith.constant 0 : index
    %35 = vector.load %arg7[%c0_13, %c0_14] : memref<8x128xf32, #tpu.memory_space<vmem>>, vector<8x128xf32>
    tpu.vector_store %arg7[%c0_13, %c0_14], %34 {strides = array<i32>} : memref<8x128xf32, #tpu.memory_space<vmem>>, vector<8x128xf32>,
    return
  }
  func.func @transform_0(%arg0: i32) -> i32 {
    %c0_i32 = arith.constant 0 : i32
    %c0_i32_0 = arith.constant 0 : i32
    return %c0_i32 : i32
  }
  func.func @transform_1(%arg0: i32) -> (i32, i32) {
    %c0_i32 = arith.constant 0 : i32
    %c0_i32_0 = arith.constant 0 : i32
    %c0_i32_1 = arith.constant 0 : i32
    return %c0_i32, %c0_i32_0 : i32, i32
  }
  func.func @transform_2(%arg0: i32) -> (i32, i32) {
    %c0_i32 = arith.constant 0 : i32
    %c0_i32_0 = arith.constant 0 : i32
    %c0_i32_1 = arith.constant 0 : i32
    return %c0_i32, %c0_i32_0 : i32, i32
  }
  func.func @transform_3(%arg0: i32) -> (i32, i32) {
    %c0_i32 = arith.constant 0 : i32
    %c0_i32_0 = arith.constant 0 : i32
    %c0_i32_1 = arith.constant 0 : i32
    return %c0_i32, %c0_i32_0 : i32, i32
  }
  func.func @transform_4(%arg0: i32) -> (i32, i32) {
    %c0_i32 = arith.constant 0 : i32
    %c0_i32_0 = arith.constant 0 : i32
    %c0_i32_1 = arith.constant 0 : i32
    return %c0_i32, %c0_i32_0 : i32, i32
  }
  func.func @transform_5(%arg0: i32) -> (i32, i32) {
    %c0_i32 = arith.constant 0 : i32
    %c0_i32_0 = arith.constant 0 : i32
    return %c0_i32, %arg0 : i32, i32
  }
  func.func @transform_6(%arg0: i32) -> (i32, i32) {
    %c0_i32 = arith.constant 0 : i32
    %c0_i32_0 = arith.constant 0 : i32
    return %c0_i32, %arg0 : i32, i32
  }
}

</mosaic_0001>

<llo_original>
// kernel: loss_fn.1
$region0: #{loss_fn.1}
  #allocation0 [shape = 'u32[]', space=smem, size = 0x4, offset = 0x4, fixed_abs, tag = 'smem constant byte address 0x4 - core index']
  #allocation1 [shape = 'u32[144,128]{1,0:T(1,128)}', space=vmem, size = 0x12000, scoped, tag = 'internal scratch']
  %s0 = inlined_call_operand.hbm [shape: f32[2], index: 0, kind: input, shape index: {}]
  %s1 = inlined_call_operand.hbm [shape: f32[2,1024], index: 1, kind: input, shape index: {}]
  %s2 = inlined_call_operand.hbm [shape: f32[2,1024], index: 2, kind: input, shape index: {}]
  %s3 = inlined_call_operand.hbm [shape: f32[2,1024], index: 3, kind: input, shape index: {}]
  %s4 = inlined_call_operand.hbm [shape: f32[2,1024], index: 4, kind: input, shape index: {}]
  %s5 = inlined_call_operand.hbm [shape: bf16[1024,2048], index: 5, kind: input, shape index: {}]
  %s6 = inlined_call_operand.vmem [shape: f32[8,256], index: 6, kind: output, shape index: {}]
  %s7 = sld [smem:[#allocation0]]
  $region81: #{loss_fn.1} parent=0
    _
  %s9 = ssub.s32 1, %s7
  %s10 = scalar_select 0, %s9, %s7
  $region1: #{loss_fn.1} parent=0
    #allocation2 [shape = 'u8[512]{0}', space=smem, size = 0x200, scoped, tag = 'input window, operand 0, single buffered']
    #allocation3 [shape = 's32[2]{0}', space=sflag, size = 0x8, scoped, tag = 'scoped memory for loss_fn.1']
    #allocation4 [shape = 's32[2]{0}', space=sflag, size = 0x8, scoped, tag = 'scoped memory for loss_fn.1']
    #allocation5 [shape = 'u8[8192]{0}', space=vmem, size = 0x2000, scoped, tag = 'input window, operand 1, single buffered']
    #allocation6 [shape = 'u8[8192]{0}', space=vmem, size = 0x2000, scoped, tag = 'input window, operand 2, single buffered']
    #allocation7 [shape = 's32[1]{0}', space=sflag, size = 0x4, scoped, tag = 'scoped memory for loss_fn.1']
    #allocation8 [shape = 'u8[8192]{0}', space=vmem, size = 0x2000, scoped, tag = 'input window, operand 3, single buffered']
    #allocation9 [shape = 'u8[8192]{0}', space=vmem, size = 0x2000, scoped, tag = 'input window, operand 4, single buffered']
    #allocation10 [shape = 's32[1]{0}', space=sflag, size = 0x4, scoped, tag = 'scoped memory for loss_fn.1']
    #allocation11 [shape = 'u8[4194304]{0}', space=vmem, size = 0x400000, scoped, tag = 'input window, operand 5']
    %11 = vsyncpa [#allocation4], 0
    %12 = vsyncpa [#allocation3], 0
    %13 = vsyncpa [#allocation7], 0
    %14 = vsyncpa [#allocation10], 0
    loop: start=0, step=1, limit=4
    $region2: #{loss_fn.1} parent=1 // loop_pre_header
      _
    $region3: #{loss_fn.1} parent=1 // loop_header
      %s16 = sphi 0, %s20
      %p17 = scmp.ge.s32.totalorder %s16, 4
      %s24 = sphi 0, %s24
      %s26 = sphi 0, %s24
      %s27 = sphi 0, %s26
      %s41 = sphi 0, %s27
      %s45 = sphi 0, %s45
      %s47 = sphi 0, %s45
      %s48 = sphi 0, %s47
      %s62 = sphi 0, %s48
      %s66 = sphi 0, %s66
      %s68 = sphi 0, %s66
      %s69 = sphi 0, %s68
      %s83 = sphi 0, %s69
      %s87 = sphi 0, %s87
      %s89 = sphi 0, %s87
      %s90 = sphi 0, %s89
      %s104 = sphi 0, %s90
      %s108 = sphi 0, %s108
      %s110 = sphi 0, %s108
      %s111 = sphi 0, %s110
      %s125 = sphi 0, %s111
      %s131 = sphi 0, %s133
      %s134 = sphi 0, %s131
      %s135 = sphi 0, %s134
      %s151 = sphi 0, %s135
      %s157 = sphi 0, %s159
      %s160 = sphi 0, %s157
      %s161 = sphi 0, %s160
      %s177 = sphi 0, %s161
    $region4: #{loss_fn.1} parent=1 // loop_header_branch
      %19 = sbr.rel (%p17) target = $region8
    $region5: #{loss_fn.1} parent=1 // loop_body
      %s21 = ssub.s32 %s16, 1
      %s22 = ssub.s32 %s16, 2
      %s23 = sadd.s32 %s16, 1
      %s25 = sadd.s32 %s24, 1
      %p28 = scmp.eq.s32.totalorder %s16, 1
      %p29 = scmp.ne.s32.totalorder %s24, %s26
      %p30 = scmp.eq.s32.totalorder %s16, 0
      %p31 = por %p29, %p30
      %p32 = scmp.ne.s32.totalorder %s24, %s26
      %p33 = scmp.eq.s32.totalorder %s21, 1
      %p34 = por %p32, %p33
      %p35 = scmp.ne.s32.totalorder %s26, %s27
      %p36 = scmp.eq.s32.totalorder %s21, 0
      %p37 = por %p35, %p36
      %p38 = scmp.ne.s32.totalorder %s26, %s27
      %p39 = scmp.eq.s32.totalorder %s22, 1
      %p40 = por %p38, %p39
      %p42 = scmp.ne.s32.totalorder %s27, %s41
      %p43 = scmp.eq.s32.totalorder %s22, 0
      %p44 = por %p42, %p43
      %s46 = sadd.s32 %s45, 1
      %p49 = scmp.eq.s32.totalorder %s16, 1
      %p50 = scmp.ne.s32.totalorder %s45, %s47
      %p51 = scmp.eq.s32.totalorder %s16, 0
      %p52 = por %p50, %p51
      %p53 = scmp.ne.s32.totalorder %s45, %s47
      %p54 = scmp.eq.s32.totalorder %s21, 1
      %p55 = por %p53, %p54
      %p56 = scmp.ne.s32.totalorder %s47, %s48
      %p57 = scmp.eq.s32.totalorder %s21, 0
      %p58 = por %p56, %p57
      %p59 = scmp.ne.s32.totalorder %s47, %s48
      %p60 = scmp.eq.s32.totalorder %s22, 1
      %p61 = por %p59, %p60
      %p63 = scmp.ne.s32.totalorder %s48, %s62
      %p64 = scmp.eq.s32.totalorder %s22, 0
      %p65 = por %p63, %p64
      %s67 = sadd.s32 %s66, 1
      %p70 = scmp.eq.s32.totalorder %s16, 1
      %p71 = scmp.ne.s32.totalorder %s66, %s68
      %p72 = scmp.eq.s32.totalorder %s16, 0
      %p73 = por %p71, %p72
      %p74 = scmp.ne.s32.totalorder %s66, %s68
      %p75 = scmp.eq.s32.totalorder %s21, 1
      %p76 = por %p74, %p75
      %p77 = scmp.ne.s32.totalorder %s68, %s69
      %p78 = scmp.eq.s32.totalorder %s21, 0
      %p79 = por %p77, %p78
      %p80 = scmp.ne.s32.totalorder %s68, %s69
      %p81 = scmp.eq.s32.totalorder %s22, 1
      %p82 = por %p80, %p81
      %p84 = scmp.ne.s32.totalorder %s69, %s83
      %p85 = scmp.eq.s32.totalorder %s22, 0
      %p86 = por %p84, %p85
      %s88 = sadd.s32 %s87, 1
      %p91 = scmp.eq.s32.totalorder %s16, 1
      %p92 = scmp.ne.s32.totalorder %s87, %s89
      %p93 = scmp.eq.s32.totalorder %s16, 0
      %p94 = por %p92, %p93
      %p95 = scmp.ne.s32.totalorder %s87, %s89
      %p96 = scmp.eq.s32.totalorder %s21, 1
      %p97 = por %p95, %p96
      %p98 = scmp.ne.s32.totalorder %s89, %s90
      %p99 = scmp.eq.s32.totalorder %s21, 0
      %p100 = por %p98, %p99
      %p101 = scmp.ne.s32.totalorder %s89, %s90
      %p102 = scmp.eq.s32.totalorder %s22, 1
      %p103 = por %p101, %p102
      %p105 = scmp.ne.s32.totalorder %s90, %s104
      %p106 = scmp.eq.s32.totalorder %s22, 0
      %p107 = por %p105, %p106
      %s109 = sadd.s32 %s108, 1
      %p112 = scmp.eq.s32.totalorder %s16, 1
      %p113 = scmp.ne.s32.totalorder %s108, %s110
      %p114 = scmp.eq.s32.totalorder %s16, 0
      %p115 = por %p113, %p114
      %p116 = scmp.ne.s32.totalorder %s108, %s110
      %p117 = scmp.eq.s32.totalorder %s21, 1
      %p118 = por %p116, %p117
      %p119 = scmp.ne.s32.totalorder %s110, %s111
      %p120 = scmp.eq.s32.totalorder %s21, 0
      %p121 = por %p119, %p120
      %p122 = scmp.ne.s32.totalorder %s110, %s111
      %p123 = scmp.eq.s32.totalorder %s22, 1
      %p124 = por %p122, %p123
      %p126 = scmp.ne.s32.totalorder %s111, %s125
      %p127 = scmp.eq.s32.totalorder %s22, 0
      %p128 = por %p126, %p127
      %s129 = ssub.s32 %s16, %s23
      %p130 = scmp.eq.s32.totalorder %s129, 0
      %s132 = sadd.s32 %s131, 1
      %s133 = scalar_select %p130, %s131, %s132
      %p136 = pneg %p130
      %p137 = scmp.eq.s32.totalorder %s16, 1
      %p138 = por %p136, %p137
      %p139 = scmp.ne.s32.totalorder %s131, %s134
      %p140 = scmp.eq.s32.totalorder %s16, 0
      %p141 = por %p139, %p140
      %p142 = scmp.ne.s32.totalorder %s131, %s134
      %p143 = scmp.eq.s32.totalorder %s21, 1
      %p144 = por %p142, %p143
      %p145 = scmp.ne.s32.totalorder %s134, %s135
      %p146 = scmp.eq.s32.totalorder %s21, 0
      %p147 = por %p145, %p146
      %p148 = scmp.ne.s32.totalorder %s134, %s135
      %p149 = scmp.eq.s32.totalorder %s22, 1
      %p150 = por %p148, %p149
      %p152 = scmp.ne.s32.totalorder %s135, %s151
      %p153 = scmp.eq.s32.totalorder %s22, 0
      %p154 = por %p152, %p153
      %s155 = ssub.s32 %s16, %s23
      %p156 = scmp.eq.s32.totalorder %s155, 0
      %s158 = sadd.s32 %s157, 1
      %s159 = scalar_select %p156, %s157, %s158
      %p162 = pneg %p156
      %p163 = scmp.eq.s32.totalorder %s16, 1
      %p164 = por %p162, %p163
      %p165 = scmp.ne.s32.totalorder %s157, %s160
      %p166 = scmp.eq.s32.totalorder %s16, 0
      %p167 = por %p165, %p166
      %p168 = scmp.ne.s32.totalorder %s157, %s160
      %p169 = scmp.eq.s32.totalorder %s21, 1
      %p170 = por %p168, %p169
      %p171 = scmp.ne.s32.totalorder %s160, %s161
      %p172 = scmp.eq.s32.totalorder %s21, 0
      %p173 = por %p171, %p172
      %p174 = scmp.ne.s32.totalorder %s160, %s161
      %p175 = scmp.eq.s32.totalorder %s22, 1
      %p176 = por %p174, %p175
      %p178 = scmp.ne.s32.totalorder %s161, %s177
      %p179 = scmp.eq.s32.totalorder %s22, 0
      %p180 = por %p178, %p179
      %p181 = scmp.le.s32.totalorder 1, %s16
      %p182 = scmp.lt.s32.totalorder %s16, 3
      %p183 = pnand %p181, %p182
      %p184 = pneg %p183
      // Predicated region
      $region9: #{loss_fn.1} parent=5 // pred_check
        _
      $region10: #{loss_fn.1} parent=5 // pred_check_branch
        %186 = sbr.rel (%p183) target = $region12
      $region11: #{loss_fn.1} parent=5 // pred_region
        %s187 = ssub.s32 %s16, 1
        // Predicated region
        $region13: #{loss_fn.1} parent=11 // pred_check
          %p188 = pneg %p37
        $region14: #{loss_fn.1} parent=11 // pred_check_branch
          %190 = sbr.rel (%p188) target = $region16
        $region15: #{loss_fn.1} parent=11 // pred_region
          %s192 = ssub.s32 16, 16
          %193 = vsyncadd [#allocation4], %s192
          %196 = dma.hbm_to_smem %s0, 16, [#allocation2], [#allocation4]
        $region16: #{loss_fn.1} parent=11 // pred_fallthru
          _
        // Predicated region
        $region17: #{loss_fn.1} parent=11 // pred_check
          %p197 = pneg %p58
        $region18: #{loss_fn.1} parent=11 // pred_check_branch
          %199 = sbr.rel (%p197) target = $region20
        $region19: #{loss_fn.1} parent=11 // pred_region
          %s201 = ssub.s32 256, 256
          %202 = vsyncadd [#allocation3], %s201
          %s204 = sshll.u32 [#allocation5], 4
          %s205 = int_to_ptr.vmem [resolvable:$true] %s204
          %207 = dma.hbm_to_vmem [thread:$0]  %s1, 256, %s205, [#allocation3]
        $region20: #{loss_fn.1} parent=11 // pred_fallthru
          _
        // Predicated region
        $region21: #{loss_fn.1} parent=11 // pred_check
          %p208 = pneg %p79
        $region22: #{loss_fn.1} parent=11 // pred_check_branch
          %210 = sbr.rel (%p208) target = $region24
        $region23: #{loss_fn.1} parent=11 // pred_region
          %s212 = ssub.s32 256, 256
          %213 = vsyncadd [#allocation7], %s212
          %s215 = sshll.u32 [#allocation6], 4
          %s216 = int_to_ptr.vmem [resolvable:$true] %s215
          %218 = dma.hbm_to_vmem [thread:$0]  %s2, 256, %s216, [#allocation7]
        $region24: #{loss_fn.1} parent=11 // pred_fallthru
          _
        // Predicated region
        $region25: #{loss_fn.1} parent=11 // pred_check
          %p219 = pneg %p100
        $region26: #{loss_fn.1} parent=11 // pred_check_branch
          %221 = sbr.rel (%p219) target = $region28
        $region27: #{loss_fn.1} parent=11 // pred_region
          %s223 = ssub.s32 256, 256
          %224 = vsyncadd [#allocation7], %s223
          %s226 = sshll.u32 [#allocation8], 4
          %s227 = int_to_ptr.vmem [resolvable:$true] %s226
          %229 = dma.hbm_to_vmem [thread:$0]  %s3, 256, %s227, [#allocation7]
        $region28: #{loss_fn.1} parent=11 // pred_fallthru
          _
        // Predicated region
        $region29: #{loss_fn.1} parent=11 // pred_check
          %p230 = pneg %p121
        $region30: #{loss_fn.1} parent=11 // pred_check_branch
          %232 = sbr.rel (%p230) target = $region32
        $region31: #{loss_fn.1} parent=11 // pred_region
          %s234 = ssub.s32 256, 256
          %235 = vsyncadd [#allocation10], %s234
          %s237 = sshll.u32 [#allocation9], 4
          %s238 = int_to_ptr.vmem [resolvable:$true] %s237
          %240 = dma.hbm_to_vmem [thread:$0]  %s4, 256, %s238, [#allocation10]
        $region32: #{loss_fn.1} parent=11 // pred_fallthru
          _
      $region12: #{loss_fn.1} parent=5 // pred_fallthru
        _
      %p241 = scmp.lt.s32.totalorder %s16, 2
      // Predicated region
      $region33: #{loss_fn.1} parent=5 // pred_check
        %p242 = pneg %p241
      $region34: #{loss_fn.1} parent=5 // pred_check_branch
        %244 = sbr.rel (%p242) target = $region36
      $region35: #{loss_fn.1} parent=5 // pred_region
        // Predicated region
        $region37: #{loss_fn.1} parent=35 // pred_check
          %p245 = pneg %p141
        $region38: #{loss_fn.1} parent=35 // pred_check_branch
          %247 = sbr.rel (%p245) target = $region40
        $region39: #{loss_fn.1} parent=35 // pred_region
          %s248 = sand.u32 %s16, 1
          %s249 = scalar_lea.sflag [#allocation3], %s248
          %s250 = sand.u32 %s131, 1
          %s251 = smul.addr %s250, 4096
          %s252 = scalar_lea.vmem [#allocation11], %s251
          %s253 = smul.u32 8, %s16
          %s255 = ssub.s32 65536, 65536
          %256 = vsyncadd %s249, %s255
          %s257 = smul.addr %s253, 64
          %s258 = scalar_lea.hbm %s5, %s257
          %s259 = sshll.u32 %s252, 4
          %s260 = int_to_ptr.vmem [resolvable:$true] %s259
          %265 = dma.hbm_to_vmem [thread:$0]  %s258, 65536, %s260, %s249, 1024, 512, 32
        $region40: #{loss_fn.1} parent=35 // pred_fallthru
          _
      $region36: #{loss_fn.1} parent=5 // pred_fallthru
        _
      %p266 = scmp.le.s32.totalorder 1, %s16
      %p267 = scmp.lt.s32.totalorder %s16, 3
      %p268 = pnand %p266, %p267
      %p269 = pneg %p268
      // Predicated region
      $region41: #{loss_fn.1} parent=5 // pred_check
        _
      $region42: #{loss_fn.1} parent=5 // pred_check_branch
        %271 = sbr.rel (%p268) target = $region44
      $region43: #{loss_fn.1} parent=5 // pred_region
        %s272 = ssub.s32 %s16, 1
        // Predicated region
        $region45: #{loss_fn.1} parent=43 // pred_check
          %p273 = pneg %p37
        $region46: #{loss_fn.1} parent=43 // pred_check_branch
          %275 = sbr.rel (%p273) target = $region48
        $region47: #{loss_fn.1} parent=43 // pred_region
          %276 = dma.done [#allocation4], 16
        $region48: #{loss_fn.1} parent=43 // pred_fallthru
          _
        // Predicated region
        $region49: #{loss_fn.1} parent=43 // pred_check
          %p277 = pneg %p58
        $region50: #{loss_fn.1} parent=43 // pred_check_branch
          %279 = sbr.rel (%p277) target = $region52
        $region51: #{loss_fn.1} parent=43 // pred_region
          %280 = dma.done [#allocation3], 256
        $region52: #{loss_fn.1} parent=43 // pred_fallthru
          _
        // Predicated region
        $region53: #{loss_fn.1} parent=43 // pred_check
          %p281 = pneg %p79
        $region54: #{loss_fn.1} parent=43 // pred_check_branch
          %283 = sbr.rel (%p281) target = $region56
        $region55: #{loss_fn.1} parent=43 // pred_region
          %284 = dma.done [#allocation7], 256
        $region56: #{loss_fn.1} parent=43 // pred_fallthru
          _
        // Predicated region
        $region57: #{loss_fn.1} parent=43 // pred_check
          %p285 = pneg %p100
        $region58: #{loss_fn.1} parent=43 // pred_check_branch
          %287 = sbr.rel (%p285) target = $region60
        $region59: #{loss_fn.1} parent=43 // pred_region
          %288 = dma.done [#allocation7], 256
        $region60: #{loss_fn.1} parent=43 // pred_fallthru
          _
        // Predicated region
        $region61: #{loss_fn.1} parent=43 // pred_check
          %p289 = pneg %p121
        $region62: #{loss_fn.1} parent=43 // pred_check_branch
          %291 = sbr.rel (%p289) target = $region64
        $region63: #{loss_fn.1} parent=43 // pred_region
          %292 = dma.done [#allocation10], 256
        $region64: #{loss_fn.1} parent=43 // pred_fallthru
          _
        %s293 = sand.u32 %s21, 1
        %s294 = scalar_lea.sflag [#allocation3], %s293
        %s295 = sand.u32 %s134, 1
        %s296 = smul.addr %s295, 4096
        %s297 = scalar_lea.vmem [#allocation11], %s296
        // Predicated region
        $region65: #{loss_fn.1} parent=43 // pred_check
          %p298 = pneg %p147
        $region66: #{loss_fn.1} parent=43 // pred_check_branch
          %300 = sbr.rel (%p298) target = $region68
        $region67: #{loss_fn.1} parent=43 // pred_region
          %301 = dma.done %s294, 65536
        $region68: #{loss_fn.1} parent=43 // pred_fallthru
          _
        %302 = sfence
        %p303 = pneg %p37
        %p304 = pneg %p34
        %p305 = pneg %p58
        %p306 = pneg %p55
        %p307 = pneg %p79
        %p308 = pneg %p76
        %p309 = pneg %p100
        %p310 = pneg %p97
        %p311 = pneg %p121
        %p312 = pneg %p118
        %s313 = sand.u32 %s21, 1
        %s314 = scalar_lea.sflag [#allocation3], %s313
        %s315 = sand.u32 %s134, 1
        %s316 = smul.addr %s315, 4096
        %s317 = scalar_lea.vmem [#allocation11], %s316
        %p318 = pneg %p147
        %p319 = pneg %p144
        %p320 = pneg %p173
        %p321 = pneg %p170
        %p322 = scmp.lt.s32.totalorder %s21, 1
        %s323 = scalar_select %p322, %s21, 1
        %s324 = smul.addr %s323, 8
        %s325 = scalar_lea.vmem %s6, %s324
        %s326 = smul.u32 8, %s21
        %p327 = scmp.lt.s32.totalorder %s21, 1
        %s328 = scalar_select %p327, %s21, 1
        %s329 = smul.addr %s328, 8
        %s330 = scalar_lea.vmem %s6, %s329
        %s331 = sld [smem:[#allocation2]]
        %s332 = sld [smem:[#allocation2 + $0x1]]
        %v333 = vld [vmem:[#allocation8] sm:$0xff]
        %v334 = vld [vmem:[#allocation8 + $0x8] sm:$0xff]
        %v335 = vld [vmem:[#allocation5] sm:$0xff]
        %v336 = vld [vmem:[#allocation5 + $0x8] sm:$0xff]
        %v337 = vmul.f32 %v335, %v333
        %v338 = vmul.f32 %v336, %v334
        %v339 = vld [vmem:[#allocation6] sm:$0xff]
        %v340 = vld [vmem:[#allocation6 + $0x8] sm:$0xff]
        %v341 = vsub.f32 1.0, %v333
        %v342 = vsub.f32 1.0, %v334
        %v343 = vmul.f32 %v339, %v341
        %v344 = vmul.f32 %v340, %v342
        %v345 = vadd.f32 %v337, %v343
        %v346 = vadd.f32 %v338, %v344
        %v347 = vstv %s331
        %v348 = vmul.f32 %v347, %v345
        %v349 = vmul.f32 %v347, %v346
        %v350 = vld [vmem:[#allocation9] sm:$0xff]
        %v351 = vld [vmem:[#allocation9 + $0x8] sm:$0xff]
        %v352 = vstv %s332
        %v353 = vmul.f32 %v352, %v350
        %v354 = vmul.f32 %v352, %v351
        %v355 = vadd.f32 %v348, %v353
        %v356 = vadd.f32 %v349, %v354
        %v359 = vcombine.high %v355, %v355
        %v361 = vunpack.c.l.s4 1983009808
        %v362 = vunpack.c.0.s8 %v361
        %v363 = vlaneseq
        %v364 = vshrl.u32 %v363, 7
        %v365 = vsub.s32 %v362, %v364
        %v366 = vrot.slane %v355, %v365
        %v368 = vunpack.c.l.s4 1983009808
        %v369 = vunpack.c.0.s8 %v368
        %v370 = vlaneseq
        %v371 = vshrl.u32 %v370, 7
        %v372 = vsub.s32 %v369, %v371
        %v373 = vrot.slane %v359, %v372
        %v374 = vcombine.high %v366, %v366
        %v375 = vcombine.high %v373, %v373
        %v376 = vcombine.high %v356, %v356
        %v378 = vunpack.c.l.s4 1983009808
        %v379 = vunpack.c.0.s8 %v378
        %v380 = vlaneseq
        %v381 = vshrl.u32 %v380, 7
        %v382 = vsub.s32 %v379, %v381
        %v383 = vrot.slane %v356, %v382
        %v385 = vunpack.c.l.s4 1983009808
        %v386 = vunpack.c.0.s8 %v385
        %v387 = vlaneseq
        %v388 = vshrl.u32 %v387, 7
        %v389 = vsub.s32 %v386, %v388
        %v390 = vrot.slane %v376, %v389
        %v391 = vcombine.high %v383, %v383
        %v392 = vcombine.high %v390, %v390
        %v401 = vpack.c.bf16 %v366, %v366
        %v402 = vpack.c.bf16 %v374, %v374
        %v403 = vpack.c.bf16 %v373, %v373
        %v404 = vpack.c.bf16 %v375, %v375
        %v405 = vpack.c.bf16 %v383, %v383
        %v406 = vpack.c.bf16 %v391, %v391
        %v407 = vpack.c.bf16 %v390, %v390
        %v408 = vpack.c.bf16 %v392, %v392
        %v409 = vld [vmem:[%s297] sm:$0xff]
        %v410 = vld [vmem:[%s297 + $0x8] sm:$0xff]
        %v411 = vld [vmem:[%s297 + $0x10] sm:$0xff]
        %v412 = vld [vmem:[%s297 + $0x18] sm:$0xff]
        %v413 = vld [vmem:[%s297 + $0x20] sm:$0xff]
        %v414 = vld [vmem:[%s297 + $0x28] sm:$0xff]
        %v415 = vld [vmem:[%s297 + $0x30] sm:$0xff]
        %v416 = vld [vmem:[%s297 + $0x38] sm:$0xff]
        %v417 = vld [vmem:[%s297 + $0x40] sm:$0xff]
        %v418 = vld [vmem:[%s297 + $0x48] sm:$0xff]
        %v419 = vld [vmem:[%s297 + $0x50] sm:$0xff]
        %v420 = vld [vmem:[%s297 + $0x58] sm:$0xff]
        %v421 = vld [vmem:[%s297 + $0x60] sm:$0xff]
        %v422 = vld [vmem:[%s297 + $0x68] sm:$0xff]
        %v423 = vld [vmem:[%s297 + $0x70] sm:$0xff]
        %v424 = vld [vmem:[%s297 + $0x78] sm:$0xff]
        %v425 = vld [vmem:[%s297 + $0x80] sm:$0xff]
        %v426 = vld [vmem:[%s297 + $0x88] sm:$0xff]
        %v427 = vld [vmem:[%s297 + $0x90] sm:$0xff]
        %v428 = vld [vmem:[%s297 + $0x98] sm:$0xff]
        %v429 = vld [vmem:[%s297 + $0xa0] sm:$0xff]
        %v430 = vld [vmem:[%s297 + $0xa8] sm:$0xff]
        %v431 = vld [vmem:[%s297 + $0xb0] sm:$0xff]
        %v432 = vld [vmem:[%s297 + $0xb8] sm:$0xff]
        %v433 = vld [vmem:[%s297 + $0xc0] sm:$0xff]
        %v434 = vld [vmem:[%s297 + $0xc8] sm:$0xff]
        %v435 = vld [vmem:[%s297 + $0xd0] sm:$0xff]
        %v436 = vld [vmem:[%s297 + $0xd8] sm:$0xff]
        %v437 = vld [vmem:[%s297 + $0xe0] sm:$0xff]
        %v438 = vld [vmem:[%s297 + $0xe8] sm:$0xff]
        %v439 = vld [vmem:[%s297 + $0xf0] sm:$0xff]
        %v440 = vld [vmem:[%s297 + $0xf8] sm:$0xff]
        %v441 = vld [vmem:[%s297 + $0x100] sm:$0xff]
        %v442 = vld [vmem:[%s297 + $0x108] sm:$0xff]
        %v443 = vld [vmem:[%s297 + $0x110] sm:$0xff]
        %v444 = vld [vmem:[%s297 + $0x118] sm:$0xff]
        %v445 = vld [vmem:[%s297 + $0x120] sm:$0xff]
        %v446 = vld [vmem:[%s297 + $0x128] sm:$0xff]
        %v447 = vld [vmem:[%s297 + $0x130] sm:$0xff]
        %v448 = vld [vmem:[%s297 + $0x138] sm:$0xff]
        %v449 = vld [vmem:[%s297 + $0x140] sm:$0xff]
        %v450 = vld [vmem:[%s297 + $0x148] sm:$0xff]
        %v451 = vld [vmem:[%s297 + $0x150] sm:$0xff]
        %v452 = vld [vmem:[%s297 + $0x158] sm:$0xff]
        %v453 = vld [vmem:[%s297 + $0x160] sm:$0xff]
        %v454 = vld [vmem:[%s297 + $0x168] sm:$0xff]
        %v455 = vld [vmem:[%s297 + $0x170] sm:$0xff]
        %v456 = vld [vmem:[%s297 + $0x178] sm:$0xff]
        %v457 = vld [vmem:[%s297 + $0x180] sm:$0xff]
        %v458 = vld [vmem:[%s297 + $0x188] sm:$0xff]
        %v459 = vld [vmem:[%s297 + $0x190] sm:$0xff]
        %v460 = vld [vmem:[%s297 + $0x198] sm:$0xff]
        %v461 = vld [vmem:[%s297 + $0x1a0] sm:$0xff]
        %v462 = vld [vmem:[%s297 + $0x1a8] sm:$0xff]
        %v463 = vld [vmem:[%s297 + $0x1b0] sm:$0xff]
        %v464 = vld [vmem:[%s297 + $0x1b8] sm:$0xff]
        %v465 = vld [vmem:[%s297 + $0x1c0] sm:$0xff]
        %v466 = vld [vmem:[%s297 + $0x1c8] sm:$0xff]
        %v467 = vld [vmem:[%s297 + $0x1d0] sm:$0xff]
        %v468 = vld [vmem:[%s297 + $0x1d8] sm:$0xff]
        %v469 = vld [vmem:[%s297 + $0x1e0] sm:$0xff]
        %v470 = vld [vmem:[%s297 + $0x1e8] sm:$0xff]
        %v471 = vld [vmem:[%s297 + $0x1f0] sm:$0xff]
        %v472 = vld [vmem:[%s297 + $0x1f8] sm:$0xff]
        %v473 = vld [vmem:[%s297 + $0x200] sm:$0xff]
        %v474 = vld [vmem:[%s297 + $0x208] sm:$0xff]
        %v475 = vld [vmem:[%s297 + $0x210] sm:$0xff]
        %v476 = vld [vmem:[%s297 + $0x218] sm:$0xff]
        %v477 = vld [vmem:[%s297 + $0x220] sm:$0xff]
        %v478 = vld [vmem:[%s297 + $0x228] sm:$0xff]
        %v479 = vld [vmem:[%s297 + $0x230] sm:$0xff]
        %v480 = vld [vmem:[%s297 + $0x238] sm:$0xff]
        %v481 = vld [vmem:[%s297 + $0x240] sm:$0xff]
        %v482 = vld [vmem:[%s297 + $0x248] sm:$0xff]
        %v483 = vld [vmem:[%s297 + $0x250] sm:$0xff]
        %v484 = vld [vmem:[%s297 + $0x258] sm:$0xff]
        %v485 = vld [vmem:[%s297 + $0x260] sm:$0xff]
        %v486 = vld [vmem:[%s297 + $0x268] sm:$0xff]
        %v487 = vld [vmem:[%s297 + $0x270] sm:$0xff]
        %v488 = vld [vmem:[%s297 + $0x278] sm:$0xff]
        %v489 = vld [vmem:[%s297 + $0x280] sm:$0xff]
        %v490 = vld [vmem:[%s297 + $0x288] sm:$0xff]
        %v491 = vld [vmem:[%s297 + $0x290] sm:$0xff]
        %v492 = vld [vmem:[%s297 + $0x298] sm:$0xff]
        %v493 = vld [vmem:[%s297 + $0x2a0] sm:$0xff]
        %v494 = vld [vmem:[%s297 + $0x2a8] sm:$0xff]
        %v495 = vld [vmem:[%s297 + $0x2b0] sm:$0xff]
        %v496 = vld [vmem:[%s297 + $0x2b8] sm:$0xff]
        %v497 = vld [vmem:[%s297 + $0x2c0] sm:$0xff]
        %v498 = vld [vmem:[%s297 + $0x2c8] sm:$0xff]
        %v499 = vld [vmem:[%s297 + $0x2d0] sm:$0xff]
        %v500 = vld [vmem:[%s297 + $0x2d8] sm:$0xff]
        %v501 = vld [vmem:[%s297 + $0x2e0] sm:$0xff]
        %v502 = vld [vmem:[%s297 + $0x2e8] sm:$0xff]
        %v503 = vld [vmem:[%s297 + $0x2f0] sm:$0xff]
        %v504 = vld [vmem:[%s297 + $0x2f8] sm:$0xff]
        %v505 = vld [vmem:[%s297 + $0x300] sm:$0xff]
        %v506 = vld [vmem:[%s297 + $0x308] sm:$0xff]
        %v507 = vld [vmem:[%s297 + $0x310] sm:$0xff]
        %v508 = vld [vmem:[%s297 + $0x318] sm:$0xff]
        %v509 = vld [vmem:[%s297 + $0x320] sm:$0xff]
        %v510 = vld [vmem:[%s297 + $0x328] sm:$0xff]
        %v511 = vld [vmem:[%s297 + $0x330] sm:$0xff]
        %v512 = vld [vmem:[%s297 + $0x338] sm:$0xff]
        %v513 = vld [vmem:[%s297 + $0x340] sm:$0xff]
        %v514 = vld [vmem:[%s297 + $0x348] sm:$0xff]
        %v515 = vld [vmem:[%s297 + $0x350] sm:$0xff]
        %v516 = vld [vmem:[%s297 + $0x358] sm:$0xff]
        %v517 = vld [vmem:[%s297 + $0x360] sm:$0xff]
        %v518 = vld [vmem:[%s297 + $0x368] sm:$0xff]
        %v519 = vld [vmem:[%s297 + $0x370] sm:$0xff]
        %v520 = vld [vmem:[%s297 + $0x378] sm:$0xff]
        %v521 = vld [vmem:[%s297 + $0x380] sm:$0xff]
        %v522 = vld [vmem:[%s297 + $0x388] sm:$0xff]
        %v523 = vld [vmem:[%s297 + $0x390] sm:$0xff]
        %v524 = vld [vmem:[%s297 + $0x398] sm:$0xff]
        %v525 = vld [vmem:[%s297 + $0x3a0] sm:$0xff]
        %v526 = vld [vmem:[%s297 + $0x3a8] sm:$0xff]
        %v527 = vld [vmem:[%s297 + $0x3b0] sm:$0xff]
        %v528 = vld [vmem:[%s297 + $0x3b8] sm:$0xff]
        %v529 = vld [vmem:[%s297 + $0x3c0] sm:$0xff]
        %v530 = vld [vmem:[%s297 + $0x3c8] sm:$0xff]
        %v531 = vld [vmem:[%s297 + $0x3d0] sm:$0xff]
        %v532 = vld [vmem:[%s297 + $0x3d8] sm:$0xff]
        %v533 = vld [vmem:[%s297 + $0x3e0] sm:$0xff]
        %v534 = vld [vmem:[%s297 + $0x3e8] sm:$0xff]
        %v535 = vld [vmem:[%s297 + $0x3f0] sm:$0xff]
        %v536 = vld [vmem:[%s297 + $0x3f8] sm:$0xff]
        %v537 = vld [vmem:[%s297 + $0x400] sm:$0xff]
        %v538 = vld [vmem:[%s297 + $0x408] sm:$0xff]
        %v539 = vld [vmem:[%s297 + $0x410] sm:$0xff]
        %v540 = vld [vmem:[%s297 + $0x418] sm:$0xff]
        %v541 = vld [vmem:[%s297 + $0x420] sm:$0xff]
        %v542 = vld [vmem:[%s297 + $0x428] sm:$0xff]
        %v543 = vld [vmem:[%s297 + $0x430] sm:$0xff]
        %v544 = vld [vmem:[%s297 + $0x438] sm:$0xff]
        %v545 = vld [vmem:[%s297 + $0x440] sm:$0xff]
        %v546 = vld [vmem:[%s297 + $0x448] sm:$0xff]
        %v547 = vld [vmem:[%s297 + $0x450] sm:$0xff]
        %v548 = vld [vmem:[%s297 + $0x458] sm:$0xff]
        %v549 = vld [vmem:[%s297 + $0x460] sm:$0xff]
        %v550 = vld [vmem:[%s297 + $0x468] sm:$0xff]
        %v551 = vld [vmem:[%s297 + $0x470] sm:$0xff]
        %v552 = vld [vmem:[%s297 + $0x478] sm:$0xff]
        %v553 = vld [vmem:[%s297 + $0x480] sm:$0xff]
        %v554 = vld [vmem:[%s297 + $0x488] sm:$0xff]
        %v555 = vld [vmem:[%s297 + $0x490] sm:$0xff]
        %v556 = vld [vmem:[%s297 + $0x498] sm:$0xff]
        %v557 = vld [vmem:[%s297 + $0x4a0] sm:$0xff]
        %v558 = vld [vmem:[%s297 + $0x4a8] sm:$0xff]
        %v559 = vld [vmem:[%s297 + $0x4b0] sm:$0xff]
        %v560 = vld [vmem:[%s297 + $0x4b8] sm:$0xff]
        %v561 = vld [vmem:[%s297 + $0x4c0] sm:$0xff]
        %v562 = vld [vmem:[%s297 + $0x4c8] sm:$0xff]
        %v563 = vld [vmem:[%s297 + $0x4d0] sm:$0xff]
        %v564 = vld [vmem:[%s297 + $0x4d8] sm:$0xff]
        %v565 = vld [vmem:[%s297 + $0x4e0] sm:$0xff]
        %v566 = vld [vmem:[%s297 + $0x4e8] sm:$0xff]
        %v567 = vld [vmem:[%s297 + $0x4f0] sm:$0xff]
        %v568 = vld [vmem:[%s297 + $0x4f8] sm:$0xff]
        %v569 = vld [vmem:[%s297 + $0x500] sm:$0xff]
        %v570 = vld [vmem:[%s297 + $0x508] sm:$0xff]
        %v571 = vld [vmem:[%s297 + $0x510] sm:$0xff]
        %v572 = vld [vmem:[%s297 + $0x518] sm:$0xff]
        %v573 = vld [vmem:[%s297 + $0x520] sm:$0xff]
        %v574 = vld [vmem:[%s297 + $0x528] sm:$0xff]
        %v575 = vld [vmem:[%s297 + $0x530] sm:$0xff]
        %v576 = vld [vmem:[%s297 + $0x538] sm:$0xff]
        %v577 = vld [vmem:[%s297 + $0x540] sm:$0xff]
        %v578 = vld [vmem:[%s297 + $0x548] sm:$0xff]
        %v579 = vld [vmem:[%s297 + $0x550] sm:$0xff]
        %v580 = vld [vmem:[%s297 + $0x558] sm:$0xff]
        %v581 = vld [vmem:[%s297 + $0x560] sm:$0xff]
        %v582 = vld [vmem:[%s297 + $0x568] sm:$0xff]
        %v583 = vld [vmem:[%s297 + $0x570] sm:$0xff]
        %v584 = vld [vmem:[%s297 + $0x578] sm:$0xff]
        %v585 = vld [vmem:[%s297 + $0x580] sm:$0xff]
        %v586 = vld [vmem:[%s297 + $0x588] sm:$0xff]
        %v587 = vld [vmem:[%s297 + $0x590] sm:$0xff]
        %v588 = vld [vmem:[%s297 + $0x598] sm:$0xff]
        %v589 = vld [vmem:[%s297 + $0x5a0] sm:$0xff]
        %v590 = vld [vmem:[%s297 + $0x5a8] sm:$0xff]
        %v591 = vld [vmem:[%s297 + $0x5b0] sm:$0xff]
        %v592 = vld [vmem:[%s297 + $0x5b8] sm:$0xff]
        %v593 = vld [vmem:[%s297 + $0x5c0] sm:$0xff]
        %v594 = vld [vmem:[%s297 + $0x5c8] sm:$0xff]
        %v595 = vld [vmem:[%s297 + $0x5d0] sm:$0xff]
        %v596 = vld [vmem:[%s297 + $0x5d8] sm:$0xff]
        %v597 = vld [vmem:[%s297 + $0x5e0] sm:$0xff]
        %v598 = vld [vmem:[%s297 + $0x5e8] sm:$0xff]
        %v599 = vld [vmem:[%s297 + $0x5f0] sm:$0xff]
        %v600 = vld [vmem:[%s297 + $0x5f8] sm:$0xff]
        %v601 = vld [vmem:[%s297 + $0x600] sm:$0xff]
        %v602 = vld [vmem:[%s297 + $0x608] sm:$0xff]
        %v603 = vld [vmem:[%s297 + $0x610] sm:$0xff]
        %v604 = vld [vmem:[%s297 + $0x618] sm:$0xff]
        %v605 = vld [vmem:[%s297 + $0x620] sm:$0xff]
        %v606 = vld [vmem:[%s297 + $0x628] sm:$0xff]
        %v607 = vld [vmem:[%s297 + $0x630] sm:$0xff]
        %v608 = vld [vmem:[%s297 + $0x638] sm:$0xff]
        %v609 = vld [vmem:[%s297 + $0x640] sm:$0xff]
        %v610 = vld [vmem:[%s297 + $0x648] sm:$0xff]
        %v611 = vld [vmem:[%s297 + $0x650] sm:$0xff]
        %v612 = vld [vmem:[%s297 + $0x658] sm:$0xff]
        %v613 = vld [vmem:[%s297 + $0x660] sm:$0xff]
        %v614 = vld [vmem:[%s297 + $0x668] sm:$0xff]
        %v615 = vld [vmem:[%s297 + $0x670] sm:$0xff]
        %v616 = vld [vmem:[%s297 + $0x678] sm:$0xff]
        %v617 = vld [vmem:[%s297 + $0x680] sm:$0xff]
        %v618 = vld [vmem:[%s297 + $0x688] sm:$0xff]
        %v619 = vld [vmem:[%s297 + $0x690] sm:$0xff]
        %v620 = vld [vmem:[%s297 + $0x698] sm:$0xff]
        %v621 = vld [vmem:[%s297 + $0x6a0] sm:$0xff]
        %v622 = vld [vmem:[%s297 + $0x6a8] sm:$0xff]
        %v623 = vld [vmem:[%s297 + $0x6b0] sm:$0xff]
        %v624 = vld [vmem:[%s297 + $0x6b8] sm:$0xff]
        %v625 = vld [vmem:[%s297 + $0x6c0] sm:$0xff]
        %v626 = vld [vmem:[%s297 + $0x6c8] sm:$0xff]
        %v627 = vld [vmem:[%s297 + $0x6d0] sm:$0xff]
        %v628 = vld [vmem:[%s297 + $0x6d8] sm:$0xff]
        %v629 = vld [vmem:[%s297 + $0x6e0] sm:$0xff]
        %v630 = vld [vmem:[%s297 + $0x6e8] sm:$0xff]
        %v631 = vld [vmem:[%s297 + $0x6f0] sm:$0xff]
        %v632 = vld [vmem:[%s297 + $0x6f8] sm:$0xff]
        %v633 = vld [vmem:[%s297 + $0x700] sm:$0xff]
        %v634 = vld [vmem:[%s297 + $0x708] sm:$0xff]
        %v635 = vld [vmem:[%s297 + $0x710] sm:$0xff]
        %v636 = vld [vmem:[%s297 + $0x718] sm:$0xff]
        %v637 = vld [vmem:[%s297 + $0x720] sm:$0xff]
        %v638 = vld [vmem:[%s297 + $0x728] sm:$0xff]
        %v639 = vld [vmem:[%s297 + $0x730] sm:$0xff]
        %v640 = vld [vmem:[%s297 + $0x738] sm:$0xff]
        %v641 = vld [vmem:[%s297 + $0x740] sm:$0xff]
        %v642 = vld [vmem:[%s297 + $0x748] sm:$0xff]
        %v643 = vld [vmem:[%s297 + $0x750] sm:$0xff]
        %v644 = vld [vmem:[%s297 + $0x758] sm:$0xff]
        %v645 = vld [vmem:[%s297 + $0x760] sm:$0xff]
        %v646 = vld [vmem:[%s297 + $0x768] sm:$0xff]
        %v647 = vld [vmem:[%s297 + $0x770] sm:$0xff]
        %v648 = vld [vmem:[%s297 + $0x778] sm:$0xff]
        %v649 = vld [vmem:[%s297 + $0x780] sm:$0xff]
        %v650 = vld [vmem:[%s297 + $0x788] sm:$0xff]
        %v651 = vld [vmem:[%s297 + $0x790] sm:$0xff]
        %v652 = vld [vmem:[%s297 + $0x798] sm:$0xff]
        %v653 = vld [vmem:[%s297 + $0x7a0] sm:$0xff]
        %v654 = vld [vmem:[%s297 + $0x7a8] sm:$0xff]
        %v655 = vld [vmem:[%s297 + $0x7b0] sm:$0xff]
        %v656 = vld [vmem:[%s297 + $0x7b8] sm:$0xff]
        %v657 = vld [vmem:[%s297 + $0x7c0] sm:$0xff]
        %v658 = vld [vmem:[%s297 + $0x7c8] sm:$0xff]
        %v659 = vld [vmem:[%s297 + $0x7d0] sm:$0xff]
        %v660 = vld [vmem:[%s297 + $0x7d8] sm:$0xff]
        %v661 = vld [vmem:[%s297 + $0x7e0] sm:$0xff]
        %v662 = vld [vmem:[%s297 + $0x7e8] sm:$0xff]
        %v663 = vld [vmem:[%s297 + $0x7f0] sm:$0xff]
        %v664 = vld [vmem:[%s297 + $0x7f8] sm:$0xff]
        %v665 = vld [vmem:[%s297 + $0x800] sm:$0xff]
        %v666 = vld [vmem:[%s297 + $0x808] sm:$0xff]
        %v667 = vld [vmem:[%s297 + $0x810] sm:$0xff]
        %v668 = vld [vmem:[%s297 + $0x818] sm:$0xff]
        %v669 = vld [vmem:[%s297 + $0x820] sm:$0xff]
        %v670 = vld [vmem:[%s297 + $0x828] sm:$0xff]
        %v671 = vld [vmem:[%s297 + $0x830] sm:$0xff]
        %v672 = vld [vmem:[%s297 + $0x838] sm:$0xff]
        %v673 = vld [vmem:[%s297 + $0x840] sm:$0xff]
        %v674 = vld [vmem:[%s297 + $0x848] sm:$0xff]
        %v675 = vld [vmem:[%s297 + $0x850] sm:$0xff]
        %v676 = vld [vmem:[%s297 + $0x858] sm:$0xff]
        %v677 = vld [vmem:[%s297 + $0x860] sm:$0xff]
        %v678 = vld [vmem:[%s297 + $0x868] sm:$0xff]
        %v679 = vld [vmem:[%s297 + $0x870] sm:$0xff]
        %v680 = vld [vmem:[%s297 + $0x878] sm:$0xff]
        %v681 = vld [vmem:[%s297 + $0x880] sm:$0xff]
        %v682 = vld [vmem:[%s297 + $0x888] sm:$0xff]
        %v683 = vld [vmem:[%s297 + $0x890] sm:$0xff]
        %v684 = vld [vmem:[%s297 + $0x898] sm:$0xff]
        %v685 = vld [vmem:[%s297 + $0x8a0] sm:$0xff]
        %v686 = vld [vmem:[%s297 + $0x8a8] sm:$0xff]
        %v687 = vld [vmem:[%s297 + $0x8b0] sm:$0xff]
        %v688 = vld [vmem:[%s297 + $0x8b8] sm:$0xff]
        %v689 = vld [vmem:[%s297 + $0x8c0] sm:$0xff]
        %v690 = vld [vmem:[%s297 + $0x8c8] sm:$0xff]
        %v691 = vld [vmem:[%s297 + $0x8d0] sm:$0xff]
        %v692 = vld [vmem:[%s297 + $0x8d8] sm:$0xff]
        %v693 = vld [vmem:[%s297 + $0x8e0] sm:$0xff]
        %v694 = vld [vmem:[%s297 + $0x8e8] sm:$0xff]
        %v695 = vld [vmem:[%s297 + $0x8f0] sm:$0xff]
        %v696 = vld [vmem:[%s297 + $0x8f8] sm:$0xff]
        %v697 = vld [vmem:[%s297 + $0x900] sm:$0xff]
        %v698 = vld [vmem:[%s297 + $0x908] sm:$0xff]
        %v699 = vld [vmem:[%s297 + $0x910] sm:$0xff]
        %v700 = vld [vmem:[%s297 + $0x918] sm:$0xff]
        %v701 = vld [vmem:[%s297 + $0x920] sm:$0xff]
        %v702 = vld [vmem:[%s297 + $0x928] sm:$0xff]
        %v703 = vld [vmem:[%s297 + $0x930] sm:$0xff]
        %v704 = vld [vmem:[%s297 + $0x938] sm:$0xff]
        %v705 = vld [vmem:[%s297 + $0x940] sm:$0xff]
        %v706 = vld [vmem:[%s297 + $0x948] sm:$0xff]
        %v707 = vld [vmem:[%s297 + $0x950] sm:$0xff]
        %v708 = vld [vmem:[%s297 + $0x958] sm:$0xff]
        %v709 = vld [vmem:[%s297 + $0x960] sm:$0xff]
        %v710 = vld [vmem:[%s297 + $0x968] sm:$0xff]
        %v711 = vld [vmem:[%s297 + $0x970] sm:$0xff]
        %v712 = vld [vmem:[%s297 + $0x978] sm:$0xff]
        %v713 = vld [vmem:[%s297 + $0x980] sm:$0xff]
        %v714 = vld [vmem:[%s297 + $0x988] sm:$0xff]
        %v715 = vld [vmem:[%s297 + $0x990] sm:$0xff]
        %v716 = vld [vmem:[%s297 + $0x998] sm:$0xff]
        %v717 = vld [vmem:[%s297 + $0x9a0] sm:$0xff]
        %v718 = vld [vmem:[%s297 + $0x9a8] sm:$0xff]
        %v719 = vld [vmem:[%s297 + $0x9b0] sm:$0xff]
        %v720 = vld [vmem:[%s297 + $0x9b8] sm:$0xff]
        %v721 = vld [vmem:[%s297 + $0x9c0] sm:$0xff]
        %v722 = vld [vmem:[%s297 + $0x9c8] sm:$0xff]
        %v723 = vld [vmem:[%s297 + $0x9d0] sm:$0xff]
        %v724 = vld [vmem:[%s297 + $0x9d8] sm:$0xff]
        %v725 = vld [vmem:[%s297 + $0x9e0] sm:$0xff]
        %v726 = vld [vmem:[%s297 + $0x9e8] sm:$0xff]
        %v727 = vld [vmem:[%s297 + $0x9f0] sm:$0xff]
        %v728 = vld [vmem:[%s297 + $0x9f8] sm:$0xff]
        %v729 = vld [vmem:[%s297 + $0xa00] sm:$0xff]
        %v730 = vld [vmem:[%s297 + $0xa08] sm:$0xff]
        %v731 = vld [vmem:[%s297 + $0xa10] sm:$0xff]
        %v732 = vld [vmem:[%s297 + $0xa18] sm:$0xff]
        %v733 = vld [vmem:[%s297 + $0xa20] sm:$0xff]
        %v734 = vld [vmem:[%s297 + $0xa28] sm:$0xff]
        %v735 = vld [vmem:[%s297 + $0xa30] sm:$0xff]
        %v736 = vld [vmem:[%s297 + $0xa38] sm:$0xff]
        %v737 = vld [vmem:[%s297 + $0xa40] sm:$0xff]
        %v738 = vld [vmem:[%s297 + $0xa48] sm:$0xff]
        %v739 = vld [vmem:[%s297 + $0xa50] sm:$0xff]
        %v740 = vld [vmem:[%s297 + $0xa58] sm:$0xff]
        %v741 = vld [vmem:[%s297 + $0xa60] sm:$0xff]
        %v742 = vld [vmem:[%s297 + $0xa68] sm:$0xff]
        %v743 = vld [vmem:[%s297 + $0xa70] sm:$0xff]
        %v744 = vld [vmem:[%s297 + $0xa78] sm:$0xff]
        %v745 = vld [vmem:[%s297 + $0xa80] sm:$0xff]
        %v746 = vld [vmem:[%s297 + $0xa88] sm:$0xff]
        %v747 = vld [vmem:[%s297 + $0xa90] sm:$0xff]
        %v748 = vld [vmem:[%s297 + $0xa98] sm:$0xff]
        %v749 = vld [vmem:[%s297 + $0xaa0] sm:$0xff]
        %v750 = vld [vmem:[%s297 + $0xaa8] sm:$0xff]
        %v751 = vld [vmem:[%s297 + $0xab0] sm:$0xff]
        %v752 = vld [vmem:[%s297 + $0xab8] sm:$0xff]
        %v753 = vld [vmem:[%s297 + $0xac0] sm:$0xff]
        %v754 = vld [vmem:[%s297 + $0xac8] sm:$0xff]
        %v755 = vld [vmem:[%s297 + $0xad0] sm:$0xff]
        %v756 = vld [vmem:[%s297 + $0xad8] sm:$0xff]
        %v757 = vld [vmem:[%s297 + $0xae0] sm:$0xff]
        %v758 = vld [vmem:[%s297 + $0xae8] sm:$0xff]
        %v759 = vld [vmem:[%s297 + $0xaf0] sm:$0xff]
        %v760 = vld [vmem:[%s297 + $0xaf8] sm:$0xff]
        %v761 = vld [vmem:[%s297 + $0xb00] sm:$0xff]
        %v762 = vld [vmem:[%s297 + $0xb08] sm:$0xff]
        %v763 = vld [vmem:[%s297 + $0xb10] sm:$0xff]
        %v764 = vld [vmem:[%s297 + $0xb18] sm:$0xff]
        %v765 = vld [vmem:[%s297 + $0xb20] sm:$0xff]
        %v766 = vld [vmem:[%s297 + $0xb28] sm:$0xff]
        %v767 = vld [vmem:[%s297 + $0xb30] sm:$0xff]
        %v768 = vld [vmem:[%s297 + $0xb38] sm:$0xff]
        %v769 = vld [vmem:[%s297 + $0xb40] sm:$0xff]
        %v770 = vld [vmem:[%s297 + $0xb48] sm:$0xff]
        %v771 = vld [vmem:[%s297 + $0xb50] sm:$0xff]
        %v772 = vld [vmem:[%s297 + $0xb58] sm:$0xff]
        %v773 = vld [vmem:[%s297 + $0xb60] sm:$0xff]
        %v774 = vld [vmem:[%s297 + $0xb68] sm:$0xff]
        %v775 = vld [vmem:[%s297 + $0xb70] sm:$0xff]
        %v776 = vld [vmem:[%s297 + $0xb78] sm:$0xff]
        %v777 = vld [vmem:[%s297 + $0xb80] sm:$0xff]
        %v778 = vld [vmem:[%s297 + $0xb88] sm:$0xff]
        %v779 = vld [vmem:[%s297 + $0xb90] sm:$0xff]
        %v780 = vld [vmem:[%s297 + $0xb98] sm:$0xff]
        %v781 = vld [vmem:[%s297 + $0xba0] sm:$0xff]
        %v782 = vld [vmem:[%s297 + $0xba8] sm:$0xff]
        %v783 = vld [vmem:[%s297 + $0xbb0] sm:$0xff]
        %v784 = vld [vmem:[%s297 + $0xbb8] sm:$0xff]
        %v785 = vld [vmem:[%s297 + $0xbc0] sm:$0xff]
        %v786 = vld [vmem:[%s297 + $0xbc8] sm:$0xff]
        %v787 = vld [vmem:[%s297 + $0xbd0] sm:$0xff]
        %v788 = vld [vmem:[%s297 + $0xbd8] sm:$0xff]
        %v789 = vld [vmem:[%s297 + $0xbe0] sm:$0xff]
        %v790 = vld [vmem:[%s297 + $0xbe8] sm:$0xff]
        %v791 = vld [vmem:[%s297 + $0xbf0] sm:$0xff]
        %v792 = vld [vmem:[%s297 + $0xbf8] sm:$0xff]
        %v793 = vld [vmem:[%s297 + $0xc00] sm:$0xff]
        %v794 = vld [vmem:[%s297 + $0xc08] sm:$0xff]
        %v795 = vld [vmem:[%s297 + $0xc10] sm:$0xff]
        %v796 = vld [vmem:[%s297 + $0xc18] sm:$0xff]
        %v797 = vld [vmem:[%s297 + $0xc20] sm:$0xff]
        %v798 = vld [vmem:[%s297 + $0xc28] sm:$0xff]
        %v799 = vld [vmem:[%s297 + $0xc30] sm:$0xff]
        %v800 = vld [vmem:[%s297 + $0xc38] sm:$0xff]
        %v801 = vld [vmem:[%s297 + $0xc40] sm:$0xff]
        %v802 = vld [vmem:[%s297 + $0xc48] sm:$0xff]
        %v803 = vld [vmem:[%s297 + $0xc50] sm:$0xff]
        %v804 = vld [vmem:[%s297 + $0xc58] sm:$0xff]
        %v805 = vld [vmem:[%s297 + $0xc60] sm:$0xff]
        %v806 = vld [vmem:[%s297 + $0xc68] sm:$0xff]
        %v807 = vld [vmem:[%s297 + $0xc70] sm:$0xff]
        %v808 = vld [vmem:[%s297 + $0xc78] sm:$0xff]
        %v809 = vld [vmem:[%s297 + $0xc80] sm:$0xff]
        %v810 = vld [vmem:[%s297 + $0xc88] sm:$0xff]
        %v811 = vld [vmem:[%s297 + $0xc90] sm:$0xff]
        %v812 = vld [vmem:[%s297 + $0xc98] sm:$0xff]
        %v813 = vld [vmem:[%s297 + $0xca0] sm:$0xff]
        %v814 = vld [vmem:[%s297 + $0xca8] sm:$0xff]
        %v815 = vld [vmem:[%s297 + $0xcb0] sm:$0xff]
        %v816 = vld [vmem:[%s297 + $0xcb8] sm:$0xff]
        %v817 = vld [vmem:[%s297 + $0xcc0] sm:$0xff]
        %v818 = vld [vmem:[%s297 + $0xcc8] sm:$0xff]
        %v819 = vld [vmem:[%s297 + $0xcd0] sm:$0xff]
        %v820 = vld [vmem:[%s297 + $0xcd8] sm:$0xff]
        %v821 = vld [vmem:[%s297 + $0xce0] sm:$0xff]
        %v822 = vld [vmem:[%s297 + $0xce8] sm:$0xff]
        %v823 = vld [vmem:[%s297 + $0xcf0] sm:$0xff]
        %v824 = vld [vmem:[%s297 + $0xcf8] sm:$0xff]
        %v825 = vld [vmem:[%s297 + $0xd00] sm:$0xff]
        %v826 = vld [vmem:[%s297 + $0xd08] sm:$0xff]
        %v827 = vld [vmem:[%s297 + $0xd10] sm:$0xff]
        %v828 = vld [vmem:[%s297 + $0xd18] sm:$0xff]
        %v829 = vld [vmem:[%s297 + $0xd20] sm:$0xff]
        %v830 = vld [vmem:[%s297 + $0xd28] sm:$0xff]
        %v831 = vld [vmem:[%s297 + $0xd30] sm:$0xff]
        %v832 = vld [vmem:[%s297 + $0xd38] sm:$0xff]
        %v833 = vld [vmem:[%s297 + $0xd40] sm:$0xff]
        %v834 = vld [vmem:[%s297 + $0xd48] sm:$0xff]
        %v835 = vld [vmem:[%s297 + $0xd50] sm:$0xff]
        %v836 = vld [vmem:[%s297 + $0xd58] sm:$0xff]
        %v837 = vld [vmem:[%s297 + $0xd60] sm:$0xff]
        %v838 = vld [vmem:[%s297 + $0xd68] sm:$0xff]
        %v839 = vld [vmem:[%s297 + $0xd70] sm:$0xff]
        %v840 = vld [vmem:[%s297 + $0xd78] sm:$0xff]
        %v841 = vld [vmem:[%s297 + $0xd80] sm:$0xff]
        %v842 = vld [vmem:[%s297 + $0xd88] sm:$0xff]
        %v843 = vld [vmem:[%s297 + $0xd90] sm:$0xff]
        %v844 = vld [vmem:[%s297 + $0xd98] sm:$0xff]
        %v845 = vld [vmem:[%s297 + $0xda0] sm:$0xff]
        %v846 = vld [vmem:[%s297 + $0xda8] sm:$0xff]
        %v847 = vld [vmem:[%s297 + $0xdb0] sm:$0xff]
        %v848 = vld [vmem:[%s297 + $0xdb8] sm:$0xff]
        %v849 = vld [vmem:[%s297 + $0xdc0] sm:$0xff]
        %v850 = vld [vmem:[%s297 + $0xdc8] sm:$0xff]
        %v851 = vld [vmem:[%s297 + $0xdd0] sm:$0xff]
        %v852 = vld [vmem:[%s297 + $0xdd8] sm:$0xff]
        %v853 = vld [vmem:[%s297 + $0xde0] sm:$0xff]
        %v854 = vld [vmem:[%s297 + $0xde8] sm:$0xff]
        %v855 = vld [vmem:[%s297 + $0xdf0] sm:$0xff]
        %v856 = vld [vmem:[%s297 + $0xdf8] sm:$0xff]
        %v857 = vld [vmem:[%s297 + $0xe00] sm:$0xff]
        %v858 = vld [vmem:[%s297 + $0xe08] sm:$0xff]
        %v859 = vld [vmem:[%s297 + $0xe10] sm:$0xff]
        %v860 = vld [vmem:[%s297 + $0xe18] sm:$0xff]
        %v861 = vld [vmem:[%s297 + $0xe20] sm:$0xff]
        %v862 = vld [vmem:[%s297 + $0xe28] sm:$0xff]
        %v863 = vld [vmem:[%s297 + $0xe30] sm:$0xff]
        %v864 = vld [vmem:[%s297 + $0xe38] sm:$0xff]
        %v865 = vld [vmem:[%s297 + $0xe40] sm:$0xff]
        %v866 = vld [vmem:[%s297 + $0xe48] sm:$0xff]
        %v867 = vld [vmem:[%s297 + $0xe50] sm:$0xff]
        %v868 = vld [vmem:[%s297 + $0xe58] sm:$0xff]
        %v869 = vld [vmem:[%s297 + $0xe60] sm:$0xff]
        %v870 = vld [vmem:[%s297 + $0xe68] sm:$0xff]
        %v871 = vld [vmem:[%s297 + $0xe70] sm:$0xff]
        %v872 = vld [vmem:[%s297 + $0xe78] sm:$0xff]
        %v873 = vld [vmem:[%s297 + $0xe80] sm:$0xff]
        %v874 = vld [vmem:[%s297 + $0xe88] sm:$0xff]
        %v875 = vld [vmem:[%s297 + $0xe90] sm:$0xff]
        %v876 = vld [vmem:[%s297 + $0xe98] sm:$0xff]
        %v877 = vld [vmem:[%s297 + $0xea0] sm:$0xff]
        %v878 = vld [vmem:[%s297 + $0xea8] sm:$0xff]
        %v879 = vld [vmem:[%s297 + $0xeb0] sm:$0xff]
        %v880 = vld [vmem:[%s297 + $0xeb8] sm:$0xff]
        %v881 = vld [vmem:[%s297 + $0xec0] sm:$0xff]
        %v882 = vld [vmem:[%s297 + $0xec8] sm:$0xff]
        %v883 = vld [vmem:[%s297 + $0xed0] sm:$0xff]
        %v884 = vld [vmem:[%s297 + $0xed8] sm:$0xff]
        %v885 = vld [vmem:[%s297 + $0xee0] sm:$0xff]
        %v886 = vld [vmem:[%s297 + $0xee8] sm:$0xff]
        %v887 = vld [vmem:[%s297 + $0xef0] sm:$0xff]
        %v888 = vld [vmem:[%s297 + $0xef8] sm:$0xff]
        %v889 = vld [vmem:[%s297 + $0xf00] sm:$0xff]
        %v890 = vld [vmem:[%s297 + $0xf08] sm:$0xff]
        %v891 = vld [vmem:[%s297 + $0xf10] sm:$0xff]
        %v892 = vld [vmem:[%s297 + $0xf18] sm:$0xff]
        %v893 = vld [vmem:[%s297 + $0xf20] sm:$0xff]
        %v894 = vld [vmem:[%s297 + $0xf28] sm:$0xff]
        %v895 = vld [vmem:[%s297 + $0xf30] sm:$0xff]
        %v896 = vld [vmem:[%s297 + $0xf38] sm:$0xff]
        %v897 = vld [vmem:[%s297 + $0xf40] sm:$0xff]
        %v898 = vld [vmem:[%s297 + $0xf48] sm:$0xff]
        %v899 = vld [vmem:[%s297 + $0xf50] sm:$0xff]
        %v900 = vld [vmem:[%s297 + $0xf58] sm:$0xff]
        %v901 = vld [vmem:[%s297 + $0xf60] sm:$0xff]
        %v902 = vld [vmem:[%s297 + $0xf68] sm:$0xff]
        %v903 = vld [vmem:[%s297 + $0xf70] sm:$0xff]
        %v904 = vld [vmem:[%s297 + $0xf78] sm:$0xff]
        %v905 = vld [vmem:[%s297 + $0xf80] sm:$0xff]
        %v906 = vld [vmem:[%s297 + $0xf88] sm:$0xff]
        %v907 = vld [vmem:[%s297 + $0xf90] sm:$0xff]
        %v908 = vld [vmem:[%s297 + $0xf98] sm:$0xff]
        %v909 = vld [vmem:[%s297 + $0xfa0] sm:$0xff]
        %v910 = vld [vmem:[%s297 + $0xfa8] sm:$0xff]
        %v911 = vld [vmem:[%s297 + $0xfb0] sm:$0xff]
        %v912 = vld [vmem:[%s297 + $0xfb8] sm:$0xff]
        %v913 = vld [vmem:[%s297 + $0xfc0] sm:$0xff]
        %v914 = vld [vmem:[%s297 + $0xfc8] sm:$0xff]
        %v915 = vld [vmem:[%s297 + $0xfd0] sm:$0xff]
        %v916 = vld [vmem:[%s297 + $0xfd8] sm:$0xff]
        %v917 = vld [vmem:[%s297 + $0xfe0] sm:$0xff]
        %v918 = vld [vmem:[%s297 + $0xfe8] sm:$0xff]
        %v919 = vld [vmem:[%s297 + $0xff0] sm:$0xff]
        %v920 = vld [vmem:[%s297 + $0xff8] sm:$0xff]
        %v1433 = vunpack.c.l.b16 %v409
        %v1434 = vunpack.c.h.b16 %v409
        %v1435 = vunpack.c.l.b16 %v410
        %v1436 = vunpack.c.h.b16 %v410
        %v1437 = vunpack.c.l.b16 %v411
        %v1438 = vunpack.c.h.b16 %v411
        %v1439 = vunpack.c.l.b16 %v412
        %v1440 = vunpack.c.h.b16 %v412
        %v1441 = vunpack.c.l.b16 %v413
        %v1442 = vunpack.c.h.b16 %v413
        %v1443 = vunpack.c.l.b16 %v414
        %v1444 = vunpack.c.h.b16 %v414
        %v1445 = vunpack.c.l.b16 %v415
        %v1446 = vunpack.c.h.b16 %v415
        %v1447 = vunpack.c.l.b16 %v416
        %v1448 = vunpack.c.h.b16 %v416
        %v1449 = vunpack.c.l.b16 %v417
        %v1450 = vunpack.c.h.b16 %v417
        %v1451 = vunpack.c.l.b16 %v418
        %v1452 = vunpack.c.h.b16 %v418
        %v1453 = vunpack.c.l.b16 %v419
        %v1454 = vunpack.c.h.b16 %v419
        %v1455 = vunpack.c.l.b16 %v420
        %v1456 = vunpack.c.h.b16 %v420
        %v1457 = vunpack.c.l.b16 %v421
        %v1458 = vunpack.c.h.b16 %v421
        %v1459 = vunpack.c.l.b16 %v422
        %v1460 = vunpack.c.h.b16 %v422
        %v1461 = vunpack.c.l.b16 %v423
        %v1462 = vunpack.c.h.b16 %v423
        %v1463 = vunpack.c.l.b16 %v424
        %v1464 = vunpack.c.h.b16 %v424
        %v1465 = vunpack.c.l.b16 %v425
        %v1466 = vunpack.c.h.b16 %v425
        %v1467 = vunpack.c.l.b16 %v426
        %v1468 = vunpack.c.h.b16 %v426
        %v1469 = vunpack.c.l.b16 %v427
        %v1470 = vunpack.c.h.b16 %v427
        %v1471 = vunpack.c.l.b16 %v428
        %v1472 = vunpack.c.h.b16 %v428
        %v1473 = vunpack.c.l.b16 %v429
        %v1474 = vunpack.c.h.b16 %v429
        %v1475 = vunpack.c.l.b16 %v430
        %v1476 = vunpack.c.h.b16 %v430
        %v1477 = vunpack.c.l.b16 %v431
        %v1478 = vunpack.c.h.b16 %v431
        %v1479 = vunpack.c.l.b16 %v432
        %v1480 = vunpack.c.h.b16 %v432
        %v1481 = vunpack.c.l.b16 %v433
        %v1482 = vunpack.c.h.b16 %v433
        %v1483 = vunpack.c.l.b16 %v434
        %v1484 = vunpack.c.h.b16 %v434
        %v1485 = vunpack.c.l.b16 %v435
        %v1486 = vunpack.c.h.b16 %v435
        %v1487 = vunpack.c.l.b16 %v436
        %v1488 = vunpack.c.h.b16 %v436
        %v1489 = vunpack.c.l.b16 %v437
        %v1490 = vunpack.c.h.b16 %v437
        %v1491 = vunpack.c.l.b16 %v438
        %v1492 = vunpack.c.h.b16 %v438
        %v1493 = vunpack.c.l.b16 %v439
        %v1494 = vunpack.c.h.b16 %v439
        %v1495 = vunpack.c.l.b16 %v440
        %v1496 = vunpack.c.h.b16 %v440
        %v1497 = vunpack.c.l.b16 %v441
        %v1498 = vunpack.c.h.b16 %v441
        %v1499 = vunpack.c.l.b16 %v442
        %v1500 = vunpack.c.h.b16 %v442
        %v1501 = vunpack.c.l.b16 %v443
        %v1502 = vunpack.c.h.b16 %v443
        %v1503 = vunpack.c.l.b16 %v444
        %v1504 = vunpack.c.h.b16 %v444
        %v1505 = vunpack.c.l.b16 %v445
        %v1506 = vunpack.c.h.b16 %v445
        %v1507 = vunpack.c.l.b16 %v446
        %v1508 = vunpack.c.h.b16 %v446
        %v1509 = vunpack.c.l.b16 %v447
        %v1510 = vunpack.c.h.b16 %v447
        %v1511 = vunpack.c.l.b16 %v448
        %v1512 = vunpack.c.h.b16 %v448
        %v1513 = vunpack.c.l.b16 %v449
        %v1514 = vunpack.c.h.b16 %v449
        %v1515 = vunpack.c.l.b16 %v450
        %v1516 = vunpack.c.h.b16 %v450
        %v1517 = vunpack.c.l.b16 %v451
        %v1518 = vunpack.c.h.b16 %v451
        %v1519 = vunpack.c.l.b16 %v452
        %v1520 = vunpack.c.h.b16 %v452
        %v1521 = vunpack.c.l.b16 %v453
        %v1522 = vunpack.c.h.b16 %v453
        %v1523 = vunpack.c.l.b16 %v454
        %v1524 = vunpack.c.h.b16 %v454
        %v1525 = vunpack.c.l.b16 %v455
        %v1526 = vunpack.c.h.b16 %v455
        %v1527 = vunpack.c.l.b16 %v456
        %v1528 = vunpack.c.h.b16 %v456
        %v1529 = vunpack.c.l.b16 %v457
        %v1530 = vunpack.c.h.b16 %v457
        %v1531 = vunpack.c.l.b16 %v458
        %v1532 = vunpack.c.h.b16 %v458
        %v1533 = vunpack.c.l.b16 %v459
        %v1534 = vunpack.c.h.b16 %v459
        %v1535 = vunpack.c.l.b16 %v460
        %v1536 = vunpack.c.h.b16 %v460
        %v1537 = vunpack.c.l.b16 %v461
        %v1538 = vunpack.c.h.b16 %v461
        %v1539 = vunpack.c.l.b16 %v462
        %v1540 = vunpack.c.h.b16 %v462
        %v1541 = vunpack.c.l.b16 %v463
        %v1542 = vunpack.c.h.b16 %v463
        %v1543 = vunpack.c.l.b16 %v464
        %v1544 = vunpack.c.h.b16 %v464
        %v1545 = vunpack.c.l.b16 %v465
        %v1546 = vunpack.c.h.b16 %v465
        %v1547 = vunpack.c.l.b16 %v466
        %v1548 = vunpack.c.h.b16 %v466
        %v1549 = vunpack.c.l.b16 %v467
        %v1550 = vunpack.c.h.b16 %v467
        %v1551 = vunpack.c.l.b16 %v468
        %v1552 = vunpack.c.h.b16 %v468
        %v1553 = vunpack.c.l.b16 %v469
        %v1554 = vunpack.c.h.b16 %v469
        %v1555 = vunpack.c.l.b16 %v470
        %v1556 = vunpack.c.h.b16 %v470
        %v1557 = vunpack.c.l.b16 %v471
        %v1558 = vunpack.c.h.b16 %v471
        %v1559 = vunpack.c.l.b16 %v472
        %v1560 = vunpack.c.h.b16 %v472
        %v1561 = vunpack.c.l.b16 %v473
        %v1562 = vunpack.c.h.b16 %v473
        %v1563 = vunpack.c.l.b16 %v474
        %v1564 = vunpack.c.h.b16 %v474
        %v1565 = vunpack.c.l.b16 %v475
        %v1566 = vunpack.c.h.b16 %v475
        %v1567 = vunpack.c.l.b16 %v476
        %v1568 = vunpack.c.h.b16 %v476
        %v1569 = vunpack.c.l.b16 %v477
        %v1570 = vunpack.c.h.b16 %v477
        %v1571 = vunpack.c.l.b16 %v478
        %v1572 = vunpack.c.h.b16 %v478
        %v1573 = vunpack.c.l.b16 %v479
        %v1574 = vunpack.c.h.b16 %v479
        %v1575 = vunpack.c.l.b16 %v480
        %v1576 = vunpack.c.h.b16 %v480
        %v1577 = vunpack.c.l.b16 %v481
        %v1578 = vunpack.c.h.b16 %v481
        %v1579 = vunpack.c.l.b16 %v482
        %v1580 = vunpack.c.h.b16 %v482
        %v1581 = vunpack.c.l.b16 %v483
        %v1582 = vunpack.c.h.b16 %v483
        %v1583 = vunpack.c.l.b16 %v484
        %v1584 = vunpack.c.h.b16 %v484
        %v1585 = vunpack.c.l.b16 %v485
        %v1586 = vunpack.c.h.b16 %v485
        %v1587 = vunpack.c.l.b16 %v486
        %v1588 = vunpack.c.h.b16 %v486
        %v1589 = vunpack.c.l.b16 %v487
        %v1590 = vunpack.c.h.b16 %v487
        %v1591 = vunpack.c.l.b16 %v488
        %v1592 = vunpack.c.h.b16 %v488
        %v1593 = vunpack.c.l.b16 %v489
        %v1594 = vunpack.c.h.b16 %v489
        %v1595 = vunpack.c.l.b16 %v490
        %v1596 = vunpack.c.h.b16 %v490
        %v1597 = vunpack.c.l.b16 %v491
        %v1598 = vunpack.c.h.b16 %v491
        %v1599 = vunpack.c.l.b16 %v492
        %v1600 = vunpack.c.h.b16 %v492
        %v1601 = vunpack.c.l.b16 %v493
        %v1602 = vunpack.c.h.b16 %v493
        %v1603 = vunpack.c.l.b16 %v494
        %v1604 = vunpack.c.h.b16 %v494
        %v1605 = vunpack.c.l.b16 %v495
        %v1606 = vunpack.c.h.b16 %v495
        %v1607 = vunpack.c.l.b16 %v496
        %v1608 = vunpack.c.h.b16 %v496
        %v1609 = vunpack.c.l.b16 %v497
        %v1610 = vunpack.c.h.b16 %v497
        %v1611 = vunpack.c.l.b16 %v498
        %v1612 = vunpack.c.h.b16 %v498
        %v1613 = vunpack.c.l.b16 %v499
        %v1614 = vunpack.c.h.b16 %v499
        %v1615 = vunpack.c.l.b16 %v500
        %v1616 = vunpack.c.h.b16 %v500
        %v1617 = vunpack.c.l.b16 %v501
        %v1618 = vunpack.c.h.b16 %v501
        %v1619 = vunpack.c.l.b16 %v502
        %v1620 = vunpack.c.h.b16 %v502
        %v1621 = vunpack.c.l.b16 %v503
        %v1622 = vunpack.c.h.b16 %v503
        %v1623 = vunpack.c.l.b16 %v504
        %v1624 = vunpack.c.h.b16 %v504
        %v1625 = vunpack.c.l.b16 %v505
        %v1626 = vunpack.c.h.b16 %v505
        %v1627 = vunpack.c.l.b16 %v506
        %v1628 = vunpack.c.h.b16 %v506
        %v1629 = vunpack.c.l.b16 %v507
        %v1630 = vunpack.c.h.b16 %v507
        %v1631 = vunpack.c.l.b16 %v508
        %v1632 = vunpack.c.h.b16 %v508
        %v1633 = vunpack.c.l.b16 %v509
        %v1634 = vunpack.c.h.b16 %v509
        %v1635 = vunpack.c.l.b16 %v510
        %v1636 = vunpack.c.h.b16 %v510
        %v1637 = vunpack.c.l.b16 %v511
        %v1638 = vunpack.c.h.b16 %v511
        %v1639 = vunpack.c.l.b16 %v512
        %v1640 = vunpack.c.h.b16 %v512
        %v1641 = vunpack.c.l.b16 %v513
        %v1642 = vunpack.c.h.b16 %v513
        %v1643 = vunpack.c.l.b16 %v514
        %v1644 = vunpack.c.h.b16 %v514
        %v1645 = vunpack.c.l.b16 %v515
        %v1646 = vunpack.c.h.b16 %v515
        %v1647 = vunpack.c.l.b16 %v516
        %v1648 = vunpack.c.h.b16 %v516
        %v1649 = vunpack.c.l.b16 %v517
        %v1650 = vunpack.c.h.b16 %v517
        %v1651 = vunpack.c.l.b16 %v518
        %v1652 = vunpack.c.h.b16 %v518
        %v1653 = vunpack.c.l.b16 %v519
        %v1654 = vunpack.c.h.b16 %v519
        %v1655 = vunpack.c.l.b16 %v520
        %v1656 = vunpack.c.h.b16 %v520
        %v1657 = vunpack.c.l.b16 %v521
        %v1658 = vunpack.c.h.b16 %v521
        %v1659 = vunpack.c.l.b16 %v522
        %v1660 = vunpack.c.h.b16 %v522
        %v1661 = vunpack.c.l.b16 %v523
        %v1662 = vunpack.c.h.b16 %v523
        %v1663 = vunpack.c.l.b16 %v524
        %v1664 = vunpack.c.h.b16 %v524
        %v1665 = vunpack.c.l.b16 %v525
        %v1666 = vunpack.c.h.b16 %v525
        %v1667 = vunpack.c.l.b16 %v526
        %v1668 = vunpack.c.h.b16 %v526
        %v1669 = vunpack.c.l.b16 %v527
        %v1670 = vunpack.c.h.b16 %v527
        %v1671 = vunpack.c.l.b16 %v528
        %v1672 = vunpack.c.h.b16 %v528
        %v1673 = vunpack.c.l.b16 %v529
        %v1674 = vunpack.c.h.b16 %v529
        %v1675 = vunpack.c.l.b16 %v530
        %v1676 = vunpack.c.h.b16 %v530
        %v1677 = vunpack.c.l.b16 %v531
        %v1678 = vunpack.c.h.b16 %v531
        %v1679 = vunpack.c.l.b16 %v532
        %v1680 = vunpack.c.h.b16 %v532
        %v1681 = vunpack.c.l.b16 %v533
        %v1682 = vunpack.c.h.b16 %v533
        %v1683 = vunpack.c.l.b16 %v534
        %v1684 = vunpack.c.h.b16 %v534
        %v1685 = vunpack.c.l.b16 %v535
        %v1686 = vunpack.c.h.b16 %v535
        %v1687 = vunpack.c.l.b16 %v536
        %v1688 = vunpack.c.h.b16 %v536
        %v1689 = vunpack.c.l.b16 %v537
        %v1690 = vunpack.c.h.b16 %v537
        %v1691 = vunpack.c.l.b16 %v538
        %v1692 = vunpack.c.h.b16 %v538
        %v1693 = vunpack.c.l.b16 %v539
        %v1694 = vunpack.c.h.b16 %v539
        %v1695 = vunpack.c.l.b16 %v540
        %v1696 = vunpack.c.h.b16 %v540
        %v1697 = vunpack.c.l.b16 %v541
        %v1698 = vunpack.c.h.b16 %v541
        %v1699 = vunpack.c.l.b16 %v542
        %v1700 = vunpack.c.h.b16 %v542
        %v1701 = vunpack.c.l.b16 %v543
        %v1702 = vunpack.c.h.b16 %v543
        %v1703 = vunpack.c.l.b16 %v544
        %v1704 = vunpack.c.h.b16 %v544
        %v1705 = vunpack.c.l.b16 %v545
        %v1706 = vunpack.c.h.b16 %v545
        %v1707 = vunpack.c.l.b16 %v546
        %v1708 = vunpack.c.h.b16 %v546
        %v1709 = vunpack.c.l.b16 %v547
        %v1710 = vunpack.c.h.b16 %v547
        %v1711 = vunpack.c.l.b16 %v548
        %v1712 = vunpack.c.h.b16 %v548
        %v1713 = vunpack.c.l.b16 %v549
        %v1714 = vunpack.c.h.b16 %v549
        %v1715 = vunpack.c.l.b16 %v550
        %v1716 = vunpack.c.h.b16 %v550
        %v1717 = vunpack.c.l.b16 %v551
        %v1718 = vunpack.c.h.b16 %v551
        %v1719 = vunpack.c.l.b16 %v552
        %v1720 = vunpack.c.h.b16 %v552
        %v1721 = vunpack.c.l.b16 %v553
        %v1722 = vunpack.c.h.b16 %v553
        %v1723 = vunpack.c.l.b16 %v554
        %v1724 = vunpack.c.h.b16 %v554
        %v1725 = vunpack.c.l.b16 %v555
        %v1726 = vunpack.c.h.b16 %v555
        %v1727 = vunpack.c.l.b16 %v556
        %v1728 = vunpack.c.h.b16 %v556
        %v1729 = vunpack.c.l.b16 %v557
        %v1730 = vunpack.c.h.b16 %v557
        %v1731 = vunpack.c.l.b16 %v558
        %v1732 = vunpack.c.h.b16 %v558
        %v1733 = vunpack.c.l.b16 %v559
        %v1734 = vunpack.c.h.b16 %v559
        %v1735 = vunpack.c.l.b16 %v560
        %v1736 = vunpack.c.h.b16 %v560
        %v1737 = vunpack.c.l.b16 %v561
        %v1738 = vunpack.c.h.b16 %v561
        %v1739 = vunpack.c.l.b16 %v562
        %v1740 = vunpack.c.h.b16 %v562
        %v1741 = vunpack.c.l.b16 %v563
        %v1742 = vunpack.c.h.b16 %v563
        %v1743 = vunpack.c.l.b16 %v564
        %v1744 = vunpack.c.h.b16 %v564
        %v1745 = vunpack.c.l.b16 %v565
        %v1746 = vunpack.c.h.b16 %v565
        %v1747 = vunpack.c.l.b16 %v566
        %v1748 = vunpack.c.h.b16 %v566
        %v1749 = vunpack.c.l.b16 %v567
        %v1750 = vunpack.c.h.b16 %v567
        %v1751 = vunpack.c.l.b16 %v568
        %v1752 = vunpack.c.h.b16 %v568
        %v1753 = vunpack.c.l.b16 %v569
        %v1754 = vunpack.c.h.b16 %v569
        %v1755 = vunpack.c.l.b16 %v570
        %v1756 = vunpack.c.h.b16 %v570
        %v1757 = vunpack.c.l.b16 %v571
        %v1758 = vunpack.c.h.b16 %v571
        %v1759 = vunpack.c.l.b16 %v572
        %v1760 = vunpack.c.h.b16 %v572
        %v1761 = vunpack.c.l.b16 %v573
        %v1762 = vunpack.c.h.b16 %v573
        %v1763 = vunpack.c.l.b16 %v574
        %v1764 = vunpack.c.h.b16 %v574
        %v1765 = vunpack.c.l.b16 %v575
        %v1766 = vunpack.c.h.b16 %v575
        %v1767 = vunpack.c.l.b16 %v576
        %v1768 = vunpack.c.h.b16 %v576
        %v1769 = vunpack.c.l.b16 %v577
        %v1770 = vunpack.c.h.b16 %v577
        %v1771 = vunpack.c.l.b16 %v578
        %v1772 = vunpack.c.h.b16 %v578
        %v1773 = vunpack.c.l.b16 %v579
        %v1774 = vunpack.c.h.b16 %v579
        %v1775 = vunpack.c.l.b16 %v580
        %v1776 = vunpack.c.h.b16 %v580
        %v1777 = vunpack.c.l.b16 %v581
        %v1778 = vunpack.c.h.b16 %v581
        %v1779 = vunpack.c.l.b16 %v582
        %v1780 = vunpack.c.h.b16 %v582
        %v1781 = vunpack.c.l.b16 %v583
        %v1782 = vunpack.c.h.b16 %v583
        %v1783 = vunpack.c.l.b16 %v584
        %v1784 = vunpack.c.h.b16 %v584
        %v1785 = vunpack.c.l.b16 %v585
        %v1786 = vunpack.c.h.b16 %v585
        %v1787 = vunpack.c.l.b16 %v586
        %v1788 = vunpack.c.h.b16 %v586
        %v1789 = vunpack.c.l.b16 %v587
        %v1790 = vunpack.c.h.b16 %v587
        %v1791 = vunpack.c.l.b16 %v588
        %v1792 = vunpack.c.h.b16 %v588
        %v1793 = vunpack.c.l.b16 %v589
        %v1794 = vunpack.c.h.b16 %v589
        %v1795 = vunpack.c.l.b16 %v590
        %v1796 = vunpack.c.h.b16 %v590
        %v1797 = vunpack.c.l.b16 %v591
        %v1798 = vunpack.c.h.b16 %v591
        %v1799 = vunpack.c.l.b16 %v592
        %v1800 = vunpack.c.h.b16 %v592
        %v1801 = vunpack.c.l.b16 %v593
        %v1802 = vunpack.c.h.b16 %v593
        %v1803 = vunpack.c.l.b16 %v594
        %v1804 = vunpack.c.h.b16 %v594
        %v1805 = vunpack.c.l.b16 %v595
        %v1806 = vunpack.c.h.b16 %v595
        %v1807 = vunpack.c.l.b16 %v596
        %v1808 = vunpack.c.h.b16 %v596
        %v1809 = vunpack.c.l.b16 %v597
        %v1810 = vunpack.c.h.b16 %v597
        %v1811 = vunpack.c.l.b16 %v598
        %v1812 = vunpack.c.h.b16 %v598
        %v1813 = vunpack.c.l.b16 %v599
        %v1814 = vunpack.c.h.b16 %v599
        %v1815 = vunpack.c.l.b16 %v600
        %v1816 = vunpack.c.h.b16 %v600
        %v1817 = vunpack.c.l.b16 %v601
        %v1818 = vunpack.c.h.b16 %v601
        %v1819 = vunpack.c.l.b16 %v602
        %v1820 = vunpack.c.h.b16 %v602
        %v1821 = vunpack.c.l.b16 %v603
        %v1822 = vunpack.c.h.b16 %v603
        %v1823 = vunpack.c.l.b16 %v604
        %v1824 = vunpack.c.h.b16 %v604
        %v1825 = vunpack.c.l.b16 %v605
        %v1826 = vunpack.c.h.b16 %v605
        %v1827 = vunpack.c.l.b16 %v606
        %v1828 = vunpack.c.h.b16 %v606
        %v1829 = vunpack.c.l.b16 %v607
        %v1830 = vunpack.c.h.b16 %v607
        %v1831 = vunpack.c.l.b16 %v608
        %v1832 = vunpack.c.h.b16 %v608
        %v1833 = vunpack.c.l.b16 %v609
        %v1834 = vunpack.c.h.b16 %v609
        %v1835 = vunpack.c.l.b16 %v610
        %v1836 = vunpack.c.h.b16 %v610
        %v1837 = vunpack.c.l.b16 %v611
        %v1838 = vunpack.c.h.b16 %v611
        %v1839 = vunpack.c.l.b16 %v612
        %v1840 = vunpack.c.h.b16 %v612
        %v1841 = vunpack.c.l.b16 %v613
        %v1842 = vunpack.c.h.b16 %v613
        %v1843 = vunpack.c.l.b16 %v614
        %v1844 = vunpack.c.h.b16 %v614
        %v1845 = vunpack.c.l.b16 %v615
        %v1846 = vunpack.c.h.b16 %v615
        %v1847 = vunpack.c.l.b16 %v616
        %v1848 = vunpack.c.h.b16 %v616
        %v1849 = vunpack.c.l.b16 %v617
        %v1850 = vunpack.c.h.b16 %v617
        %v1851 = vunpack.c.l.b16 %v618
        %v1852 = vunpack.c.h.b16 %v618
        %v1853 = vunpack.c.l.b16 %v619
        %v1854 = vunpack.c.h.b16 %v619
        %v1855 = vunpack.c.l.b16 %v620
        %v1856 = vunpack.c.h.b16 %v620
        %v1857 = vunpack.c.l.b16 %v621
        %v1858 = vunpack.c.h.b16 %v621
        %v1859 = vunpack.c.l.b16 %v622
        %v1860 = vunpack.c.h.b16 %v622
        %v1861 = vunpack.c.l.b16 %v623
        %v1862 = vunpack.c.h.b16 %v623
        %v1863 = vunpack.c.l.b16 %v624
        %v1864 = vunpack.c.h.b16 %v624
        %v1865 = vunpack.c.l.b16 %v625
        %v1866 = vunpack.c.h.b16 %v625
        %v1867 = vunpack.c.l.b16 %v626
        %v1868 = vunpack.c.h.b16 %v626
        %v1869 = vunpack.c.l.b16 %v627
        %v1870 = vunpack.c.h.b16 %v627
        %v1871 = vunpack.c.l.b16 %v628
        %v1872 = vunpack.c.h.b16 %v628
        %v1873 = vunpack.c.l.b16 %v629
        %v1874 = vunpack.c.h.b16 %v629
        %v1875 = vunpack.c.l.b16 %v630
        %v1876 = vunpack.c.h.b16 %v630
        %v1877 = vunpack.c.l.b16 %v631
        %v1878 = vunpack.c.h.b16 %v631
        %v1879 = vunpack.c.l.b16 %v632
        %v1880 = vunpack.c.h.b16 %v632
        %v1881 = vunpack.c.l.b16 %v633
        %v1882 = vunpack.c.h.b16 %v633
        %v1883 = vunpack.c.l.b16 %v634
        %v1884 = vunpack.c.h.b16 %v634
        %v1885 = vunpack.c.l.b16 %v635
        %v1886 = vunpack.c.h.b16 %v635
        %v1887 = vunpack.c.l.b16 %v636
        %v1888 = vunpack.c.h.b16 %v636
        %v1889 = vunpack.c.l.b16 %v637
        %v1890 = vunpack.c.h.b16 %v637
        %v1891 = vunpack.c.l.b16 %v638
        %v1892 = vunpack.c.h.b16 %v638
        %v1893 = vunpack.c.l.b16 %v639
        %v1894 = vunpack.c.h.b16 %v639
        %v1895 = vunpack.c.l.b16 %v640
        %v1896 = vunpack.c.h.b16 %v640
        %v1897 = vunpack.c.l.b16 %v641
        %v1898 = vunpack.c.h.b16 %v641
        %v1899 = vunpack.c.l.b16 %v642
        %v1900 = vunpack.c.h.b16 %v642
        %v1901 = vunpack.c.l.b16 %v643
        %v1902 = vunpack.c.h.b16 %v643
        %v1903 = vunpack.c.l.b16 %v644
        %v1904 = vunpack.c.h.b16 %v644
        %v1905 = vunpack.c.l.b16 %v645
        %v1906 = vunpack.c.h.b16 %v645
        %v1907 = vunpack.c.l.b16 %v646
        %v1908 = vunpack.c.h.b16 %v646
        %v1909 = vunpack.c.l.b16 %v647
        %v1910 = vunpack.c.h.b16 %v647
        %v1911 = vunpack.c.l.b16 %v648
        %v1912 = vunpack.c.h.b16 %v648
        %v1913 = vunpack.c.l.b16 %v649
        %v1914 = vunpack.c.h.b16 %v649
        %v1915 = vunpack.c.l.b16 %v650
        %v1916 = vunpack.c.h.b16 %v650
        %v1917 = vunpack.c.l.b16 %v651
        %v1918 = vunpack.c.h.b16 %v651
        %v1919 = vunpack.c.l.b16 %v652
        %v1920 = vunpack.c.h.b16 %v652
        %v1921 = vunpack.c.l.b16 %v653
        %v1922 = vunpack.c.h.b16 %v653
        %v1923 = vunpack.c.l.b16 %v654
        %v1924 = vunpack.c.h.b16 %v654
        %v1925 = vunpack.c.l.b16 %v655
        %v1926 = vunpack.c.h.b16 %v655
        %v1927 = vunpack.c.l.b16 %v656
        %v1928 = vunpack.c.h.b16 %v656
        %v1929 = vunpack.c.l.b16 %v657
        %v1930 = vunpack.c.h.b16 %v657
        %v1931 = vunpack.c.l.b16 %v658
        %v1932 = vunpack.c.h.b16 %v658
        %v1933 = vunpack.c.l.b16 %v659
        %v1934 = vunpack.c.h.b16 %v659
        %v1935 = vunpack.c.l.b16 %v660
        %v1936 = vunpack.c.h.b16 %v660
        %v1937 = vunpack.c.l.b16 %v661
        %v1938 = vunpack.c.h.b16 %v661
        %v1939 = vunpack.c.l.b16 %v662
        %v1940 = vunpack.c.h.b16 %v662
        %v1941 = vunpack.c.l.b16 %v663
        %v1942 = vunpack.c.h.b16 %v663
        %v1943 = vunpack.c.l.b16 %v664
        %v1944 = vunpack.c.h.b16 %v664
        %v1945 = vunpack.c.l.b16 %v665
        %v1946 = vunpack.c.h.b16 %v665
        %v1947 = vunpack.c.l.b16 %v666
        %v1948 = vunpack.c.h.b16 %v666
        %v1949 = vunpack.c.l.b16 %v667
        %v1950 = vunpack.c.h.b16 %v667
        %v1951 = vunpack.c.l.b16 %v668
        %v1952 = vunpack.c.h.b16 %v668
        %v1953 = vunpack.c.l.b16 %v669
        %v1954 = vunpack.c.h.b16 %v669
        %v1955 = vunpack.c.l.b16 %v670
        %v1956 = vunpack.c.h.b16 %v670
        %v1957 = vunpack.c.l.b16 %v671
        %v1958 = vunpack.c.h.b16 %v671
        %v1959 = vunpack.c.l.b16 %v672
        %v1960 = vunpack.c.h.b16 %v672
        %v1961 = vunpack.c.l.b16 %v673
        %v1962 = vunpack.c.h.b16 %v673
        %v1963 = vunpack.c.l.b16 %v674
        %v1964 = vunpack.c.h.b16 %v674
        %v1965 = vunpack.c.l.b16 %v675
        %v1966 = vunpack.c.h.b16 %v675
        %v1967 = vunpack.c.l.b16 %v676
        %v1968 = vunpack.c.h.b16 %v676
        %v1969 = vunpack.c.l.b16 %v677
        %v1970 = vunpack.c.h.b16 %v677
        %v1971 = vunpack.c.l.b16 %v678
        %v1972 = vunpack.c.h.b16 %v678
        %v1973 = vunpack.c.l.b16 %v679
        %v1974 = vunpack.c.h.b16 %v679
        %v1975 = vunpack.c.l.b16 %v680
        %v1976 = vunpack.c.h.b16 %v680
        %v1977 = vunpack.c.l.b16 %v681
        %v1978 = vunpack.c.h.b16 %v681
        %v1979 = vunpack.c.l.b16 %v682
        %v1980 = vunpack.c.h.b16 %v682
        %v1981 = vunpack.c.l.b16 %v683
        %v1982 = vunpack.c.h.b16 %v683
        %v1983 = vunpack.c.l.b16 %v684
        %v1984 = vunpack.c.h.b16 %v684
        %v1985 = vunpack.c.l.b16 %v685
        %v1986 = vunpack.c.h.b16 %v685
        %v1987 = vunpack.c.l.b16 %v686
        %v1988 = vunpack.c.h.b16 %v686
        %v1989 = vunpack.c.l.b16 %v687
        %v1990 = vunpack.c.h.b16 %v687
        %v1991 = vunpack.c.l.b16 %v688
        %v1992 = vunpack.c.h.b16 %v688
        %v1993 = vunpack.c.l.b16 %v689
        %v1994 = vunpack.c.h.b16 %v689
        %v1995 = vunpack.c.l.b16 %v690
        %v1996 = vunpack.c.h.b16 %v690
        %v1997 = vunpack.c.l.b16 %v691
        %v1998 = vunpack.c.h.b16 %v691
        %v1999 = vunpack.c.l.b16 %v692
        %v2000 = vunpack.c.h.b16 %v692
        %v2001 = vunpack.c.l.b16 %v693
        %v2002 = vunpack.c.h.b16 %v693
        %v2003 = vunpack.c.l.b16 %v694
        %v2004 = vunpack.c.h.b16 %v694
        %v2005 = vunpack.c.l.b16 %v695
        %v2006 = vunpack.c.h.b16 %v695
        %v2007 = vunpack.c.l.b16 %v696
        %v2008 = vunpack.c.h.b16 %v696
        %v2009 = vunpack.c.l.b16 %v697
        %v2010 = vunpack.c.h.b16 %v697
        %v2011 = vunpack.c.l.b16 %v698
        %v2012 = vunpack.c.h.b16 %v698
        %v2013 = vunpack.c.l.b16 %v699
        %v2014 = vunpack.c.h.b16 %v699
        %v2015 = vunpack.c.l.b16 %v700
        %v2016 = vunpack.c.h.b16 %v700
        %v2017 = vunpack.c.l.b16 %v701
        %v2018 = vunpack.c.h.b16 %v701
        %v2019 = vunpack.c.l.b16 %v702
        %v2020 = vunpack.c.h.b16 %v702
        %v2021 = vunpack.c.l.b16 %v703
        %v2022 = vunpack.c.h.b16 %v703
        %v2023 = vunpack.c.l.b16 %v704
        %v2024 = vunpack.c.h.b16 %v704
        %v2025 = vunpack.c.l.b16 %v705
        %v2026 = vunpack.c.h.b16 %v705
        %v2027 = vunpack.c.l.b16 %v706
        %v2028 = vunpack.c.h.b16 %v706
        %v2029 = vunpack.c.l.b16 %v707
        %v2030 = vunpack.c.h.b16 %v707
        %v2031 = vunpack.c.l.b16 %v708
        %v2032 = vunpack.c.h.b16 %v708
        %v2033 = vunpack.c.l.b16 %v709
        %v2034 = vunpack.c.h.b16 %v709
        %v2035 = vunpack.c.l.b16 %v710
        %v2036 = vunpack.c.h.b16 %v710
        %v2037 = vunpack.c.l.b16 %v711
        %v2038 = vunpack.c.h.b16 %v711
        %v2039 = vunpack.c.l.b16 %v712
        %v2040 = vunpack.c.h.b16 %v712
        %v2041 = vunpack.c.l.b16 %v713
        %v2042 = vunpack.c.h.b16 %v713
        %v2043 = vunpack.c.l.b16 %v714
        %v2044 = vunpack.c.h.b16 %v714
        %v2045 = vunpack.c.l.b16 %v715
        %v2046 = vunpack.c.h.b16 %v715
        %v2047 = vunpack.c.l.b16 %v716
        %v2048 = vunpack.c.h.b16 %v716
        %v2049 = vunpack.c.l.b16 %v717
        %v2050 = vunpack.c.h.b16 %v717
        %v2051 = vunpack.c.l.b16 %v718
        %v2052 = vunpack.c.h.b16 %v718
        %v2053 = vunpack.c.l.b16 %v719
        %v2054 = vunpack.c.h.b16 %v719
        %v2055 = vunpack.c.l.b16 %v720
        %v2056 = vunpack.c.h.b16 %v720
        %v2057 = vunpack.c.l.b16 %v721
        %v2058 = vunpack.c.h.b16 %v721
        %v2059 = vunpack.c.l.b16 %v722
        %v2060 = vunpack.c.h.b16 %v722
        %v2061 = vunpack.c.l.b16 %v723
        %v2062 = vunpack.c.h.b16 %v723
        %v2063 = vunpack.c.l.b16 %v724
        %v2064 = vunpack.c.h.b16 %v724
        %v2065 = vunpack.c.l.b16 %v725
        %v2066 = vunpack.c.h.b16 %v725
        %v2067 = vunpack.c.l.b16 %v726
        %v2068 = vunpack.c.h.b16 %v726
        %v2069 = vunpack.c.l.b16 %v727
        %v2070 = vunpack.c.h.b16 %v727
        %v2071 = vunpack.c.l.b16 %v728
        %v2072 = vunpack.c.h.b16 %v728
        %v2073 = vunpack.c.l.b16 %v729
        %v2074 = vunpack.c.h.b16 %v729
        %v2075 = vunpack.c.l.b16 %v730
        %v2076 = vunpack.c.h.b16 %v730
        %v2077 = vunpack.c.l.b16 %v731
        %v2078 = vunpack.c.h.b16 %v731
        %v2079 = vunpack.c.l.b16 %v732
        %v2080 = vunpack.c.h.b16 %v732
        %v2081 = vunpack.c.l.b16 %v733
        %v2082 = vunpack.c.h.b16 %v733
        %v2083 = vunpack.c.l.b16 %v734
        %v2084 = vunpack.c.h.b16 %v734
        %v2085 = vunpack.c.l.b16 %v735
        %v2086 = vunpack.c.h.b16 %v735
        %v2087 = vunpack.c.l.b16 %v736
        %v2088 = vunpack.c.h.b16 %v736
        %v2089 = vunpack.c.l.b16 %v737
        %v2090 = vunpack.c.h.b16 %v737
        %v2091 = vunpack.c.l.b16 %v738
        %v2092 = vunpack.c.h.b16 %v738
        %v2093 = vunpack.c.l.b16 %v739
        %v2094 = vunpack.c.h.b16 %v739
        %v2095 = vunpack.c.l.b16 %v740
        %v2096 = vunpack.c.h.b16 %v740
        %v2097 = vunpack.c.l.b16 %v741
        %v2098 = vunpack.c.h.b16 %v741
        %v2099 = vunpack.c.l.b16 %v742
        %v2100 = vunpack.c.h.b16 %v742
        %v2101 = vunpack.c.l.b16 %v743
        %v2102 = vunpack.c.h.b16 %v743
        %v2103 = vunpack.c.l.b16 %v744
        %v2104 = vunpack.c.h.b16 %v744
        %v2105 = vunpack.c.l.b16 %v745
        %v2106 = vunpack.c.h.b16 %v745
        %v2107 = vunpack.c.l.b16 %v746
        %v2108 = vunpack.c.h.b16 %v746
        %v2109 = vunpack.c.l.b16 %v747
        %v2110 = vunpack.c.h.b16 %v747
        %v2111 = vunpack.c.l.b16 %v748
        %v2112 = vunpack.c.h.b16 %v748
        %v2113 = vunpack.c.l.b16 %v749
        %v2114 = vunpack.c.h.b16 %v749
        %v2115 = vunpack.c.l.b16 %v750
        %v2116 = vunpack.c.h.b16 %v750
        %v2117 = vunpack.c.l.b16 %v751
        %v2118 = vunpack.c.h.b16 %v751
        %v2119 = vunpack.c.l.b16 %v752
        %v2120 = vunpack.c.h.b16 %v752
        %v2121 = vunpack.c.l.b16 %v753
        %v2122 = vunpack.c.h.b16 %v753
        %v2123 = vunpack.c.l.b16 %v754
        %v2124 = vunpack.c.h.b16 %v754
        %v2125 = vunpack.c.l.b16 %v755
        %v2126 = vunpack.c.h.b16 %v755
        %v2127 = vunpack.c.l.b16 %v756
        %v2128 = vunpack.c.h.b16 %v756
        %v2129 = vunpack.c.l.b16 %v757
        %v2130 = vunpack.c.h.b16 %v757
        %v2131 = vunpack.c.l.b16 %v758
        %v2132 = vunpack.c.h.b16 %v758
        %v2133 = vunpack.c.l.b16 %v759
        %v2134 = vunpack.c.h.b16 %v759
        %v2135 = vunpack.c.l.b16 %v760
        %v2136 = vunpack.c.h.b16 %v760
        %v2137 = vunpack.c.l.b16 %v761
        %v2138 = vunpack.c.h.b16 %v761
        %v2139 = vunpack.c.l.b16 %v762
        %v2140 = vunpack.c.h.b16 %v762
        %v2141 = vunpack.c.l.b16 %v763
        %v2142 = vunpack.c.h.b16 %v763
        %v2143 = vunpack.c.l.b16 %v764
        %v2144 = vunpack.c.h.b16 %v764
        %v2145 = vunpack.c.l.b16 %v765
        %v2146 = vunpack.c.h.b16 %v765
        %v2147 = vunpack.c.l.b16 %v766
        %v2148 = vunpack.c.h.b16 %v766
        %v2149 = vunpack.c.l.b16 %v767
        %v2150 = vunpack.c.h.b16 %v767
        %v2151 = vunpack.c.l.b16 %v768
        %v2152 = vunpack.c.h.b16 %v768
        %v2153 = vunpack.c.l.b16 %v769
        %v2154 = vunpack.c.h.b16 %v769
        %v2155 = vunpack.c.l.b16 %v770
        %v2156 = vunpack.c.h.b16 %v770
        %v2157 = vunpack.c.l.b16 %v771
        %v2158 = vunpack.c.h.b16 %v771
        %v2159 = vunpack.c.l.b16 %v772
        %v2160 = vunpack.c.h.b16 %v772
        %v2161 = vunpack.c.l.b16 %v773
        %v2162 = vunpack.c.h.b16 %v773
        %v2163 = vunpack.c.l.b16 %v774
        %v2164 = vunpack.c.h.b16 %v774
        %v2165 = vunpack.c.l.b16 %v775
        %v2166 = vunpack.c.h.b16 %v775
        %v2167 = vunpack.c.l.b16 %v776
        %v2168 = vunpack.c.h.b16 %v776
        %v2169 = vunpack.c.l.b16 %v777
        %v2170 = vunpack.c.h.b16 %v777
        %v2171 = vunpack.c.l.b16 %v778
        %v2172 = vunpack.c.h.b16 %v778
        %v2173 = vunpack.c.l.b16 %v779
        %v2174 = vunpack.c.h.b16 %v779
        %v2175 = vunpack.c.l.b16 %v780
        %v2176 = vunpack.c.h.b16 %v780
        %v2177 = vunpack.c.l.b16 %v781
        %v2178 = vunpack.c.h.b16 %v781
        %v2179 = vunpack.c.l.b16 %v782
        %v2180 = vunpack.c.h.b16 %v782
        %v2181 = vunpack.c.l.b16 %v783
        %v2182 = vunpack.c.h.b16 %v783
        %v2183 = vunpack.c.l.b16 %v784
        %v2184 = vunpack.c.h.b16 %v784
        %v2185 = vunpack.c.l.b16 %v785
        %v2186 = vunpack.c.h.b16 %v785
        %v2187 = vunpack.c.l.b16 %v786
        %v2188 = vunpack.c.h.b16 %v786
        %v2189 = vunpack.c.l.b16 %v787
        %v2190 = vunpack.c.h.b16 %v787
        %v2191 = vunpack.c.l.b16 %v788
        %v2192 = vunpack.c.h.b16 %v788
        %v2193 = vunpack.c.l.b16 %v789
        %v2194 = vunpack.c.h.b16 %v789
        %v2195 = vunpack.c.l.b16 %v790
        %v2196 = vunpack.c.h.b16 %v790
        %v2197 = vunpack.c.l.b16 %v791
        %v2198 = vunpack.c.h.b16 %v791
        %v2199 = vunpack.c.l.b16 %v792
        %v2200 = vunpack.c.h.b16 %v792
        %v2201 = vunpack.c.l.b16 %v793
        %v2202 = vunpack.c.h.b16 %v793
        %v2203 = vunpack.c.l.b16 %v794
        %v2204 = vunpack.c.h.b16 %v794
        %v2205 = vunpack.c.l.b16 %v795
        %v2206 = vunpack.c.h.b16 %v795
        %v2207 = vunpack.c.l.b16 %v796
        %v2208 = vunpack.c.h.b16 %v796
        %v2209 = vunpack.c.l.b16 %v797
        %v2210 = vunpack.c.h.b16 %v797
        %v2211 = vunpack.c.l.b16 %v798
        %v2212 = vunpack.c.h.b16 %v798
        %v2213 = vunpack.c.l.b16 %v799
        %v2214 = vunpack.c.h.b16 %v799
        %v2215 = vunpack.c.l.b16 %v800
        %v2216 = vunpack.c.h.b16 %v800
        %v2217 = vunpack.c.l.b16 %v801
        %v2218 = vunpack.c.h.b16 %v801
        %v2219 = vunpack.c.l.b16 %v802
        %v2220 = vunpack.c.h.b16 %v802
        %v2221 = vunpack.c.l.b16 %v803
        %v2222 = vunpack.c.h.b16 %v803
        %v2223 = vunpack.c.l.b16 %v804
        %v2224 = vunpack.c.h.b16 %v804
        %v2225 = vunpack.c.l.b16 %v805
        %v2226 = vunpack.c.h.b16 %v805
        %v2227 = vunpack.c.l.b16 %v806
        %v2228 = vunpack.c.h.b16 %v806
        %v2229 = vunpack.c.l.b16 %v807
        %v2230 = vunpack.c.h.b16 %v807
        %v2231 = vunpack.c.l.b16 %v808
        %v2232 = vunpack.c.h.b16 %v808
        %v2233 = vunpack.c.l.b16 %v809
        %v2234 = vunpack.c.h.b16 %v809
        %v2235 = vunpack.c.l.b16 %v810
        %v2236 = vunpack.c.h.b16 %v810
        %v2237 = vunpack.c.l.b16 %v811
        %v2238 = vunpack.c.h.b16 %v811
        %v2239 = vunpack.c.l.b16 %v812
        %v2240 = vunpack.c.h.b16 %v812
        %v2241 = vunpack.c.l.b16 %v813
        %v2242 = vunpack.c.h.b16 %v813
        %v2243 = vunpack.c.l.b16 %v814
        %v2244 = vunpack.c.h.b16 %v814
        %v2245 = vunpack.c.l.b16 %v815
        %v2246 = vunpack.c.h.b16 %v815
        %v2247 = vunpack.c.l.b16 %v816
        %v2248 = vunpack.c.h.b16 %v816
        %v2249 = vunpack.c.l.b16 %v817
        %v2250 = vunpack.c.h.b16 %v817
        %v2251 = vunpack.c.l.b16 %v818
        %v2252 = vunpack.c.h.b16 %v818
        %v2253 = vunpack.c.l.b16 %v819
        %v2254 = vunpack.c.h.b16 %v819
        %v2255 = vunpack.c.l.b16 %v820
        %v2256 = vunpack.c.h.b16 %v820
        %v2257 = vunpack.c.l.b16 %v821
        %v2258 = vunpack.c.h.b16 %v821
        %v2259 = vunpack.c.l.b16 %v822
        %v2260 = vunpack.c.h.b16 %v822
        %v2261 = vunpack.c.l.b16 %v823
        %v2262 = vunpack.c.h.b16 %v823
        %v2263 = vunpack.c.l.b16 %v824
        %v2264 = vunpack.c.h.b16 %v824
        %v2265 = vunpack.c.l.b16 %v825
        %v2266 = vunpack.c.h.b16 %v825
        %v2267 = vunpack.c.l.b16 %v826
        %v2268 = vunpack.c.h.b16 %v826
        %v2269 = vunpack.c.l.b16 %v827
        %v2270 = vunpack.c.h.b16 %v827
        %v2271 = vunpack.c.l.b16 %v828
        %v2272 = vunpack.c.h.b16 %v828
        %v2273 = vunpack.c.l.b16 %v829
        %v2274 = vunpack.c.h.b16 %v829
        %v2275 = vunpack.c.l.b16 %v830
        %v2276 = vunpack.c.h.b16 %v830
        %v2277 = vunpack.c.l.b16 %v831
        %v2278 = vunpack.c.h.b16 %v831
        %v2279 = vunpack.c.l.b16 %v832
        %v2280 = vunpack.c.h.b16 %v832
        %v2281 = vunpack.c.l.b16 %v833
        %v2282 = vunpack.c.h.b16 %v833
        %v2283 = vunpack.c.l.b16 %v834
        %v2284 = vunpack.c.h.b16 %v834
        %v2285 = vunpack.c.l.b16 %v835
        %v2286 = vunpack.c.h.b16 %v835
        %v2287 = vunpack.c.l.b16 %v836
        %v2288 = vunpack.c.h.b16 %v836
        %v2289 = vunpack.c.l.b16 %v837
        %v2290 = vunpack.c.h.b16 %v837
        %v2291 = vunpack.c.l.b16 %v838
        %v2292 = vunpack.c.h.b16 %v838
        %v2293 = vunpack.c.l.b16 %v839
        %v2294 = vunpack.c.h.b16 %v839
        %v2295 = vunpack.c.l.b16 %v840
        %v2296 = vunpack.c.h.b16 %v840
        %v2297 = vunpack.c.l.b16 %v841
        %v2298 = vunpack.c.h.b16 %v841
        %v2299 = vunpack.c.l.b16 %v842
        %v2300 = vunpack.c.h.b16 %v842
        %v2301 = vunpack.c.l.b16 %v843
        %v2302 = vunpack.c.h.b16 %v843
        %v2303 = vunpack.c.l.b16 %v844
        %v2304 = vunpack.c.h.b16 %v844
        %v2305 = vunpack.c.l.b16 %v845
        %v2306 = vunpack.c.h.b16 %v845
        %v2307 = vunpack.c.l.b16 %v846
        %v2308 = vunpack.c.h.b16 %v846
        %v2309 = vunpack.c.l.b16 %v847
        %v2310 = vunpack.c.h.b16 %v847
        %v2311 = vunpack.c.l.b16 %v848
        %v2312 = vunpack.c.h.b16 %v848
        %v2313 = vunpack.c.l.b16 %v849
        %v2314 = vunpack.c.h.b16 %v849
        %v2315 = vunpack.c.l.b16 %v850
        %v2316 = vunpack.c.h.b16 %v850
        %v2317 = vunpack.c.l.b16 %v851
        %v2318 = vunpack.c.h.b16 %v851
        %v2319 = vunpack.c.l.b16 %v852
        %v2320 = vunpack.c.h.b16 %v852
        %v2321 = vunpack.c.l.b16 %v853
        %v2322 = vunpack.c.h.b16 %v853
        %v2323 = vunpack.c.l.b16 %v854
        %v2324 = vunpack.c.h.b16 %v854
        %v2325 = vunpack.c.l.b16 %v855
        %v2326 = vunpack.c.h.b16 %v855
        %v2327 = vunpack.c.l.b16 %v856
        %v2328 = vunpack.c.h.b16 %v856
        %v2329 = vunpack.c.l.b16 %v857
        %v2330 = vunpack.c.h.b16 %v857
        %v2331 = vunpack.c.l.b16 %v858
        %v2332 = vunpack.c.h.b16 %v858
        %v2333 = vunpack.c.l.b16 %v859
        %v2334 = vunpack.c.h.b16 %v859
        %v2335 = vunpack.c.l.b16 %v860
        %v2336 = vunpack.c.h.b16 %v860
        %v2337 = vunpack.c.l.b16 %v861
        %v2338 = vunpack.c.h.b16 %v861
        %v2339 = vunpack.c.l.b16 %v862
        %v2340 = vunpack.c.h.b16 %v862
        %v2341 = vunpack.c.l.b16 %v863
        %v2342 = vunpack.c.h.b16 %v863
        %v2343 = vunpack.c.l.b16 %v864
        %v2344 = vunpack.c.h.b16 %v864
        %v2345 = vunpack.c.l.b16 %v865
        %v2346 = vunpack.c.h.b16 %v865
        %v2347 = vunpack.c.l.b16 %v866
        %v2348 = vunpack.c.h.b16 %v866
        %v2349 = vunpack.c.l.b16 %v867
        %v2350 = vunpack.c.h.b16 %v867
        %v2351 = vunpack.c.l.b16 %v868
        %v2352 = vunpack.c.h.b16 %v868
        %v2353 = vunpack.c.l.b16 %v869
        %v2354 = vunpack.c.h.b16 %v869
        %v2355 = vunpack.c.l.b16 %v870
        %v2356 = vunpack.c.h.b16 %v870
        %v2357 = vunpack.c.l.b16 %v871
        %v2358 = vunpack.c.h.b16 %v871
        %v2359 = vunpack.c.l.b16 %v872
        %v2360 = vunpack.c.h.b16 %v872
        %v2361 = vunpack.c.l.b16 %v873
        %v2362 = vunpack.c.h.b16 %v873
        %v2363 = vunpack.c.l.b16 %v874
        %v2364 = vunpack.c.h.b16 %v874
        %v2365 = vunpack.c.l.b16 %v875
        %v2366 = vunpack.c.h.b16 %v875
        %v2367 = vunpack.c.l.b16 %v876
        %v2368 = vunpack.c.h.b16 %v876
        %v2369 = vunpack.c.l.b16 %v877
        %v2370 = vunpack.c.h.b16 %v877
        %v2371 = vunpack.c.l.b16 %v878
        %v2372 = vunpack.c.h.b16 %v878
        %v2373 = vunpack.c.l.b16 %v879
        %v2374 = vunpack.c.h.b16 %v879
        %v2375 = vunpack.c.l.b16 %v880
        %v2376 = vunpack.c.h.b16 %v880
        %v2377 = vunpack.c.l.b16 %v881
        %v2378 = vunpack.c.h.b16 %v881
        %v2379 = vunpack.c.l.b16 %v882
        %v2380 = vunpack.c.h.b16 %v882
        %v2381 = vunpack.c.l.b16 %v883
        %v2382 = vunpack.c.h.b16 %v883
        %v2383 = vunpack.c.l.b16 %v884
        %v2384 = vunpack.c.h.b16 %v884
        %v2385 = vunpack.c.l.b16 %v885
        %v2386 = vunpack.c.h.b16 %v885
        %v2387 = vunpack.c.l.b16 %v886
        %v2388 = vunpack.c.h.b16 %v886
        %v2389 = vunpack.c.l.b16 %v887
        %v2390 = vunpack.c.h.b16 %v887
        %v2391 = vunpack.c.l.b16 %v888
        %v2392 = vunpack.c.h.b16 %v888
        %v2393 = vunpack.c.l.b16 %v889
        %v2394 = vunpack.c.h.b16 %v889
        %v2395 = vunpack.c.l.b16 %v890
        %v2396 = vunpack.c.h.b16 %v890
        %v2397 = vunpack.c.l.b16 %v891
        %v2398 = vunpack.c.h.b16 %v891
        %v2399 = vunpack.c.l.b16 %v892
        %v2400 = vunpack.c.h.b16 %v892
        %v2401 = vunpack.c.l.b16 %v893
        %v2402 = vunpack.c.h.b16 %v893
        %v2403 = vunpack.c.l.b16 %v894
        %v2404 = vunpack.c.h.b16 %v894
        %v2405 = vunpack.c.l.b16 %v895
        %v2406 = vunpack.c.h.b16 %v895
        %v2407 = vunpack.c.l.b16 %v896
        %v2408 = vunpack.c.h.b16 %v896
        %v2409 = vunpack.c.l.b16 %v897
        %v2410 = vunpack.c.h.b16 %v897
        %v2411 = vunpack.c.l.b16 %v898
        %v2412 = vunpack.c.h.b16 %v898
        %v2413 = vunpack.c.l.b16 %v899
        %v2414 = vunpack.c.h.b16 %v899
        %v2415 = vunpack.c.l.b16 %v900
        %v2416 = vunpack.c.h.b16 %v900
        %v2417 = vunpack.c.l.b16 %v901
        %v2418 = vunpack.c.h.b16 %v901
        %v2419 = vunpack.c.l.b16 %v902
        %v2420 = vunpack.c.h.b16 %v902
        %v2421 = vunpack.c.l.b16 %v903
        %v2422 = vunpack.c.h.b16 %v903
        %v2423 = vunpack.c.l.b16 %v904
        %v2424 = vunpack.c.h.b16 %v904
        %v2425 = vunpack.c.l.b16 %v905
        %v2426 = vunpack.c.h.b16 %v905
        %v2427 = vunpack.c.l.b16 %v906
        %v2428 = vunpack.c.h.b16 %v906
        %v2429 = vunpack.c.l.b16 %v907
        %v2430 = vunpack.c.h.b16 %v907
        %v2431 = vunpack.c.l.b16 %v908
        %v2432 = vunpack.c.h.b16 %v908
        %v2433 = vunpack.c.l.b16 %v909
        %v2434 = vunpack.c.h.b16 %v909
        %v2435 = vunpack.c.l.b16 %v910
        %v2436 = vunpack.c.h.b16 %v910
        %v2437 = vunpack.c.l.b16 %v911
        %v2438 = vunpack.c.h.b16 %v911
        %v2439 = vunpack.c.l.b16 %v912
        %v2440 = vunpack.c.h.b16 %v912
        %v2441 = vunpack.c.l.b16 %v913
        %v2442 = vunpack.c.h.b16 %v913
        %v2443 = vunpack.c.l.b16 %v914
        %v2444 = vunpack.c.h.b16 %v914
        %v2445 = vunpack.c.l.b16 %v915
        %v2446 = vunpack.c.h.b16 %v915
        %v2447 = vunpack.c.l.b16 %v916
        %v2448 = vunpack.c.h.b16 %v916
        %v2449 = vunpack.c.l.b16 %v917
        %v2450 = vunpack.c.h.b16 %v917
        %v2451 = vunpack.c.l.b16 %v918
        %v2452 = vunpack.c.h.b16 %v918
        %v2453 = vunpack.c.l.b16 %v919
        %v2454 = vunpack.c.h.b16 %v919
        %v2455 = vunpack.c.l.b16 %v920
        %v2456 = vunpack.c.h.b16 %v920
        %v2457 = vpack.c.b16 %v1441, %v1433
        %v2458 = vpack.c.b16 %v1442, %v1434
        %v2459 = vpack.c.b16 %v1443, %v1435
        %v2460 = vpack.c.b16 %v1444, %v1436
        %v2461 = vpack.c.b16 %v1445, %v1437
        %v2462 = vpack.c.b16 %v1446, %v1438
        %v2463 = vpack.c.b16 %v1447, %v1439
        %v2464 = vpack.c.b16 %v1448, %v1440
        %v2465 = vpack.c.b16 %v1457, %v1449
        %v2466 = vpack.c.b16 %v1458, %v1450
        %v2467 = vpack.c.b16 %v1459, %v1451
        %v2468 = vpack.c.b16 %v1460, %v1452
        %v2469 = vpack.c.b16 %v1461, %v1453
        %v2470 = vpack.c.b16 %v1462, %v1454
        %v2471 = vpack.c.b16 %v1463, %v1455
        %v2472 = vpack.c.b16 %v1464, %v1456
        %v2473 = vpack.c.b16 %v1473, %v1465
        %v2474 = vpack.c.b16 %v1474, %v1466
        %v2475 = vpack.c.b16 %v1475, %v1467
        %v2476 = vpack.c.b16 %v1476, %v1468
        %v2477 = vpack.c.b16 %v1477, %v1469
        %v2478 = vpack.c.b16 %v1478, %v1470
        %v2479 = vpack.c.b16 %v1479, %v1471
        %v2480 = vpack.c.b16 %v1480, %v1472
        %v2481 = vpack.c.b16 %v1489, %v1481
        %v2482 = vpack.c.b16 %v1490, %v1482
        %v2483 = vpack.c.b16 %v1491, %v1483
        %v2484 = vpack.c.b16 %v1492, %v1484
        %v2485 = vpack.c.b16 %v1493, %v1485
        %v2486 = vpack.c.b16 %v1494, %v1486
        %v2487 = vpack.c.b16 %v1495, %v1487
        %v2488 = vpack.c.b16 %v1496, %v1488
        %v2489 = vpack.c.b16 %v1505, %v1497
        %v2490 = vpack.c.b16 %v1506, %v1498
        %v2491 = vpack.c.b16 %v1507, %v1499
        %v2492 = vpack.c.b16 %v1508, %v1500
        %v2493 = vpack.c.b16 %v1509, %v1501
        %v2494 = vpack.c.b16 %v1510, %v1502
        %v2495 = vpack.c.b16 %v1511, %v1503
        %v2496 = vpack.c.b16 %v1512, %v1504
        %v2497 = vpack.c.b16 %v1521, %v1513
        %v2498 = vpack.c.b16 %v1522, %v1514
        %v2499 = vpack.c.b16 %v1523, %v1515
        %v2500 = vpack.c.b16 %v1524, %v1516
        %v2501 = vpack.c.b16 %v1525, %v1517
        %v2502 = vpack.c.b16 %v1526, %v1518
        %v2503 = vpack.c.b16 %v1527, %v1519
        %v2504 = vpack.c.b16 %v1528, %v1520
        %v2505 = vpack.c.b16 %v1537, %v1529
        %v2506 = vpack.c.b16 %v1538, %v1530
        %v2507 = vpack.c.b16 %v1539, %v1531
        %v2508 = vpack.c.b16 %v1540, %v1532
        %v2509 = vpack.c.b16 %v1541, %v1533
        %v2510 = vpack.c.b16 %v1542, %v1534
        %v2511 = vpack.c.b16 %v1543, %v1535
        %v2512 = vpack.c.b16 %v1544, %v1536
        %v2513 = vpack.c.b16 %v1553, %v1545
        %v2514 = vpack.c.b16 %v1554, %v1546
        %v2515 = vpack.c.b16 %v1555, %v1547
        %v2516 = vpack.c.b16 %v1556, %v1548
        %v2517 = vpack.c.b16 %v1557, %v1549
        %v2518 = vpack.c.b16 %v1558, %v1550
        %v2519 = vpack.c.b16 %v1559, %v1551
        %v2520 = vpack.c.b16 %v1560, %v1552
        %v2521 = vpack.c.b16 %v1569, %v1561
        %v2522 = vpack.c.b16 %v1570, %v1562
        %v2523 = vpack.c.b16 %v1571, %v1563
        %v2524 = vpack.c.b16 %v1572, %v1564
        %v2525 = vpack.c.b16 %v1573, %v1565
        %v2526 = vpack.c.b16 %v1574, %v1566
        %v2527 = vpack.c.b16 %v1575, %v1567
        %v2528 = vpack.c.b16 %v1576, %v1568
        %v2529 = vpack.c.b16 %v1585, %v1577
        %v2530 = vpack.c.b16 %v1586, %v1578
        %v2531 = vpack.c.b16 %v1587, %v1579
        %v2532 = vpack.c.b16 %v1588, %v1580
        %v2533 = vpack.c.b16 %v1589, %v1581
        %v2534 = vpack.c.b16 %v1590, %v1582
        %v2535 = vpack.c.b16 %v1591, %v1583
        %v2536 = vpack.c.b16 %v1592, %v1584
        %v2537 = vpack.c.b16 %v1601, %v1593
        %v2538 = vpack.c.b16 %v1602, %v1594
        %v2539 = vpack.c.b16 %v1603, %v1595
        %v2540 = vpack.c.b16 %v1604, %v1596
        %v2541 = vpack.c.b16 %v1605, %v1597
        %v2542 = vpack.c.b16 %v1606, %v1598
        %v2543 = vpack.c.b16 %v1607, %v1599
        %v2544 = vpack.c.b16 %v1608, %v1600
        %v2545 = vpack.c.b16 %v1617, %v1609
        %v2546 = vpack.c.b16 %v1618, %v1610
        %v2547 = vpack.c.b16 %v1619, %v1611
        %v2548 = vpack.c.b16 %v1620, %v1612
        %v2549 = vpack.c.b16 %v1621, %v1613
        %v2550 = vpack.c.b16 %v1622, %v1614
        %v2551 = vpack.c.b16 %v1623, %v1615
        %v2552 = vpack.c.b16 %v1624, %v1616
        %v2553 = vpack.c.b16 %v1633, %v1625
        %v2554 = vpack.c.b16 %v1634, %v1626
        %v2555 = vpack.c.b16 %v1635, %v1627
        %v2556 = vpack.c.b16 %v1636, %v1628
        %v2557 = vpack.c.b16 %v1637, %v1629
        %v2558 = vpack.c.b16 %v1638, %v1630
        %v2559 = vpack.c.b16 %v1639, %v1631
        %v2560 = vpack.c.b16 %v1640, %v1632
        %v2561 = vpack.c.b16 %v1649, %v1641
        %v2562 = vpack.c.b16 %v1650, %v1642
        %v2563 = vpack.c.b16 %v1651, %v1643
        %v2564 = vpack.c.b16 %v1652, %v1644
        %v2565 = vpack.c.b16 %v1653, %v1645
        %v2566 = vpack.c.b16 %v1654, %v1646
        %v2567 = vpack.c.b16 %v1655, %v1647
        %v2568 = vpack.c.b16 %v1656, %v1648
        %v2569 = vpack.c.b16 %v1665, %v1657
        %v2570 = vpack.c.b16 %v1666, %v1658
        %v2571 = vpack.c.b16 %v1667, %v1659
        %v2572 = vpack.c.b16 %v1668, %v1660
        %v2573 = vpack.c.b16 %v1669, %v1661
        %v2574 = vpack.c.b16 %v1670, %v1662
        %v2575 = vpack.c.b16 %v1671, %v1663
        %v2576 = vpack.c.b16 %v1672, %v1664
        %v2577 = vpack.c.b16 %v1681, %v1673
        %v2578 = vpack.c.b16 %v1682, %v1674
        %v2579 = vpack.c.b16 %v1683, %v1675
        %v2580 = vpack.c.b16 %v1684, %v1676
        %v2581 = vpack.c.b16 %v1685, %v1677
        %v2582 = vpack.c.b16 %v1686, %v1678
        %v2583 = vpack.c.b16 %v1687, %v1679
        %v2584 = vpack.c.b16 %v1688, %v1680
        %v2585 = vpack.c.b16 %v1697, %v1689
        %v2586 = vpack.c.b16 %v1698, %v1690
        %v2587 = vpack.c.b16 %v1699, %v1691
        %v2588 = vpack.c.b16 %v1700, %v1692
        %v2589 = vpack.c.b16 %v1701, %v1693
        %v2590 = vpack.c.b16 %v1702, %v1694
        %v2591 = vpack.c.b16 %v1703, %v1695
        %v2592 = vpack.c.b16 %v1704, %v1696
        %v2593 = vpack.c.b16 %v1713, %v1705
        %v2594 = vpack.c.b16 %v1714, %v1706
        %v2595 = vpack.c.b16 %v1715, %v1707
        %v2596 = vpack.c.b16 %v1716, %v1708
        %v2597 = vpack.c.b16 %v1717, %v1709
        %v2598 = vpack.c.b16 %v1718, %v1710
        %v2599 = vpack.c.b16 %v1719, %v1711
        %v2600 = vpack.c.b16 %v1720, %v1712
        %v2601 = vpack.c.b16 %v1729, %v1721
        %v2602 = vpack.c.b16 %v1730, %v1722
        %v2603 = vpack.c.b16 %v1731, %v1723
        %v2604 = vpack.c.b16 %v1732, %v1724
        %v2605 = vpack.c.b16 %v1733, %v1725
        %v2606 = vpack.c.b16 %v1734, %v1726
        %v2607 = vpack.c.b16 %v1735, %v1727
        %v2608 = vpack.c.b16 %v1736, %v1728
        %v2609 = vpack.c.b16 %v1745, %v1737
        %v2610 = vpack.c.b16 %v1746, %v1738
        %v2611 = vpack.c.b16 %v1747, %v1739
        %v2612 = vpack.c.b16 %v1748, %v1740
        %v2613 = vpack.c.b16 %v1749, %v1741
        %v2614 = vpack.c.b16 %v1750, %v1742
        %v2615 = vpack.c.b16 %v1751, %v1743
        %v2616 = vpack.c.b16 %v1752, %v1744
        %v2617 = vpack.c.b16 %v1761, %v1753
        %v2618 = vpack.c.b16 %v1762, %v1754
        %v2619 = vpack.c.b16 %v1763, %v1755
        %v2620 = vpack.c.b16 %v1764, %v1756
        %v2621 = vpack.c.b16 %v1765, %v1757
        %v2622 = vpack.c.b16 %v1766, %v1758
        %v2623 = vpack.c.b16 %v1767, %v1759
        %v2624 = vpack.c.b16 %v1768, %v1760
        %v2625 = vpack.c.b16 %v1777, %v1769
        %v2626 = vpack.c.b16 %v1778, %v1770
        %v2627 = vpack.c.b16 %v1779, %v1771
        %v2628 = vpack.c.b16 %v1780, %v1772
        %v2629 = vpack.c.b16 %v1781, %v1773
        %v2630 = vpack.c.b16 %v1782, %v1774
        %v2631 = vpack.c.b16 %v1783, %v1775
        %v2632 = vpack.c.b16 %v1784, %v1776
        %v2633 = vpack.c.b16 %v1793, %v1785
        %v2634 = vpack.c.b16 %v1794, %v1786
        %v2635 = vpack.c.b16 %v1795, %v1787
        %v2636 = vpack.c.b16 %v1796, %v1788
        %v2637 = vpack.c.b16 %v1797, %v1789
        %v2638 = vpack.c.b16 %v1798, %v1790
        %v2639 = vpack.c.b16 %v1799, %v1791
        %v2640 = vpack.c.b16 %v1800, %v1792
        %v2641 = vpack.c.b16 %v1809, %v1801
        %v2642 = vpack.c.b16 %v1810, %v1802
        %v2643 = vpack.c.b16 %v1811, %v1803
        %v2644 = vpack.c.b16 %v1812, %v1804
        %v2645 = vpack.c.b16 %v1813, %v1805
        %v2646 = vpack.c.b16 %v1814, %v1806
        %v2647 = vpack.c.b16 %v1815, %v1807
        %v2648 = vpack.c.b16 %v1816, %v1808
        %v2649 = vpack.c.b16 %v1825, %v1817
        %v2650 = vpack.c.b16 %v1826, %v1818
        %v2651 = vpack.c.b16 %v1827, %v1819
        %v2652 = vpack.c.b16 %v1828, %v1820
        %v2653 = vpack.c.b16 %v1829, %v1821
        %v2654 = vpack.c.b16 %v1830, %v1822
        %v2655 = vpack.c.b16 %v1831, %v1823
        %v2656 = vpack.c.b16 %v1832, %v1824
        %v2657 = vpack.c.b16 %v1841, %v1833
        %v2658 = vpack.c.b16 %v1842, %v1834
        %v2659 = vpack.c.b16 %v1843, %v1835
        %v2660 = vpack.c.b16 %v1844, %v1836
        %v2661 = vpack.c.b16 %v1845, %v1837
        %v2662 = vpack.c.b16 %v1846, %v1838
        %v2663 = vpack.c.b16 %v1847, %v1839
        %v2664 = vpack.c.b16 %v1848, %v1840
        %v2665 = vpack.c.b16 %v1857, %v1849
        %v2666 = vpack.c.b16 %v1858, %v1850
        %v2667 = vpack.c.b16 %v1859, %v1851
        %v2668 = vpack.c.b16 %v1860, %v1852
        %v2669 = vpack.c.b16 %v1861, %v1853
        %v2670 = vpack.c.b16 %v1862, %v1854
        %v2671 = vpack.c.b16 %v1863, %v1855
        %v2672 = vpack.c.b16 %v1864, %v1856
        %v2673 = vpack.c.b16 %v1873, %v1865
        %v2674 = vpack.c.b16 %v1874, %v1866
        %v2675 = vpack.c.b16 %v1875, %v1867
        %v2676 = vpack.c.b16 %v1876, %v1868
        %v2677 = vpack.c.b16 %v1877, %v1869
        %v2678 = vpack.c.b16 %v1878, %v1870
        %v2679 = vpack.c.b16 %v1879, %v1871
        %v2680 = vpack.c.b16 %v1880, %v1872
        %v2681 = vpack.c.b16 %v1889, %v1881
        %v2682 = vpack.c.b16 %v1890, %v1882
        %v2683 = vpack.c.b16 %v1891, %v1883
        %v2684 = vpack.c.b16 %v1892, %v1884
        %v2685 = vpack.c.b16 %v1893, %v1885
        %v2686 = vpack.c.b16 %v1894, %v1886
        %v2687 = vpack.c.b16 %v1895, %v1887
        %v2688 = vpack.c.b16 %v1896, %v1888
        %v2689 = vpack.c.b16 %v1905, %v1897
        %v2690 = vpack.c.b16 %v1906, %v1898
        %v2691 = vpack.c.b16 %v1907, %v1899
        %v2692 = vpack.c.b16 %v1908, %v1900
        %v2693 = vpack.c.b16 %v1909, %v1901
        %v2694 = vpack.c.b16 %v1910, %v1902
        %v2695 = vpack.c.b16 %v1911, %v1903
        %v2696 = vpack.c.b16 %v1912, %v1904
        %v2697 = vpack.c.b16 %v1921, %v1913
        %v2698 = vpack.c.b16 %v1922, %v1914
        %v2699 = vpack.c.b16 %v1923, %v1915
        %v2700 = vpack.c.b16 %v1924, %v1916
        %v2701 = vpack.c.b16 %v1925, %v1917
        %v2702 = vpack.c.b16 %v1926, %v1918
        %v2703 = vpack.c.b16 %v1927, %v1919
        %v2704 = vpack.c.b16 %v1928, %v1920
        %v2705 = vpack.c.b16 %v1937, %v1929
        %v2706 = vpack.c.b16 %v1938, %v1930
        %v2707 = vpack.c.b16 %v1939, %v1931
        %v2708 = vpack.c.b16 %v1940, %v1932
        %v2709 = vpack.c.b16 %v1941, %v1933
        %v2710 = vpack.c.b16 %v1942, %v1934
        %v2711 = vpack.c.b16 %v1943, %v1935
        %v2712 = vpack.c.b16 %v1944, %v1936
        %v2713 = vpack.c.b16 %v1953, %v1945
        %v2714 = vpack.c.b16 %v1954, %v1946
        %v2715 = vpack.c.b16 %v1955, %v1947
        %v2716 = vpack.c.b16 %v1956, %v1948
        %v2717 = vpack.c.b16 %v1957, %v1949
        %v2718 = vpack.c.b16 %v1958, %v1950
        %v2719 = vpack.c.b16 %v1959, %v1951
        %v2720 = vpack.c.b16 %v1960, %v1952
        %v2721 = vpack.c.b16 %v1969, %v1961
        %v2722 = vpack.c.b16 %v1970, %v1962
        %v2723 = vpack.c.b16 %v1971, %v1963
        %v2724 = vpack.c.b16 %v1972, %v1964
        %v2725 = vpack.c.b16 %v1973, %v1965
        %v2726 = vpack.c.b16 %v1974, %v1966
        %v2727 = vpack.c.b16 %v1975, %v1967
        %v2728 = vpack.c.b16 %v1976, %v1968
        %v2729 = vpack.c.b16 %v1985, %v1977
        %v2730 = vpack.c.b16 %v1986, %v1978
        %v2731 = vpack.c.b16 %v1987, %v1979
        %v2732 = vpack.c.b16 %v1988, %v1980
        %v2733 = vpack.c.b16 %v1989, %v1981
        %v2734 = vpack.c.b16 %v1990, %v1982
        %v2735 = vpack.c.b16 %v1991, %v1983
        %v2736 = vpack.c.b16 %v1992, %v1984
        %v2737 = vpack.c.b16 %v2001, %v1993
        %v2738 = vpack.c.b16 %v2002, %v1994
        %v2739 = vpack.c.b16 %v2003, %v1995
        %v2740 = vpack.c.b16 %v2004, %v1996
        %v2741 = vpack.c.b16 %v2005, %v1997
        %v2742 = vpack.c.b16 %v2006, %v1998
        %v2743 = vpack.c.b16 %v2007, %v1999
        %v2744 = vpack.c.b16 %v2008, %v2000
        %v2745 = vpack.c.b16 %v2017, %v2009
        %v2746 = vpack.c.b16 %v2018, %v2010
        %v2747 = vpack.c.b16 %v2019, %v2011
        %v2748 = vpack.c.b16 %v2020, %v2012
        %v2749 = vpack.c.b16 %v2021, %v2013
        %v2750 = vpack.c.b16 %v2022, %v2014
        %v2751 = vpack.c.b16 %v2023, %v2015
        %v2752 = vpack.c.b16 %v2024, %v2016
        %v2753 = vpack.c.b16 %v2033, %v2025
        %v2754 = vpack.c.b16 %v2034, %v2026
        %v2755 = vpack.c.b16 %v2035, %v2027
        %v2756 = vpack.c.b16 %v2036, %v2028
        %v2757 = vpack.c.b16 %v2037, %v2029
        %v2758 = vpack.c.b16 %v2038, %v2030
        %v2759 = vpack.c.b16 %v2039, %v2031
        %v2760 = vpack.c.b16 %v2040, %v2032
        %v2761 = vpack.c.b16 %v2049, %v2041
        %v2762 = vpack.c.b16 %v2050, %v2042
        %v2763 = vpack.c.b16 %v2051, %v2043
        %v2764 = vpack.c.b16 %v2052, %v2044
        %v2765 = vpack.c.b16 %v2053, %v2045
        %v2766 = vpack.c.b16 %v2054, %v2046
        %v2767 = vpack.c.b16 %v2055, %v2047
        %v2768 = vpack.c.b16 %v2056, %v2048
        %v2769 = vpack.c.b16 %v2065, %v2057
        %v2770 = vpack.c.b16 %v2066, %v2058
        %v2771 = vpack.c.b16 %v2067, %v2059
        %v2772 = vpack.c.b16 %v2068, %v2060
        %v2773 = vpack.c.b16 %v2069, %v2061
        %v2774 = vpack.c.b16 %v2070, %v2062
        %v2775 = vpack.c.b16 %v2071, %v2063
        %v2776 = vpack.c.b16 %v2072, %v2064
        %v2777 = vpack.c.b16 %v2081, %v2073
        %v2778 = vpack.c.b16 %v2082, %v2074
        %v2779 = vpack.c.b16 %v2083, %v2075
        %v2780 = vpack.c.b16 %v2084, %v2076
        %v2781 = vpack.c.b16 %v2085, %v2077
        %v2782 = vpack.c.b16 %v2086, %v2078
        %v2783 = vpack.c.b16 %v2087, %v2079
        %v2784 = vpack.c.b16 %v2088, %v2080
        %v2785 = vpack.c.b16 %v2097, %v2089
        %v2786 = vpack.c.b16 %v2098, %v2090
        %v2787 = vpack.c.b16 %v2099, %v2091
        %v2788 = vpack.c.b16 %v2100, %v2092
        %v2789 = vpack.c.b16 %v2101, %v2093
        %v2790 = vpack.c.b16 %v2102, %v2094
        %v2791 = vpack.c.b16 %v2103, %v2095
        %v2792 = vpack.c.b16 %v2104, %v2096
        %v2793 = vpack.c.b16 %v2113, %v2105
        %v2794 = vpack.c.b16 %v2114, %v2106
        %v2795 = vpack.c.b16 %v2115, %v2107
        %v2796 = vpack.c.b16 %v2116, %v2108
        %v2797 = vpack.c.b16 %v2117, %v2109
        %v2798 = vpack.c.b16 %v2118, %v2110
        %v2799 = vpack.c.b16 %v2119, %v2111
        %v2800 = vpack.c.b16 %v2120, %v2112
        %v2801 = vpack.c.b16 %v2129, %v2121
        %v2802 = vpack.c.b16 %v2130, %v2122
        %v2803 = vpack.c.b16 %v2131, %v2123
        %v2804 = vpack.c.b16 %v2132, %v2124
        %v2805 = vpack.c.b16 %v2133, %v2125
        %v2806 = vpack.c.b16 %v2134, %v2126
        %v2807 = vpack.c.b16 %v2135, %v2127
        %v2808 = vpack.c.b16 %v2136, %v2128
        %v2809 = vpack.c.b16 %v2145, %v2137
        %v2810 = vpack.c.b16 %v2146, %v2138
        %v2811 = vpack.c.b16 %v2147, %v2139
        %v2812 = vpack.c.b16 %v2148, %v2140
        %v2813 = vpack.c.b16 %v2149, %v2141
        %v2814 = vpack.c.b16 %v2150, %v2142
        %v2815 = vpack.c.b16 %v2151, %v2143
        %v2816 = vpack.c.b16 %v2152, %v2144
        %v2817 = vpack.c.b16 %v2161, %v2153
        %v2818 = vpack.c.b16 %v2162, %v2154
        %v2819 = vpack.c.b16 %v2163, %v2155
        %v2820 = vpack.c.b16 %v2164, %v2156
        %v2821 = vpack.c.b16 %v2165, %v2157
        %v2822 = vpack.c.b16 %v2166, %v2158
        %v2823 = vpack.c.b16 %v2167, %v2159
        %v2824 = vpack.c.b16 %v2168, %v2160
        %v2825 = vpack.c.b16 %v2177, %v2169
        %v2826 = vpack.c.b16 %v2178, %v2170
        %v2827 = vpack.c.b16 %v2179, %v2171
        %v2828 = vpack.c.b16 %v2180, %v2172
        %v2829 = vpack.c.b16 %v2181, %v2173
        %v2830 = vpack.c.b16 %v2182, %v2174
        %v2831 = vpack.c.b16 %v2183, %v2175
        %v2832 = vpack.c.b16 %v2184, %v2176
        %v2833 = vpack.c.b16 %v2193, %v2185
        %v2834 = vpack.c.b16 %v2194, %v2186
        %v2835 = vpack.c.b16 %v2195, %v2187
        %v2836 = vpack.c.b16 %v2196, %v2188
        %v2837 = vpack.c.b16 %v2197, %v2189
        %v2838 = vpack.c.b16 %v2198, %v2190
        %v2839 = vpack.c.b16 %v2199, %v2191
        %v2840 = vpack.c.b16 %v2200, %v2192
        %v2841 = vpack.c.b16 %v2209, %v2201
        %v2842 = vpack.c.b16 %v2210, %v2202
        %v2843 = vpack.c.b16 %v2211, %v2203
        %v2844 = vpack.c.b16 %v2212, %v2204
        %v2845 = vpack.c.b16 %v2213, %v2205
        %v2846 = vpack.c.b16 %v2214, %v2206
        %v2847 = vpack.c.b16 %v2215, %v2207
        %v2848 = vpack.c.b16 %v2216, %v2208
        %v2849 = vpack.c.b16 %v2225, %v2217
        %v2850 = vpack.c.b16 %v2226, %v2218
        %v2851 = vpack.c.b16 %v2227, %v2219
        %v2852 = vpack.c.b16 %v2228, %v2220
        %v2853 = vpack.c.b16 %v2229, %v2221
        %v2854 = vpack.c.b16 %v2230, %v2222
        %v2855 = vpack.c.b16 %v2231, %v2223
        %v2856 = vpack.c.b16 %v2232, %v2224
        %v2857 = vpack.c.b16 %v2241, %v2233
        %v2858 = vpack.c.b16 %v2242, %v2234
        %v2859 = vpack.c.b16 %v2243, %v2235
        %v2860 = vpack.c.b16 %v2244, %v2236
        %v2861 = vpack.c.b16 %v2245, %v2237
        %v2862 = vpack.c.b16 %v2246, %v2238
        %v2863 = vpack.c.b16 %v2247, %v2239
        %v2864 = vpack.c.b16 %v2248, %v2240
        %v2865 = vpack.c.b16 %v2257, %v2249
        %v2866 = vpack.c.b16 %v2258, %v2250
        %v2867 = vpack.c.b16 %v2259, %v2251
        %v2868 = vpack.c.b16 %v2260, %v2252
        %v2869 = vpack.c.b16 %v2261, %v2253
        %v2870 = vpack.c.b16 %v2262, %v2254
        %v2871 = vpack.c.b16 %v2263, %v2255
        %v2872 = vpack.c.b16 %v2264, %v2256
        %v2873 = vpack.c.b16 %v2273, %v2265
        %v2874 = vpack.c.b16 %v2274, %v2266
        %v2875 = vpack.c.b16 %v2275, %v2267
        %v2876 = vpack.c.b16 %v2276, %v2268
        %v2877 = vpack.c.b16 %v2277, %v2269
        %v2878 = vpack.c.b16 %v2278, %v2270
        %v2879 = vpack.c.b16 %v2279, %v2271
        %v2880 = vpack.c.b16 %v2280, %v2272
        %v2881 = vpack.c.b16 %v2289, %v2281
        %v2882 = vpack.c.b16 %v2290, %v2282
        %v2883 = vpack.c.b16 %v2291, %v2283
        %v2884 = vpack.c.b16 %v2292, %v2284
        %v2885 = vpack.c.b16 %v2293, %v2285
        %v2886 = vpack.c.b16 %v2294, %v2286
        %v2887 = vpack.c.b16 %v2295, %v2287
        %v2888 = vpack.c.b16 %v2296, %v2288
        %v2889 = vpack.c.b16 %v2305, %v2297
        %v2890 = vpack.c.b16 %v2306, %v2298
        %v2891 = vpack.c.b16 %v2307, %v2299
        %v2892 = vpack.c.b16 %v2308, %v2300
        %v2893 = vpack.c.b16 %v2309, %v2301
        %v2894 = vpack.c.b16 %v2310, %v2302
        %v2895 = vpack.c.b16 %v2311, %v2303
        %v2896 = vpack.c.b16 %v2312, %v2304
        %v2897 = vpack.c.b16 %v2321, %v2313
        %v2898 = vpack.c.b16 %v2322, %v2314
        %v2899 = vpack.c.b16 %v2323, %v2315
        %v2900 = vpack.c.b16 %v2324, %v2316
        %v2901 = vpack.c.b16 %v2325, %v2317
        %v2902 = vpack.c.b16 %v2326, %v2318
        %v2903 = vpack.c.b16 %v2327, %v2319
        %v2904 = vpack.c.b16 %v2328, %v2320
        %v2905 = vpack.c.b16 %v2337, %v2329
        %v2906 = vpack.c.b16 %v2338, %v2330
        %v2907 = vpack.c.b16 %v2339, %v2331
        %v2908 = vpack.c.b16 %v2340, %v2332
        %v2909 = vpack.c.b16 %v2341, %v2333
        %v2910 = vpack.c.b16 %v2342, %v2334
        %v2911 = vpack.c.b16 %v2343, %v2335
        %v2912 = vpack.c.b16 %v2344, %v2336
        %v2913 = vpack.c.b16 %v2353, %v2345
        %v2914 = vpack.c.b16 %v2354, %v2346
        %v2915 = vpack.c.b16 %v2355, %v2347
        %v2916 = vpack.c.b16 %v2356, %v2348
        %v2917 = vpack.c.b16 %v2357, %v2349
        %v2918 = vpack.c.b16 %v2358, %v2350
        %v2919 = vpack.c.b16 %v2359, %v2351
        %v2920 = vpack.c.b16 %v2360, %v2352
        %v2921 = vpack.c.b16 %v2369, %v2361
        %v2922 = vpack.c.b16 %v2370, %v2362
        %v2923 = vpack.c.b16 %v2371, %v2363
        %v2924 = vpack.c.b16 %v2372, %v2364
        %v2925 = vpack.c.b16 %v2373, %v2365
        %v2926 = vpack.c.b16 %v2374, %v2366
        %v2927 = vpack.c.b16 %v2375, %v2367
        %v2928 = vpack.c.b16 %v2376, %v2368
        %v2929 = vpack.c.b16 %v2385, %v2377
        %v2930 = vpack.c.b16 %v2386, %v2378
        %v2931 = vpack.c.b16 %v2387, %v2379
        %v2932 = vpack.c.b16 %v2388, %v2380
        %v2933 = vpack.c.b16 %v2389, %v2381
        %v2934 = vpack.c.b16 %v2390, %v2382
        %v2935 = vpack.c.b16 %v2391, %v2383
        %v2936 = vpack.c.b16 %v2392, %v2384
        %v2937 = vpack.c.b16 %v2401, %v2393
        %v2938 = vpack.c.b16 %v2402, %v2394
        %v2939 = vpack.c.b16 %v2403, %v2395
        %v2940 = vpack.c.b16 %v2404, %v2396
        %v2941 = vpack.c.b16 %v2405, %v2397
        %v2942 = vpack.c.b16 %v2406, %v2398
        %v2943 = vpack.c.b16 %v2407, %v2399
        %v2944 = vpack.c.b16 %v2408, %v2400
        %v2945 = vpack.c.b16 %v2417, %v2409
        %v2946 = vpack.c.b16 %v2418, %v2410
        %v2947 = vpack.c.b16 %v2419, %v2411
        %v2948 = vpack.c.b16 %v2420, %v2412
        %v2949 = vpack.c.b16 %v2421, %v2413
        %v2950 = vpack.c.b16 %v2422, %v2414
        %v2951 = vpack.c.b16 %v2423, %v2415
        %v2952 = vpack.c.b16 %v2424, %v2416
        %v2953 = vpack.c.b16 %v2433, %v2425
        %v2954 = vpack.c.b16 %v2434, %v2426
        %v2955 = vpack.c.b16 %v2435, %v2427
        %v2956 = vpack.c.b16 %v2436, %v2428
        %v2957 = vpack.c.b16 %v2437, %v2429
        %v2958 = vpack.c.b16 %v2438, %v2430
        %v2959 = vpack.c.b16 %v2439, %v2431
        %v2960 = vpack.c.b16 %v2440, %v2432
        %v2961 = vpack.c.b16 %v2449, %v2441
        %v2962 = vpack.c.b16 %v2450, %v2442
        %v2963 = vpack.c.b16 %v2451, %v2443
        %v2964 = vpack.c.b16 %v2452, %v2444
        %v2965 = vpack.c.b16 %v2453, %v2445
        %v2966 = vpack.c.b16 %v2454, %v2446
        %v2967 = vpack.c.b16 %v2455, %v2447
        %v2968 = vpack.c.b16 %v2456, %v2448
        %3481 = vmatprep.subr.bf16.mxu0 %v2514
        %3482 = vmatpush1.bf16.msra.mxu0 %v2513
        %3483 = vmatprep.subr.bf16.mxu0 %v2506
        %3484 = vmatpush1.bf16.msra.mxu0 %v2505
        %3485 = vmatprep.subr.bf16.mxu0 %v2498
        %3486 = vmatpush1.bf16.msra.mxu0 %v2497
        %3487 = vmatprep.subr.bf16.mxu0 %v2490
        %3488 = vmatpush1.bf16.msra.mxu0 %v2489
        %3489 = vmatprep.subr.bf16.mxu0 %v2482
        %3490 = vmatpush1.bf16.msra.mxu0 %v2481
        %3491 = vmatprep.subr.bf16.mxu0 %v2474
        %3492 = vmatpush1.bf16.msra.mxu0 %v2473
        %3493 = vmatprep.subr.bf16.mxu0 %v2466
        %3494 = vmatpush1.bf16.msra.mxu0 %v2465
        %3495 = vmatprep.subr.bf16.mxu0 %v2458
        %3496 = vmatpush1.bf16.msra.mxu0 %v2457
        %3497 = vmatprep.subr.bf16.mxu0 %v2578
        %3498 = vmatpush2.bf16.msra.mxu0 %v2577
        %3499 = vmatprep.subr.bf16.mxu0 %v2570
        %3500 = vmatpush2.bf16.msra.mxu0 %v2569
        %3501 = vmatprep.subr.bf16.mxu0 %v2562
        %3502 = vmatpush2.bf16.msra.mxu0 %v2561
        %3503 = vmatprep.subr.bf16.mxu0 %v2554
        %3504 = vmatpush2.bf16.msra.mxu0 %v2553
        %3505 = vmatprep.subr.bf16.mxu0 %v2546
        %3506 = vmatpush2.bf16.msra.mxu0 %v2545
        %3507 = vmatprep.subr.bf16.mxu0 %v2538
        %3508 = vmatpush2.bf16.msra.mxu0 %v2537
        %3509 = vmatprep.subr.bf16.mxu0 %v2530
        %3510 = vmatpush2.bf16.msra.mxu0 %v2529
        %3511 = vmatprep.subr.bf16.mxu0 %v2522
        %3512 = vmatpush2.bf16.msra.mxu0 %v2521
        %3513 = vmatprep.mubr.bf16.mxu0 %v402
        %3514 = vmatmul.mubr.bf16.gmra.mxu0 %v401
        %v3515 = vpop.f32.mrf.mxu0
        %v3516 = vadd.f32 0.0, %v3515
        %v3517 = vpop.f32.mrf.mxu0
        %v3518 = vadd.f32 0.0, %v3517
        %v3519 = vpop.f32.mrf.mxu0
        %v3520 = vpop.f32.mrf.mxu0
        %3521 = vdwg.mxu0
        %3522 = vmatprep.subr.bf16.mxu0 %v2642
        %3523 = vmatpush1.bf16.msra.mxu0 %v2641
        %3524 = vmatprep.subr.bf16.mxu0 %v2634
        %3525 = vmatpush1.bf16.msra.mxu0 %v2633
        %3526 = vmatprep.subr.bf16.mxu0 %v2626
        %3527 = vmatpush1.bf16.msra.mxu0 %v2625
        %3528 = vmatprep.subr.bf16.mxu0 %v2618
        %3529 = vmatpush1.bf16.msra.mxu0 %v2617
        %3530 = vmatprep.subr.bf16.mxu0 %v2610
        %3531 = vmatpush1.bf16.msra.mxu0 %v2609
        %3532 = vmatprep.subr.bf16.mxu0 %v2602
        %3533 = vmatpush1.bf16.msra.mxu0 %v2601
        %3534 = vmatprep.subr.bf16.mxu0 %v2594
        %3535 = vmatpush1.bf16.msra.mxu0 %v2593
        %3536 = vmatprep.subr.bf16.mxu0 %v2586
        %3537 = vmatpush1.bf16.msra.mxu0 %v2585
        %3538 = vmatprep.subr.bf16.mxu0 %v2706
        %3539 = vmatpush2.bf16.msra.mxu0 %v2705
        %3540 = vmatprep.subr.bf16.mxu0 %v2698
        %3541 = vmatpush2.bf16.msra.mxu0 %v2697
        %3542 = vmatprep.subr.bf16.mxu0 %v2690
        %3543 = vmatpush2.bf16.msra.mxu0 %v2689
        %3544 = vmatprep.subr.bf16.mxu0 %v2682
        %3545 = vmatpush2.bf16.msra.mxu0 %v2681
        %3546 = vmatprep.subr.bf16.mxu0 %v2674
        %3547 = vmatpush2.bf16.msra.mxu0 %v2673
        %3548 = vmatprep.subr.bf16.mxu0 %v2666
        %3549 = vmatpush2.bf16.msra.mxu0 %v2665
        %3550 = vmatprep.subr.bf16.mxu0 %v2658
        %3551 = vmatpush2.bf16.msra.mxu0 %v2657
        %3552 = vmatprep.subr.bf16.mxu0 %v2650
        %3553 = vmatpush2.bf16.msra.mxu0 %v2649
        %3554 = vmatprep.mubr.bf16.mxu0 %v404
        %3555 = vmatmul.mubr.bf16.gmra.mxu0 %v403
        %v3556 = vpop.f32.mrf.mxu0
        %v3557 = vadd.f32 %v3516, %v3556
        %v3558 = vpop.f32.mrf.mxu0
        %v3559 = vadd.f32 %v3518, %v3558
        %v3560 = vpop.f32.mrf.mxu0
        %v3561 = vpop.f32.mrf.mxu0
        %3562 = vdwg.mxu0
        %3563 = vmatprep.subr.bf16.mxu0 %v2770
        %3564 = vmatpush1.bf16.msra.mxu0 %v2769
        %3565 = vmatprep.subr.bf16.mxu0 %v2762
        %3566 = vmatpush1.bf16.msra.mxu0 %v2761
        %3567 = vmatprep.subr.bf16.mxu0 %v2754
        %3568 = vmatpush1.bf16.msra.mxu0 %v2753
        %3569 = vmatprep.subr.bf16.mxu0 %v2746
        %3570 = vmatpush1.bf16.msra.mxu0 %v2745
        %3571 = vmatprep.subr.bf16.mxu0 %v2738
        %3572 = vmatpush1.bf16.msra.mxu0 %v2737
        %3573 = vmatprep.subr.bf16.mxu0 %v2730
        %3574 = vmatpush1.bf16.msra.mxu0 %v2729
        %3575 = vmatprep.subr.bf16.mxu0 %v2722
        %3576 = vmatpush1.bf16.msra.mxu0 %v2721
        %3577 = vmatprep.subr.bf16.mxu0 %v2714
        %3578 = vmatpush1.bf16.msra.mxu0 %v2713
        %3579 = vmatprep.subr.bf16.mxu0 %v2834
        %3580 = vmatpush2.bf16.msra.mxu0 %v2833
        %3581 = vmatprep.subr.bf16.mxu0 %v2826
        %3582 = vmatpush2.bf16.msra.mxu0 %v2825
        %3583 = vmatprep.subr.bf16.mxu0 %v2818
        %3584 = vmatpush2.bf16.msra.mxu0 %v2817
        %3585 = vmatprep.subr.bf16.mxu0 %v2810
        %3586 = vmatpush2.bf16.msra.mxu0 %v2809
        %3587 = vmatprep.subr.bf16.mxu0 %v2802
        %3588 = vmatpush2.bf16.msra.mxu0 %v2801
        %3589 = vmatprep.subr.bf16.mxu0 %v2794
        %3590 = vmatpush2.bf16.msra.mxu0 %v2793
        %3591 = vmatprep.subr.bf16.mxu0 %v2786
        %3592 = vmatpush2.bf16.msra.mxu0 %v2785
        %3593 = vmatprep.subr.bf16.mxu0 %v2778
        %3594 = vmatpush2.bf16.msra.mxu0 %v2777
        %3595 = vmatprep.mubr.bf16.mxu0 %v406
        %3596 = vmatmul.mubr.bf16.gmra.mxu0 %v405
        %v3597 = vpop.f32.mrf.mxu0
        %v3598 = vadd.f32 %v3557, %v3597
        %v3599 = vpop.f32.mrf.mxu0
        %v3600 = vadd.f32 %v3559, %v3599
        %v3601 = vpop.f32.mrf.mxu0
        %v3602 = vpop.f32.mrf.mxu0
        %3603 = vdwg.mxu0
        %3604 = vmatprep.subr.bf16.mxu0 %v2898
        %3605 = vmatpush1.bf16.msra.mxu0 %v2897
        %3606 = vmatprep.subr.bf16.mxu0 %v2890
        %3607 = vmatpush1.bf16.msra.mxu0 %v2889
        %3608 = vmatprep.subr.bf16.mxu0 %v2882
        %3609 = vmatpush1.bf16.msra.mxu0 %v2881
        %3610 = vmatprep.subr.bf16.mxu0 %v2874
        %3611 = vmatpush1.bf16.msra.mxu0 %v2873
        %3612 = vmatprep.subr.bf16.mxu0 %v2866
        %3613 = vmatpush1.bf16.msra.mxu0 %v2865
        %3614 = vmatprep.subr.bf16.mxu0 %v2858
        %3615 = vmatpush1.bf16.msra.mxu0 %v2857
        %3616 = vmatprep.subr.bf16.mxu0 %v2850
        %3617 = vmatpush1.bf16.msra.mxu0 %v2849
        %3618 = vmatprep.subr.bf16.mxu0 %v2842
        %3619 = vmatpush1.bf16.msra.mxu0 %v2841
        %3620 = vmatprep.subr.bf16.mxu0 %v2962
        %3621 = vmatpush2.bf16.msra.mxu0 %v2961
        %3622 = vmatprep.subr.bf16.mxu0 %v2954
        %3623 = vmatpush2.bf16.msra.mxu0 %v2953
        %3624 = vmatprep.subr.bf16.mxu0 %v2946
        %3625 = vmatpush2.bf16.msra.mxu0 %v2945
        %3626 = vmatprep.subr.bf16.mxu0 %v2938
        %3627 = vmatpush2.bf16.msra.mxu0 %v2937
        %3628 = vmatprep.subr.bf16.mxu0 %v2930
        %3629 = vmatpush2.bf16.msra.mxu0 %v2929
        %3630 = vmatprep.subr.bf16.mxu0 %v2922
        %3631 = vmatpush2.bf16.msra.mxu0 %v2921
        %3632 = vmatprep.subr.bf16.mxu0 %v2914
        %3633 = vmatpush2.bf16.msra.mxu0 %v2913
        %3634 = vmatprep.subr.bf16.mxu0 %v2906
        %3635 = vmatpush2.bf16.msra.mxu0 %v2905
        %3636 = vmatprep.mubr.bf16.mxu0 %v408
        %3637 = vmatmul.mubr.bf16.gmra.mxu0 %v407
        %v3638 = vpop.f32.mrf.mxu0
        %v3639 = vadd.f32 %v3598, %v3638
        %v3640 = vpop.f32.mrf.mxu0
        %v3641 = vadd.f32 %v3600, %v3640
        %v3642 = vpop.f32.mrf.mxu0
        %v3643 = vpop.f32.mrf.mxu0
        %3644 = vdwg.mxu0
        %3645 = vmatprep.subr.bf16.mxu0 %v2516
        %3646 = vmatpush1.bf16.msra.mxu0 %v2515
        %3647 = vmatprep.subr.bf16.mxu0 %v2508
        %3648 = vmatpush1.bf16.msra.mxu0 %v2507
        %3649 = vmatprep.subr.bf16.mxu0 %v2500
        %3650 = vmatpush1.bf16.msra.mxu0 %v2499
        %3651 = vmatprep.subr.bf16.mxu0 %v2492
        %3652 = vmatpush1.bf16.msra.mxu0 %v2491
        %3653 = vmatprep.subr.bf16.mxu0 %v2484
        %3654 = vmatpush1.bf16.msra.mxu0 %v2483
        %3655 = vmatprep.subr.bf16.mxu0 %v2476
        %3656 = vmatpush1.bf16.msra.mxu0 %v2475
        %3657 = vmatprep.subr.bf16.mxu0 %v2468
        %3658 = vmatpush1.bf16.msra.mxu0 %v2467
        %3659 = vmatprep.subr.bf16.mxu0 %v2460
        %3660 = vmatpush1.bf16.msra.mxu0 %v2459
        %3661 = vmatprep.subr.bf16.mxu0 %v2580
        %3662 = vmatpush2.bf16.msra.mxu0 %v2579
        %3663 = vmatprep.subr.bf16.mxu0 %v2572
        %3664 = vmatpush2.bf16.msra.mxu0 %v2571
        %3665 = vmatprep.subr.bf16.mxu0 %v2564
        %3666 = vmatpush2.bf16.msra.mxu0 %v2563
        %3667 = vmatprep.subr.bf16.mxu0 %v2556
        %3668 = vmatpush2.bf16.msra.mxu0 %v2555
        %3669 = vmatprep.subr.bf16.mxu0 %v2548
        %3670 = vmatpush2.bf16.msra.mxu0 %v2547
        %3671 = vmatprep.subr.bf16.mxu0 %v2540
        %3672 = vmatpush2.bf16.msra.mxu0 %v2539
        %3673 = vmatprep.subr.bf16.mxu0 %v2532
        %3674 = vmatpush2.bf16.msra.mxu0 %v2531
        %3675 = vmatprep.subr.bf16.mxu0 %v2524
        %3676 = vmatpush2.bf16.msra.mxu0 %v2523
        %3677 = vmatprep.mubr.bf16.mxu0 %v402
        %3678 = vmatmul.mubr.bf16.gmra.mxu0 %v401
        %v3679 = vpop.f32.mrf.mxu0
        %v3680 = vadd.f32 0.0, %v3679
        %v3681 = vpop.f32.mrf.mxu0
        %v3682 = vadd.f32 0.0, %v3681
        %v3683 = vpop.f32.mrf.mxu0
        %v3684 = vpop.f32.mrf.mxu0
        %3685 = vdwg.mxu0
        %3686 = vmatprep.subr.bf16.mxu0 %v2644
        %3687 = vmatpush1.bf16.msra.mxu0 %v2643
        %3688 = vmatprep.subr.bf16.mxu0 %v2636
        %3689 = vmatpush1.bf16.msra.mxu0 %v2635
        %3690 = vmatprep.subr.bf16.mxu0 %v2628
        %3691 = vmatpush1.bf16.msra.mxu0 %v2627
        %3692 = vmatprep.subr.bf16.mxu0 %v2620
        %3693 = vmatpush1.bf16.msra.mxu0 %v2619
        %3694 = vmatprep.subr.bf16.mxu0 %v2612
        %3695 = vmatpush1.bf16.msra.mxu0 %v2611
        %3696 = vmatprep.subr.bf16.mxu0 %v2604
        %3697 = vmatpush1.bf16.msra.mxu0 %v2603
        %3698 = vmatprep.subr.bf16.mxu0 %v2596
        %3699 = vmatpush1.bf16.msra.mxu0 %v2595
        %3700 = vmatprep.subr.bf16.mxu0 %v2588
        %3701 = vmatpush1.bf16.msra.mxu0 %v2587
        %3702 = vmatprep.subr.bf16.mxu0 %v2708
        %3703 = vmatpush2.bf16.msra.mxu0 %v2707
        %3704 = vmatprep.subr.bf16.mxu0 %v2700
        %3705 = vmatpush2.bf16.msra.mxu0 %v2699
        %3706 = vmatprep.subr.bf16.mxu0 %v2692
        %3707 = vmatpush2.bf16.msra.mxu0 %v2691
        %3708 = vmatprep.subr.bf16.mxu0 %v2684
        %3709 = vmatpush2.bf16.msra.mxu0 %v2683
        %3710 = vmatprep.subr.bf16.mxu0 %v2676
        %3711 = vmatpush2.bf16.msra.mxu0 %v2675
        %3712 = vmatprep.subr.bf16.mxu0 %v2668
        %3713 = vmatpush2.bf16.msra.mxu0 %v2667
        %3714 = vmatprep.subr.bf16.mxu0 %v2660
        %3715 = vmatpush2.bf16.msra.mxu0 %v2659
        %3716 = vmatprep.subr.bf16.mxu0 %v2652
        %3717 = vmatpush2.bf16.msra.mxu0 %v2651
        %3718 = vmatprep.mubr.bf16.mxu0 %v404
        %3719 = vmatmul.mubr.bf16.gmra.mxu0 %v403
        %v3720 = vpop.f32.mrf.mxu0
        %v3721 = vadd.f32 %v3680, %v3720
        %v3722 = vpop.f32.mrf.mxu0
        %v3723 = vadd.f32 %v3682, %v3722
        %v3724 = vpop.f32.mrf.mxu0
        %v3725 = vpop.f32.mrf.mxu0
        %3726 = vdwg.mxu0
        %3727 = vmatprep.subr.bf16.mxu0 %v2772
        %3728 = vmatpush1.bf16.msra.mxu0 %v2771
        %3729 = vmatprep.subr.bf16.mxu0 %v2764
        %3730 = vmatpush1.bf16.msra.mxu0 %v2763
        %3731 = vmatprep.subr.bf16.mxu0 %v2756
        %3732 = vmatpush1.bf16.msra.mxu0 %v2755
        %3733 = vmatprep.subr.bf16.mxu0 %v2748
        %3734 = vmatpush1.bf16.msra.mxu0 %v2747
        %3735 = vmatprep.subr.bf16.mxu0 %v2740
        %3736 = vmatpush1.bf16.msra.mxu0 %v2739
        %3737 = vmatprep.subr.bf16.mxu0 %v2732
        %3738 = vmatpush1.bf16.msra.mxu0 %v2731
        %3739 = vmatprep.subr.bf16.mxu0 %v2724
        %3740 = vmatpush1.bf16.msra.mxu0 %v2723
        %3741 = vmatprep.subr.bf16.mxu0 %v2716
        %3742 = vmatpush1.bf16.msra.mxu0 %v2715
        %3743 = vmatprep.subr.bf16.mxu0 %v2836
        %3744 = vmatpush2.bf16.msra.mxu0 %v2835
        %3745 = vmatprep.subr.bf16.mxu0 %v2828
        %3746 = vmatpush2.bf16.msra.mxu0 %v2827
        %3747 = vmatprep.subr.bf16.mxu0 %v2820
        %3748 = vmatpush2.bf16.msra.mxu0 %v2819
        %3749 = vmatprep.subr.bf16.mxu0 %v2812
        %3750 = vmatpush2.bf16.msra.mxu0 %v2811
        %3751 = vmatprep.subr.bf16.mxu0 %v2804
        %3752 = vmatpush2.bf16.msra.mxu0 %v2803
        %3753 = vmatprep.subr.bf16.mxu0 %v2796
        %3754 = vmatpush2.bf16.msra.mxu0 %v2795
        %3755 = vmatprep.subr.bf16.mxu0 %v2788
        %3756 = vmatpush2.bf16.msra.mxu0 %v2787
        %3757 = vmatprep.subr.bf16.mxu0 %v2780
        %3758 = vmatpush2.bf16.msra.mxu0 %v2779
        %3759 = vmatprep.mubr.bf16.mxu0 %v406
        %3760 = vmatmul.mubr.bf16.gmra.mxu0 %v405
        %v3761 = vpop.f32.mrf.mxu0
        %v3762 = vadd.f32 %v3721, %v3761
        %v3763 = vpop.f32.mrf.mxu0
        %v3764 = vadd.f32 %v3723, %v3763
        %v3765 = vpop.f32.mrf.mxu0
        %v3766 = vpop.f32.mrf.mxu0
        %3767 = vdwg.mxu0
        %3768 = vmatprep.subr.bf16.mxu0 %v2900
        %3769 = vmatpush1.bf16.msra.mxu0 %v2899
        %3770 = vmatprep.subr.bf16.mxu0 %v2892
        %3771 = vmatpush1.bf16.msra.mxu0 %v2891
        %3772 = vmatprep.subr.bf16.mxu0 %v2884
        %3773 = vmatpush1.bf16.msra.mxu0 %v2883
        %3774 = vmatprep.subr.bf16.mxu0 %v2876
        %3775 = vmatpush1.bf16.msra.mxu0 %v2875
        %3776 = vmatprep.subr.bf16.mxu0 %v2868
        %3777 = vmatpush1.bf16.msra.mxu0 %v2867
        %3778 = vmatprep.subr.bf16.mxu0 %v2860
        %3779 = vmatpush1.bf16.msra.mxu0 %v2859
        %3780 = vmatprep.subr.bf16.mxu0 %v2852
        %3781 = vmatpush1.bf16.msra.mxu0 %v2851
        %3782 = vmatprep.subr.bf16.mxu0 %v2844
        %3783 = vmatpush1.bf16.msra.mxu0 %v2843
        %3784 = vmatprep.subr.bf16.mxu0 %v2964
        %3785 = vmatpush2.bf16.msra.mxu0 %v2963
        %3786 = vmatprep.subr.bf16.mxu0 %v2956
        %3787 = vmatpush2.bf16.msra.mxu0 %v2955
        %3788 = vmatprep.subr.bf16.mxu0 %v2948
        %3789 = vmatpush2.bf16.msra.mxu0 %v2947
        %3790 = vmatprep.subr.bf16.mxu0 %v2940
        %3791 = vmatpush2.bf16.msra.mxu0 %v2939
        %3792 = vmatprep.subr.bf16.mxu0 %v2932
        %3793 = vmatpush2.bf16.msra.mxu0 %v2931
        %3794 = vmatprep.subr.bf16.mxu0 %v2924
        %3795 = vmatpush2.bf16.msra.mxu0 %v2923
        %3796 = vmatprep.subr.bf16.mxu0 %v2916
        %3797 = vmatpush2.bf16.msra.mxu0 %v2915
        %3798 = vmatprep.subr.bf16.mxu0 %v2908
        %3799 = vmatpush2.bf16.msra.mxu0 %v2907
        %3800 = vmatprep.mubr.bf16.mxu0 %v408
        %3801 = vmatmul.mubr.bf16.gmra.mxu0 %v407
        %v3802 = vpop.f32.mrf.mxu0
        %v3803 = vadd.f32 %v3762, %v3802
        %v3804 = vpop.f32.mrf.mxu0
        %v3805 = vadd.f32 %v3764, %v3804
        %v3806 = vpop.f32.mrf.mxu0
        %v3807 = vpop.f32.mrf.mxu0
        %3808 = vdwg.mxu0
        %3809 = vmatprep.subr.bf16.mxu0 %v2518
        %3810 = vmatpush1.bf16.msra.mxu0 %v2517
        %3811 = vmatprep.subr.bf16.mxu0 %v2510
        %3812 = vmatpush1.bf16.msra.mxu0 %v2509
        %3813 = vmatprep.subr.bf16.mxu0 %v2502
        %3814 = vmatpush1.bf16.msra.mxu0 %v2501
        %3815 = vmatprep.subr.bf16.mxu0 %v2494
        %3816 = vmatpush1.bf16.msra.mxu0 %v2493
        %3817 = vmatprep.subr.bf16.mxu0 %v2486
        %3818 = vmatpush1.bf16.msra.mxu0 %v2485
        %3819 = vmatprep.subr.bf16.mxu0 %v2478
        %3820 = vmatpush1.bf16.msra.mxu0 %v2477
        %3821 = vmatprep.subr.bf16.mxu0 %v2470
        %3822 = vmatpush1.bf16.msra.mxu0 %v2469
        %3823 = vmatprep.subr.bf16.mxu0 %v2462
        %3824 = vmatpush1.bf16.msra.mxu0 %v2461
        %3825 = vmatprep.subr.bf16.mxu0 %v2582
        %3826 = vmatpush2.bf16.msra.mxu0 %v2581
        %3827 = vmatprep.subr.bf16.mxu0 %v2574
        %3828 = vmatpush2.bf16.msra.mxu0 %v2573
        %3829 = vmatprep.subr.bf16.mxu0 %v2566
        %3830 = vmatpush2.bf16.msra.mxu0 %v2565
        %3831 = vmatprep.subr.bf16.mxu0 %v2558
        %3832 = vmatpush2.bf16.msra.mxu0 %v2557
        %3833 = vmatprep.subr.bf16.mxu0 %v2550
        %3834 = vmatpush2.bf16.msra.mxu0 %v2549
        %3835 = vmatprep.subr.bf16.mxu0 %v2542
        %3836 = vmatpush2.bf16.msra.mxu0 %v2541
        %3837 = vmatprep.subr.bf16.mxu0 %v2534
        %3838 = vmatpush2.bf16.msra.mxu0 %v2533
        %3839 = vmatprep.subr.bf16.mxu0 %v2526
        %3840 = vmatpush2.bf16.msra.mxu0 %v2525
        %3841 = vmatprep.mubr.bf16.mxu0 %v402
        %3842 = vmatmul.mubr.bf16.gmra.mxu0 %v401
        %v3843 = vpop.f32.mrf.mxu0
        %v3844 = vadd.f32 0.0, %v3843
        %v3845 = vpop.f32.mrf.mxu0
        %v3846 = vadd.f32 0.0, %v3845
        %v3847 = vpop.f32.mrf.mxu0
        %v3848 = vpop.f32.mrf.mxu0
        %3849 = vdwg.mxu0
        %3850 = vmatprep.subr.bf16.mxu0 %v2646
        %3851 = vmatpush1.bf16.msra.mxu0 %v2645
        %3852 = vmatprep.subr.bf16.mxu0 %v2638
        %3853 = vmatpush1.bf16.msra.mxu0 %v2637
        %3854 = vmatprep.subr.bf16.mxu0 %v2630
        %3855 = vmatpush1.bf16.msra.mxu0 %v2629
        %3856 = vmatprep.subr.bf16.mxu0 %v2622
        %3857 = vmatpush1.bf16.msra.mxu0 %v2621
        %3858 = vmatprep.subr.bf16.mxu0 %v2614
        %3859 = vmatpush1.bf16.msra.mxu0 %v2613
        %3860 = vmatprep.subr.bf16.mxu0 %v2606
        %3861 = vmatpush1.bf16.msra.mxu0 %v2605
        %3862 = vmatprep.subr.bf16.mxu0 %v2598
        %3863 = vmatpush1.bf16.msra.mxu0 %v2597
        %3864 = vmatprep.subr.bf16.mxu0 %v2590
        %3865 = vmatpush1.bf16.msra.mxu0 %v2589
        %3866 = vmatprep.subr.bf16.mxu0 %v2710
        %3867 = vmatpush2.bf16.msra.mxu0 %v2709
        %3868 = vmatprep.subr.bf16.mxu0 %v2702
        %3869 = vmatpush2.bf16.msra.mxu0 %v2701
        %3870 = vmatprep.subr.bf16.mxu0 %v2694
        %3871 = vmatpush2.bf16.msra.mxu0 %v2693
        %3872 = vmatprep.subr.bf16.mxu0 %v2686
        %3873 = vmatpush2.bf16.msra.mxu0 %v2685
        %3874 = vmatprep.subr.bf16.mxu0 %v2678
        %3875 = vmatpush2.bf16.msra.mxu0 %v2677
        %3876 = vmatprep.subr.bf16.mxu0 %v2670
        %3877 = vmatpush2.bf16.msra.mxu0 %v2669
        %3878 = vmatprep.subr.bf16.mxu0 %v2662
        %3879 = vmatpush2.bf16.msra.mxu0 %v2661
        %3880 = vmatprep.subr.bf16.mxu0 %v2654
        %3881 = vmatpush2.bf16.msra.mxu0 %v2653
        %3882 = vmatprep.mubr.bf16.mxu0 %v404
        %3883 = vmatmul.mubr.bf16.gmra.mxu0 %v403
        %v3884 = vpop.f32.mrf.mxu0
        %v3885 = vadd.f32 %v3844, %v3884
        %v3886 = vpop.f32.mrf.mxu0
        %v3887 = vadd.f32 %v3846, %v3886
        %v3888 = vpop.f32.mrf.mxu0
        %v3889 = vpop.f32.mrf.mxu0
        %3890 = vdwg.mxu0
        %3891 = vmatprep.subr.bf16.mxu0 %v2774
        %3892 = vmatpush1.bf16.msra.mxu0 %v2773
        %3893 = vmatprep.subr.bf16.mxu0 %v2766
        %3894 = vmatpush1.bf16.msra.mxu0 %v2765
        %3895 = vmatprep.subr.bf16.mxu0 %v2758
        %3896 = vmatpush1.bf16.msra.mxu0 %v2757
        %3897 = vmatprep.subr.bf16.mxu0 %v2750
        %3898 = vmatpush1.bf16.msra.mxu0 %v2749
        %3899 = vmatprep.subr.bf16.mxu0 %v2742
        %3900 = vmatpush1.bf16.msra.mxu0 %v2741
        %3901 = vmatprep.subr.bf16.mxu0 %v2734
        %3902 = vmatpush1.bf16.msra.mxu0 %v2733
        %3903 = vmatprep.subr.bf16.mxu0 %v2726
        %3904 = vmatpush1.bf16.msra.mxu0 %v2725
        %3905 = vmatprep.subr.bf16.mxu0 %v2718
        %3906 = vmatpush1.bf16.msra.mxu0 %v2717
        %3907 = vmatprep.subr.bf16.mxu0 %v2838
        %3908 = vmatpush2.bf16.msra.mxu0 %v2837
        %3909 = vmatprep.subr.bf16.mxu0 %v2830
        %3910 = vmatpush2.bf16.msra.mxu0 %v2829
        %3911 = vmatprep.subr.bf16.mxu0 %v2822
        %3912 = vmatpush2.bf16.msra.mxu0 %v2821
        %3913 = vmatprep.subr.bf16.mxu0 %v2814
        %3914 = vmatpush2.bf16.msra.mxu0 %v2813
        %3915 = vmatprep.subr.bf16.mxu0 %v2806
        %3916 = vmatpush2.bf16.msra.mxu0 %v2805
        %3917 = vmatprep.subr.bf16.mxu0 %v2798
        %3918 = vmatpush2.bf16.msra.mxu0 %v2797
        %3919 = vmatprep.subr.bf16.mxu0 %v2790
        %3920 = vmatpush2.bf16.msra.mxu0 %v2789
        %3921 = vmatprep.subr.bf16.mxu0 %v2782
        %3922 = vmatpush2.bf16.msra.mxu0 %v2781
        %3923 = vmatprep.mubr.bf16.mxu0 %v406
        %3924 = vmatmul.mubr.bf16.gmra.mxu0 %v405
        %v3925 = vpop.f32.mrf.mxu0
        %v3926 = vadd.f32 %v3885, %v3925
        %v3927 = vpop.f32.mrf.mxu0
        %v3928 = vadd.f32 %v3887, %v3927
        %v3929 = vpop.f32.mrf.mxu0
        %v3930 = vpop.f32.mrf.mxu0
        %3931 = vdwg.mxu0
        %3932 = vmatprep.subr.bf16.mxu0 %v2902
        %3933 = vmatpush1.bf16.msra.mxu0 %v2901
        %3934 = vmatprep.subr.bf16.mxu0 %v2894
        %3935 = vmatpush1.bf16.msra.mxu0 %v2893
        %3936 = vmatprep.subr.bf16.mxu0 %v2886
        %3937 = vmatpush1.bf16.msra.mxu0 %v2885
        %3938 = vmatprep.subr.bf16.mxu0 %v2878
        %3939 = vmatpush1.bf16.msra.mxu0 %v2877
        %3940 = vmatprep.subr.bf16.mxu0 %v2870
        %3941 = vmatpush1.bf16.msra.mxu0 %v2869
        %3942 = vmatprep.subr.bf16.mxu0 %v2862
        %3943 = vmatpush1.bf16.msra.mxu0 %v2861
        %3944 = vmatprep.subr.bf16.mxu0 %v2854
        %3945 = vmatpush1.bf16.msra.mxu0 %v2853
        %3946 = vmatprep.subr.bf16.mxu0 %v2846
        %3947 = vmatpush1.bf16.msra.mxu0 %v2845
        %3948 = vmatprep.subr.bf16.mxu0 %v2966
        %3949 = vmatpush2.bf16.msra.mxu0 %v2965
        %3950 = vmatprep.subr.bf16.mxu0 %v2958
        %3951 = vmatpush2.bf16.msra.mxu0 %v2957
        %3952 = vmatprep.subr.bf16.mxu0 %v2950
        %3953 = vmatpush2.bf16.msra.mxu0 %v2949
        %3954 = vmatprep.subr.bf16.mxu0 %v2942
        %3955 = vmatpush2.bf16.msra.mxu0 %v2941
        %3956 = vmatprep.subr.bf16.mxu0 %v2934
        %3957 = vmatpush2.bf16.msra.mxu0 %v2933
        %3958 = vmatprep.subr.bf16.mxu0 %v2926
        %3959 = vmatpush2.bf16.msra.mxu0 %v2925
        %3960 = vmatprep.subr.bf16.mxu0 %v2918
        %3961 = vmatpush2.bf16.msra.mxu0 %v2917
        %3962 = vmatprep.subr.bf16.mxu0 %v2910
        %3963 = vmatpush2.bf16.msra.mxu0 %v2909
        %3964 = vmatprep.mubr.bf16.mxu0 %v408
        %3965 = vmatmul.mubr.bf16.gmra.mxu0 %v407
        %v3966 = vpop.f32.mrf.mxu0
        %v3967 = vadd.f32 %v3926, %v3966
        %v3968 = vpop.f32.mrf.mxu0
        %v3969 = vadd.f32 %v3928, %v3968
        %v3970 = vpop.f32.mrf.mxu0
        %v3971 = vpop.f32.mrf.mxu0
        %3972 = vdwg.mxu0
        %3973 = vmatprep.subr.bf16.mxu0 %v2520
        %3974 = vmatpush1.bf16.msra.mxu0 %v2519
        %3975 = vmatprep.subr.bf16.mxu0 %v2512
        %3976 = vmatpush1.bf16.msra.mxu0 %v2511
        %3977 = vmatprep.subr.bf16.mxu0 %v2504
        %3978 = vmatpush1.bf16.msra.mxu0 %v2503
        %3979 = vmatprep.subr.bf16.mxu0 %v2496
        %3980 = vmatpush1.bf16.msra.mxu0 %v2495
        %3981 = vmatprep.subr.bf16.mxu0 %v2488
        %3982 = vmatpush1.bf16.msra.mxu0 %v2487
        %3983 = vmatprep.subr.bf16.mxu0 %v2480
        %3984 = vmatpush1.bf16.msra.mxu0 %v2479
        %3985 = vmatprep.subr.bf16.mxu0 %v2472
        %3986 = vmatpush1.bf16.msra.mxu0 %v2471
        %3987 = vmatprep.subr.bf16.mxu0 %v2464
        %3988 = vmatpush1.bf16.msra.mxu0 %v2463
        %3989 = vmatprep.subr.bf16.mxu0 %v2584
        %3990 = vmatpush2.bf16.msra.mxu0 %v2583
        %3991 = vmatprep.subr.bf16.mxu0 %v2576
        %3992 = vmatpush2.bf16.msra.mxu0 %v2575
        %3993 = vmatprep.subr.bf16.mxu0 %v2568
        %3994 = vmatpush2.bf16.msra.mxu0 %v2567
        %3995 = vmatprep.subr.bf16.mxu0 %v2560
        %3996 = vmatpush2.bf16.msra.mxu0 %v2559
        %3997 = vmatprep.subr.bf16.mxu0 %v2552
        %3998 = vmatpush2.bf16.msra.mxu0 %v2551
        %3999 = vmatprep.subr.bf16.mxu0 %v2544
        %4000 = vmatpush2.bf16.msra.mxu0 %v2543
        %4001 = vmatprep.subr.bf16.mxu0 %v2536
        %4002 = vmatpush2.bf16.msra.mxu0 %v2535
        %4003 = vmatprep.subr.bf16.mxu0 %v2528
        %4004 = vmatpush2.bf16.msra.mxu0 %v2527
        %4005 = vmatprep.mubr.bf16.mxu0 %v402
        %4006 = vmatmul.mubr.bf16.gmra.mxu0 %v401
        %v4007 = vpop.f32.mrf.mxu0
        %v4008 = vadd.f32 0.0, %v4007
        %v4009 = vpop.f32.mrf.mxu0
        %v4010 = vadd.f32 0.0, %v4009
        %v4011 = vpop.f32.mrf.mxu0
        %v4012 = vpop.f32.mrf.mxu0
        %4013 = vdwg.mxu0
        %4014 = vmatprep.subr.bf16.mxu0 %v2648
        %4015 = vmatpush1.bf16.msra.mxu0 %v2647
        %4016 = vmatprep.subr.bf16.mxu0 %v2640
        %4017 = vmatpush1.bf16.msra.mxu0 %v2639
        %4018 = vmatprep.subr.bf16.mxu0 %v2632
        %4019 = vmatpush1.bf16.msra.mxu0 %v2631
        %4020 = vmatprep.subr.bf16.mxu0 %v2624
        %4021 = vmatpush1.bf16.msra.mxu0 %v2623
        %4022 = vmatprep.subr.bf16.mxu0 %v2616
        %4023 = vmatpush1.bf16.msra.mxu0 %v2615
        %4024 = vmatprep.subr.bf16.mxu0 %v2608
        %4025 = vmatpush1.bf16.msra.mxu0 %v2607
        %4026 = vmatprep.subr.bf16.mxu0 %v2600
        %4027 = vmatpush1.bf16.msra.mxu0 %v2599
        %4028 = vmatprep.subr.bf16.mxu0 %v2592
        %4029 = vmatpush1.bf16.msra.mxu0 %v2591
        %4030 = vmatprep.subr.bf16.mxu0 %v2712
        %4031 = vmatpush2.bf16.msra.mxu0 %v2711
        %4032 = vmatprep.subr.bf16.mxu0 %v2704
        %4033 = vmatpush2.bf16.msra.mxu0 %v2703
        %4034 = vmatprep.subr.bf16.mxu0 %v2696
        %4035 = vmatpush2.bf16.msra.mxu0 %v2695
        %4036 = vmatprep.subr.bf16.mxu0 %v2688
        %4037 = vmatpush2.bf16.msra.mxu0 %v2687
        %4038 = vmatprep.subr.bf16.mxu0 %v2680
        %4039 = vmatpush2.bf16.msra.mxu0 %v2679
        %4040 = vmatprep.subr.bf16.mxu0 %v2672
        %4041 = vmatpush2.bf16.msra.mxu0 %v2671
        %4042 = vmatprep.subr.bf16.mxu0 %v2664
        %4043 = vmatpush2.bf16.msra.mxu0 %v2663
        %4044 = vmatprep.subr.bf16.mxu0 %v2656
        %4045 = vmatpush2.bf16.msra.mxu0 %v2655
        %4046 = vmatprep.mubr.bf16.mxu0 %v404
        %4047 = vmatmul.mubr.bf16.gmra.mxu0 %v403
        %v4048 = vpop.f32.mrf.mxu0
        %v4049 = vadd.f32 %v4008, %v4048
        %v4050 = vpop.f32.mrf.mxu0
        %v4051 = vadd.f32 %v4010, %v4050
        %v4052 = vpop.f32.mrf.mxu0
        %v4053 = vpop.f32.mrf.mxu0
        %4054 = vdwg.mxu0
        %4055 = vmatprep.subr.bf16.mxu0 %v2776
        %4056 = vmatpush1.bf16.msra.mxu0 %v2775
        %4057 = vmatprep.subr.bf16.mxu0 %v2768
        %4058 = vmatpush1.bf16.msra.mxu0 %v2767
        %4059 = vmatprep.subr.bf16.mxu0 %v2760
        %4060 = vmatpush1.bf16.msra.mxu0 %v2759
        %4061 = vmatprep.subr.bf16.mxu0 %v2752
        %4062 = vmatpush1.bf16.msra.mxu0 %v2751
        %4063 = vmatprep.subr.bf16.mxu0 %v2744
        %4064 = vmatpush1.bf16.msra.mxu0 %v2743
        %4065 = vmatprep.subr.bf16.mxu0 %v2736
        %4066 = vmatpush1.bf16.msra.mxu0 %v2735
        %4067 = vmatprep.subr.bf16.mxu0 %v2728
        %4068 = vmatpush1.bf16.msra.mxu0 %v2727
        %4069 = vmatprep.subr.bf16.mxu0 %v2720
        %4070 = vmatpush1.bf16.msra.mxu0 %v2719
        %4071 = vmatprep.subr.bf16.mxu0 %v2840
        %4072 = vmatpush2.bf16.msra.mxu0 %v2839
        %4073 = vmatprep.subr.bf16.mxu0 %v2832
        %4074 = vmatpush2.bf16.msra.mxu0 %v2831
        %4075 = vmatprep.subr.bf16.mxu0 %v2824
        %4076 = vmatpush2.bf16.msra.mxu0 %v2823
        %4077 = vmatprep.subr.bf16.mxu0 %v2816
        %4078 = vmatpush2.bf16.msra.mxu0 %v2815
        %4079 = vmatprep.subr.bf16.mxu0 %v2808
        %4080 = vmatpush2.bf16.msra.mxu0 %v2807
        %4081 = vmatprep.subr.bf16.mxu0 %v2800
        %4082 = vmatpush2.bf16.msra.mxu0 %v2799
        %4083 = vmatprep.subr.bf16.mxu0 %v2792
        %4084 = vmatpush2.bf16.msra.mxu0 %v2791
        %4085 = vmatprep.subr.bf16.mxu0 %v2784
        %4086 = vmatpush2.bf16.msra.mxu0 %v2783
        %4087 = vmatprep.mubr.bf16.mxu0 %v406
        %4088 = vmatmul.mubr.bf16.gmra.mxu0 %v405
        %v4089 = vpop.f32.mrf.mxu0
        %v4090 = vadd.f32 %v4049, %v4089
        %v4091 = vpop.f32.mrf.mxu0
        %v4092 = vadd.f32 %v4051, %v4091
        %v4093 = vpop.f32.mrf.mxu0
        %v4094 = vpop.f32.mrf.mxu0
        %4095 = vdwg.mxu0
        %4096 = vmatprep.subr.bf16.mxu0 %v2904
        %4097 = vmatpush1.bf16.msra.mxu0 %v2903
        %4098 = vmatprep.subr.bf16.mxu0 %v2896
        %4099 = vmatpush1.bf16.msra.mxu0 %v2895
        %4100 = vmatprep.subr.bf16.mxu0 %v2888
        %4101 = vmatpush1.bf16.msra.mxu0 %v2887
        %4102 = vmatprep.subr.bf16.mxu0 %v2880
        %4103 = vmatpush1.bf16.msra.mxu0 %v2879
        %4104 = vmatprep.subr.bf16.mxu0 %v2872
        %4105 = vmatpush1.bf16.msra.mxu0 %v2871
        %4106 = vmatprep.subr.bf16.mxu0 %v2864
        %4107 = vmatpush1.bf16.msra.mxu0 %v2863
        %4108 = vmatprep.subr.bf16.mxu0 %v2856
        %4109 = vmatpush1.bf16.msra.mxu0 %v2855
        %4110 = vmatprep.subr.bf16.mxu0 %v2848
        %4111 = vmatpush1.bf16.msra.mxu0 %v2847
        %4112 = vmatprep.subr.bf16.mxu0 %v2968
        %4113 = vmatpush2.bf16.msra.mxu0 %v2967
        %4114 = vmatprep.subr.bf16.mxu0 %v2960
        %4115 = vmatpush2.bf16.msra.mxu0 %v2959
        %4116 = vmatprep.subr.bf16.mxu0 %v2952
        %4117 = vmatpush2.bf16.msra.mxu0 %v2951
        %4118 = vmatprep.subr.bf16.mxu0 %v2944
        %4119 = vmatpush2.bf16.msra.mxu0 %v2943
        %4120 = vmatprep.subr.bf16.mxu0 %v2936
        %4121 = vmatpush2.bf16.msra.mxu0 %v2935
        %4122 = vmatprep.subr.bf16.mxu0 %v2928
        %4123 = vmatpush2.bf16.msra.mxu0 %v2927
        %4124 = vmatprep.subr.bf16.mxu0 %v2920
        %4125 = vmatpush2.bf16.msra.mxu0 %v2919
        %4126 = vmatprep.subr.bf16.mxu0 %v2912
        %4127 = vmatpush2.bf16.msra.mxu0 %v2911
        %4128 = vmatprep.mubr.bf16.mxu0 %v408
        %4129 = vmatmul.mubr.bf16.gmra.mxu0 %v407
        %v4130 = vpop.f32.mrf.mxu0
        %v4131 = vadd.f32 %v4090, %v4130
        %v4132 = vpop.f32.mrf.mxu0
        %v4133 = vadd.f32 %v4092, %v4132
        %v4134 = vpop.f32.mrf.mxu0
        %v4135 = vpop.f32.mrf.mxu0
        %4136 = vdwg.mxu0
        %s4137 = smul.u32 %s21, 512
        %s4138 = sshra.s32 %s4137, 7
        %s4139 = sand.u32 %s4137, 127
        %s4140 = smul.addr %s4138, 2
        %s4141 = scalar_lea.vmem [#allocation9], %s4140
        %v4142 = vld [vmem:[%s4141] sm:$0xff]
        %v4144 = vcombine.high %v4142, %v4142
        %v4146 = vunpack.c.l.s4 1983009808
        %v4147 = vunpack.c.0.s8 %v4146
        %v4148 = vlaneseq
        %v4149 = vshrl.u32 %v4148, 7
        %v4150 = vsub.s32 %v4147, %v4149
        %v4151 = vrot.slane %v4142, %v4150
        %v4153 = vunpack.c.l.s4 1983009808
        %v4154 = vunpack.c.0.s8 %v4153
        %v4155 = vlaneseq
        %v4156 = vshrl.u32 %v4155, 7
        %v4157 = vsub.s32 %v4154, %v4156
        %v4158 = vrot.slane %v4144, %v4157
        %v4159 = vcombine.high %v4151, %v4151
        %v4160 = vcombine.high %v4158, %v4158
        %v4165 = vsub.f32 %v3639, %v4151
        %v4166 = vsub.f32 %v3641, %v4159
        %v4167 = vsub.f32 %v3803, %v4158
        %v4168 = vsub.f32 %v3805, %v4160
        %v4169 = vsub.f32 %v3967, %v4151
        %v4170 = vsub.f32 %v3969, %v4159
        %v4171 = vsub.f32 %v4131, %v4158
        %v4172 = vsub.f32 %v4133, %v4160
        %v4173 = vmul.f32 %v4165, %v4165
        %v4174 = vmul.f32 %v4166, %v4166
        %v4175 = vmul.f32 %v4167, %v4167
        %v4176 = vmul.f32 %v4168, %v4168
        %v4177 = vmul.f32 %v4169, %v4169
        %v4178 = vmul.f32 %v4170, %v4170
        %v4179 = vmul.f32 %v4171, %v4171
        %v4180 = vmul.f32 %v4172, %v4172
        %v4181 = vsub.f32 %v4173, %v4177
        %v4182 = vsub.f32 %v4174, %v4178
        %v4183 = vsub.f32 %v4175, %v4179
        %v4184 = vsub.f32 %v4176, %v4180
        %vm4185 = vcmask 1041408
        %v4186 = vsel %vm4185, %v4181, 0.0
        %v4187 = vsel %vm4185, %v4182, 0.0
        %v4188 = vadd.f32 %v4186, %v4187
        %v4189 = vsel %vm4185, %v4183, 0.0
        %v4190 = vadd.f32 %v4188, %v4189
        %v4191 = vsel %vm4185, %v4184, 0.0
        %v4192 = vadd.f32 %v4190, %v4191
        %4193 = vadd.xlane.f32.xlu0 %v4192
        %v4194 = vpop.xlane.xlu0 %4193
        %v4195 = vrot.slane %v4194, 4
        %v4196 = vadd.f32 %v4194, %v4195
        %v4197 = vrot.slane %v4196, 2
        %v4198 = vadd.f32 %v4196, %v4197
        %v4199 = vrot.slane %v4198, 1
        %v4200 = vadd.f32 %v4198, %v4199
        %s4201 = vtos %v4200
        %v4202 = vstv %s4201
        %4203 = vst [vmem:[%s330] sm:$0xff] %v4202
        %p4204 = scmp.lt.s32.totalorder %s21, 1
        %s4205 = scalar_select %p4204, %s21, 1
        %s4206 = smul.addr %s4205, 8
        %s4207 = scalar_lea.vmem %s6, %s4206
        // Predicated region
        $region69: #{loss_fn.1} parent=43 // pred_check
          %p4208 = pneg %p170
        $region70: #{loss_fn.1} parent=43 // pred_check_branch
          %4210 = sbr.rel (%p4208) target = $region72
        $region71: #{loss_fn.1} parent=43 // pred_region
          _
        $region72: #{loss_fn.1} parent=43 // pred_fallthru
          _
      $region44: #{loss_fn.1} parent=5 // pred_fallthru
        _
      %p4211 = scmp.le.s32.totalorder 2, %s16
      // Predicated region
      $region73: #{loss_fn.1} parent=5 // pred_check
        %p4212 = pneg %p4211
      $region74: #{loss_fn.1} parent=5 // pred_check_branch
        %4214 = sbr.rel (%p4212) target = $region76
      $region75: #{loss_fn.1} parent=5 // pred_region
        %s4215 = ssub.s32 %s16, 2
        // Predicated region
        $region77: #{loss_fn.1} parent=75 // pred_check
          %p4216 = pneg %p176
        $region78: #{loss_fn.1} parent=75 // pred_check_branch
          %4218 = sbr.rel (%p4216) target = $region80
        $region79: #{loss_fn.1} parent=75 // pred_region
          %p4219 = scmp.lt.s32.totalorder %s22, 1
          %s4220 = scalar_select %p4219, %s22, 1
          %s4221 = smul.addr %s4220, 8
          %s4222 = scalar_lea.vmem %s6, %s4221
        $region80: #{loss_fn.1} parent=75 // pred_fallthru
          _
      $region76: #{loss_fn.1} parent=5 // pred_fallthru
        _
    $region6: #{loss_fn.1} parent=1 // loop_footer
      %s20 = sadd.s32 1, %s16
    $region7: #{loss_fn.1} parent=1 // loop_footer_branch
      %15 = sbr.rel target = $region3
    $region8: #{loss_fn.1} parent=1 // loop_exit
      _
    %4223 = vsyncpa [#allocation3], 1
    %s4224 = scalar_lea.sflag [#allocation3], 1
    %4225 = vsyncpa %s4224, 1
    %4226 = vsyncpa [#allocation7], 1
    %4227 = vsyncpa [#allocation10], 1
    %4228 = vsyncpa [#allocation4], 1
    %s4229 = scalar_lea.sflag [#allocation4], 1
    %4230 = vsyncpa %s4229, 1

</llo_original>
